<compile_context>
chip_gen: v7x
topology: tpu7x:2x2x1
jax: 0.10.0
libtpu: 0.0.40
codegen_flags: <defaults>
</compile_context>

<pallas_src>
import functools

import jax
import jax.numpy as jnp
from jax.experimental import pallas as pl
from jax.experimental.pallas import tpu as pltpu


# ----------------------------------------------------------------------------
# Hardware-aware sizing helpers
# ----------------------------------------------------------------------------
def _vmem_limit_bytes():
    """Generation-aware VMEM budget: ~75% of physical, capped at 96 MiB.
    v5e/v6e (128 MiB physical) -> 96 MiB; v7x (64 MiB physical) -> 48 MiB."""
    cap = 64 * 1024 * 1024                      # v7x-safe fallback
    try:
        info = pltpu.get_tpu_info()
        cap = int(getattr(info, "vmem_capacity_bytes", cap) or cap)
    except Exception:
        pass
    return min((cap * 3) // 4, 96 * 1024 * 1024)


def _pick_block_rows(n, h, w, cin, cmid, cout, itemsize, vmem_limit,
                     requested=None):
    """Conv-output rows per grid block.  Must divide H (blocks stay exact, no
    stat masking); chosen so the double-buffered per-step footprint is a few
    MiB up to ~half the VMEM budget, with >= 2 total grid blocks preferred so
    v7x's two TensorCores both get work."""
    divisors = [d for d in range(1, h + 1) if h % d == 0]
    if requested is not None:
        return max(d for d in divisors if d <= max(1, int(requested)))

    def per_step_bytes(d):
        in_blk = max((d + 4) * (w + 2) * cin, (d + 2) * (w + 2) * cmid) * itemsize
        out_blk = max((d + 2) * (w + 2) * cmid, d * w * cout) * itemsize
        im2col = (d + 2) * w * 9 * max(cin, cmid) * itemsize
        acc = (d + 2) * w * max(cmid, cout) * 4
        return 2 * (in_blk + out_blk) + im2col + acc        # 2x: double buffering

    budget = vmem_limit // 2
    fitting = [d for d in divisors if per_step_bytes(d) <= budget]
    th = max(fitting) if fitting else divisors[0]
    if n * (h // th) < 2:                                    # keep both v7x cores busy
        smaller = [d for d in fitting if d < th]
        if smaller:
            th = max(smaller)
    return th


def _compiler_params(vmem_limit):
    return pltpu.CompilerParams(
        dimension_semantics=("parallel", "parallel"),
        vmem_limit_bytes=vmem_limit,
    )


# ----------------------------------------------------------------------------
# Kernels
# ----------------------------------------------------------------------------
def _conv_bn_stats_kernel(*refs, th, img_h, img_w, fuse_act, halo_out):
    """3x3 conv over one halo'd row block as a single im2col MXU matmul.

    fuse_act : apply max(x*scale + shift, 0) of the previous stage to the
               loaded input block (spatial-padding positions re-zeroed).
    halo_out : compute th+2 rows (own th rows + 1 halo row each side) and
               write a spatially padded (th+2, W+2, C) block so the next conv
               can consume it directly.  Otherwise compute/write (th, W, C).
    Also emits per-block BN partials: row 0 = sum, row 1 = centered sum of
    squares, over the th rows this block *owns* (each conv row counted once).
    """
    if fuse_act:
        x_ref, w_ref, scale_ref, shift_ref, y_ref, st_ref = refs
    else:
        x_ref, w_ref, y_ref, st_ref = refs
        scale_ref = shift_ref = None

    rb = pl.program_id(1)
    r_in, w_in, cin = x_ref.shape              # (r_out + 2, img_w + 2, cin)
    r_out = r_in - 2
    cout = y_ref.shape[-1]

    x = x_ref[...]
    if fuse_act:
        # Previous stage's BN + ReLU, fused into the load (f32 math).  The
        # spatial zero-padding positions stored by the previous conv pass must
        # be forced back to exact zero (ReLU(shift) != 0 in general).
        act = jnp.maximum(
            x.astype(jnp.float32) * scale_ref[...] + shift_ref[...], 0.0)
        row_abs = rb * th - 1 + jax.lax.broadcasted_iota(
            jnp.int32, (r_in, 1, 1), 0)
        col = jax.lax.broadcasted_iota(jnp.int32, (1, w_in, 1), 1)
        interior = ((row_abs >= 0) & (row_abs < img_h) &
                    (col >= 1) & (col <= img_w))
        x = jnp.where(interior, act, 0.0).astype(w_ref.dtype)

    # In-VMEM im2col: one (r_out*img_w, 9*cin) x (9*cin, cout) MXU matmul per
    # block instead of 9 tiny matmuls per output row.
    cols = []
    for dy in range(3):
        for dx in range(3):
            cols.append(
                x[dy:dy + r_out, dx:dx + img_w, :].reshape(r_out * img_w, cin))
    patches = jnp.concatenate(cols, axis=-1)                       # (M, 9*cin)
    acc = jnp.dot(patches, w_ref[...],
                  preferred_element_type=jnp.float32)              # (M, cout) f32

    # BatchNorm partials over the rows this block owns (f32, block-centered).
    own = acc[img_w:(th + 1) * img_w] if halo_out else acc         # (th*img_w, cout)
    cnt = float(own.shape[0])
    s = jnp.sum(own, axis=0, keepdims=True)                        # (1, cout)
    d = own - s / cnt
    m2 = jnp.sum(d * d, axis=0, keepdims=True)                     # (1, cout)
    st_ref[...] = jnp.concatenate(
        [s, m2, jnp.zeros((6, cout), jnp.float32)], axis=0)

    conv = acc.reshape(r_out, img_w, cout)
    if halo_out:
        # Zero the rows falling in the image's spatial zero-padding and append
        # the zero W-padding columns, so this block is directly usable as the
        # next conv's halo'd, padded input block.
        row_abs = rb * th - 1 + jax.lax.broadcasted_iota(
            jnp.int32, (r_out, 1, 1), 0)
        conv = jnp.where((row_abs >= 0) & (row_abs < img_h), conv, 0.0)
        zcol = jnp.zeros((r_out, 1, cout), jnp.float32)
        conv = jnp.concatenate([zcol, conv, zcol], axis=1)         # (r_out, W+2, cout)
    y_ref[...] = conv.astype(y_ref.dtype)


def _bn_relu_kernel(y_ref, scale_ref, shift_ref, o_ref):
    """out = max(conv * scale + shift, 0), per-channel scale/shift, f32 math."""
    y = y_ref[...].astype(jnp.float32)
    o_ref[...] = jnp.maximum(y * scale_ref[...] + shift_ref[...],
                             0.0).astype(o_ref.dtype)


# ----------------------------------------------------------------------------
# Pallas-call wrappers
# ----------------------------------------------------------------------------
def _halo_row_blocks(x_nhwc, *, th, halo):
    """(N, H, W, C) -> (N, H//th, th + 2*halo, W + 2, C): zero-padded and
    row-blocked with `halo` duplicated rows per side.  Pure XLA glue, used
    only for the network input (the inter-stage activation never takes it)."""
    n, h, w, c = x_nhwc.shape
    nblk = h // th
    xp = jnp.pad(x_nhwc, ((0, 0), (halo, halo), (1, 1), (0, 0)))
    blocks = [xp[:, i * th:i * th + th + 2 * halo] for i in range(nblk)]
    return jnp.stack(blocks, axis=1)


def _conv_pass(x_blocks, w_oihw, scale_shift, *, img_h, img_w, th, halo_out,
               matmul_dtype, store_dtype, vmem_limit):
    """One conv stage: halo'd row blocks -> conv (+optional fused BN/ReLU of
    the previous stage) + per-block BN partials."""
    n, nblk, r_in, wpad, cin = x_blocks.shape         # r_in = r_out + 2
    cout = w_oihw.shape[0]
    r_out = r_in - 2
    w_store = img_w + 2 if halo_out else img_w
    fuse_act = scale_shift is not None

    # (Cout, Cin, 3, 3) -> (3, 3, Cin, Cout) -> (9*Cin, Cout), K = (dy, dx, cin).
    wk = jnp.transpose(w_oihw, (2, 3, 1, 0)).reshape(9 * cin, cout)
    wk = wk.astype(matmul_dtype)

    kern = functools.partial(_conv_bn_stats_kernel, th=th, img_h=img_h,
                             img_w=img_w, fuse_act=fuse_act, halo_out=halo_out)

    in_specs = [
        pl.BlockSpec((None, None, r_in, wpad, cin),
                     lambda nb, rb: (nb, rb, 0, 0, 0)),
        pl.BlockSpec((9 * cin, cout), lambda nb, rb: (0, 0)),
    ]
    args = [x_blocks, wk]
    if fuse_act:
        scale, shift = scale_shift
        in_specs += [pl.BlockSpec((1, 1, cin), lambda nb, rb: (0, 0, 0)),
                     pl.BlockSpec((1, 1, cin), lambda nb, rb: (0, 0, 0))]
        args += [scale.reshape(1, 1, cin).astype(jnp.float32),
                 shift.reshape(1, 1, cin).astype(jnp.float32)]

    conv, stats = pl.pallas_call(
        kern,
        grid=(n, nblk),
        in_specs=in_specs,
        out_specs=[
            pl.BlockSpec((None, None, r_out, w_store, cout),
                         lambda nb, rb: (nb, rb, 0, 0, 0)),
            pl.BlockSpec((None, None, 8, cout), lambda nb, rb: (nb, rb, 0, 0)),
        ],
        out_shape=[
            jax.ShapeDtypeStruct((n, nblk, r_out, w_store, cout), store_dtype),
            jax.ShapeDtypeStruct((n, nblk, 8, cout), jnp.float32),
        ],
        compiler_params=_compiler_params(vmem_limit),
    )(*args)
    return conv, stats


def _bn_fold(stats, gamma, beta, total_count):
    """Merge per-block (sum, centered sum-of-squares) into BN scale/shift.
    Parallel (Chan) variance merge: robust against E[x^2]-E[x]^2 cancellation.
    Training-mode BN: biased variance, eps = 1e-5 (PyTorch defaults)."""
    s_b = stats[:, :, 0, :].astype(jnp.float32)        # (N, nblk, C)
    m2_b = stats[:, :, 1, :].astype(jnp.float32)
    per_block = total_count / (stats.shape[0] * stats.shape[1])
    mean_b = s_b / per_block
    mean = jnp.sum(s_b, axis=(0, 1)) / total_count
    var = (jnp.sum(m2_b, axis=(0, 1))
           + per_block * jnp.sum((mean_b - mean) ** 2, axis=(0, 1))) / total_count
    var = jnp.maximum(var, 0.0)
    scale = gamma.astype(jnp.float32) * jax.lax.rsqrt(var + 1e-5)
    shift = beta.astype(jnp.float32) - mean * scale
    return scale, shift


def _bn_relu_pass(conv_blocks, scale, shift, *, vmem_limit):
    n, nblk, th, w, c = conv_blocks.shape
    return pl.pallas_call(
        _bn_relu_kernel,
        grid=(n, nblk),
        in_specs=[
            pl.BlockSpec((None, None, th, w, c),
                         lambda nb, rb: (nb, rb, 0, 0, 0)),
            pl.BlockSpec((1, 1, c), lambda nb, rb: (0, 0, 0)),
            pl.BlockSpec((1, 1, c), lambda nb, rb: (0, 0, 0)),
        ],
        out_specs=pl.BlockSpec((None, None, th, w, c),
                               lambda nb, rb: (nb, rb, 0, 0, 0)),
        out_shape=jax.ShapeDtypeStruct((n, nblk, th, w, c), jnp.float32),
        compiler_params=_compiler_params(vmem_limit),
    )(conv_blocks, scale.reshape(1, 1, c), shift.reshape(1, 1, c))


# ----------------------------------------------------------------------------
# DoubleConv forward
# ----------------------------------------------------------------------------
@functools.partial(jax.jit, static_argnames=("block_rows", "matmul_dtype"))
def double_conv(x_nchw, params, block_rows=None, matmul_dtype=jnp.bfloat16):
    """DoubleConv forward.  Input/output are NCHW float32 (PyTorch layout).

    NOTE: the Conv2d biases are intentionally NOT applied -- a per-channel
    constant added before training-mode BatchNorm is cancelled exactly by the
    mean subtraction (they must be reinstated for eval-mode / running-stat BN).
    The bf16 path stores intermediates in bf16; statistics are accumulated and
    folded in f32 and applied to the bf16-rounded values (small, bounded skew).
    """
    n, cin, h, w = x_nchw.shape
    cmid = params["w1"].shape[0]
    cout = params["w2"].shape[0]
    store_dtype = matmul_dtype            # HBM dtype of the conv intermediates

    vmem_limit = _vmem_limit_bytes()
    th = _pick_block_rows(n, h, w, cin, cmid, cout,
                          jnp.dtype(matmul_dtype).itemsize, vmem_limit,
                          requested=block_rows)

    x = jnp.transpose(x_nchw, (0, 2, 3, 1))                   # NCHW -> NHWC

    # Stage 1: conv1 + BN1 partials.  Writes the halo-blocked, padded layout
    # stage 2 consumes (no XLA re-pad / re-layout of the intermediate).
    x1 = _halo_row_blocks(x.astype(matmul_dtype), th=th, halo=2)
    conv1, st1 = _conv_pass(x1, params["w1"], None, img_h=h, img_w=w, th=th,
                            halo_out=True, matmul_dtype=matmul_dtype,
                            store_dtype=store_dtype, vmem_limit=vmem_limit)
    scale1, shift1 = _bn_fold(st1, params["g1"], params["beta1"], n * h * w)

    # Stage 2: BN1+ReLU1 fused into the conv2 input load, conv2 + BN2 partials.
    conv2, st2 = _conv_pass(conv1, params["w2"], (scale1, shift1),
                            img_h=h, img_w=w, th=th, halo_out=False,
                            matmul_dtype=matmul_dtype, store_dtype=store_dtype,
                            vmem_limit=vmem_limit)
    scale2, shift2 = _bn_fold(st2, params["g2"], params["beta2"], n * h * w)

    # Final BN2 + ReLU2 (the only standalone elementwise pass).
    out = _bn_relu_pass(conv2, scale2, shift2, vmem_limit=vmem_limit)
    out = out.reshape(n, h, w, cout)
    return jnp.transpose(out, (0, 3, 1, 2))                   # NHWC -> NCHW


# ----------------------------------------------------------------------------
# Pure-JAX reference and self-test
# ----------------------------------------------------------------------------
def _reference(x_nchw, params):
    """lax conv + bias + training-mode BatchNorm + ReLU, twice."""
    def stage(x, w, b, g, beta):
        y = jax.lax.conv_general_dilated(
            x, w, window_strides=(1, 1), padding=((1, 1), (1, 1)),
            dimension_numbers=("NCHW", "OIHW", "NCHW"))
        y = y + b.reshape(1, -1, 1, 1)
        mean = jnp.mean(y, axis=(0, 2, 3), keepdims=True)
        var = jnp.mean((y - mean) ** 2, axis=(0, 2, 3), keepdims=True)
        y = (y - mean) * jax.lax.rsqrt(var + 1e-5)
        y = y * g.reshape(1, -1, 1, 1) + beta.reshape(1, -1, 1, 1)
        return jnp.maximum(y, 0.0)

    h1 = stage(x_nchw, params["w1"], params["b1"], params["g1"], params["beta1"])
    return stage(h1, params["w2"], params["b2"], params["g2"], params["beta2"])


if __name__ == "__main__":
    # DoubleConv(in_channels=4, out_channels=8) -> mid_channels = 8.
    N, CIN, H, W = 2, 4, 16, 16
    CMID, COUT = 8, 8

    key = jax.random.PRNGKey(0)
    k1, k2, k3, k4, k5 = jax.random.split(key, 5)

    x = jax.random.normal(k1, (N, CIN, H, W), dtype=jnp.float32)

    params = {
        # Conv2d(in, mid, 3, padding=1)
        "w1": 0.1 * jax.random.normal(k2, (CMID, CIN, 3, 3), dtype=jnp.float32),
        "b1": 0.05 * jax.random.normal(k3, (CMID,), dtype=jnp.float32),
        # BatchNorm2d(mid): gamma=1, beta=0 (PyTorch init)
        "g1": jnp.ones((CMID,), dtype=jnp.float32),
        "beta1": jnp.zeros((CMID,), dtype=jnp.float32),
        # Conv2d(mid, out, 3, padding=1)
        "w2": 0.1 * jax.random.normal(k4, (COUT, CMID, 3, 3), dtype=jnp.float32),
        "b2": 0.05 * jax.random.normal(k5, (COUT,), dtype=jnp.float32),
        # BatchNorm2d(out)
        "g2": jnp.ones((COUT,), dtype=jnp.float32),
        "beta2": jnp.zeros((COUT,), dtype=jnp.float32),
    }

    ref = jax.block_until_ready(_reference(x, params))

    # bf16 path, multi-block tiling (th=8, nblk=2): exercises the duplicated
    # halo-row write path and the cross-block stats merge.  Tolerance covers
    # bf16 MXU operands plus bf16 HBM intermediates (everything else f32).
    out = jax.block_until_ready(double_conv(x, params, block_rows=8))
    assert out.shape == (N, COUT, H, W), out.shape
    assert float(jnp.max(jnp.abs(out - ref))) < 0.15, \
        float(jnp.max(jnp.abs(out - ref)))

    # bf16 path with shape/VMEM-aware auto tiling (th=H, nblk=1 at this size).
    out_auto = jax.block_until_ready(double_conv(x, params))
    assert out_auto.shape == (N, COUT, H, W), out_auto.shape
    assert float(jnp.max(jnp.abs(out_auto - ref))) < 0.15, \
        float(jnp.max(jnp.abs(out_auto - ref)))

    # Strict check: identical kernel structure with f32 MXU operands and f32
    # intermediates must match the reference tightly.
    out32 = jax.block_until_ready(
        double_conv(x, params, block_rows=8, matmul_dtype=jnp.float32))
    assert bool(jnp.allclose(out32, ref, atol=5e-4, rtol=5e-4)), \
        float(jnp.max(jnp.abs(out32 - ref)))

    print("KERNEL_OK")
</pallas_src>

<mosaic_0001>
module attributes {stable_mosaic.version = 11 : i64} {
  func.func @_conv_bn_stats_kernel(%arg0: i32, %arg1: i32, %arg2: memref<1x1x12x18x4xbf16, #tpu.memory_space<vmem>>, %arg3: memref<36x8xbf16, #tpu.memory_space<vmem>>, %arg4: memref<1x1x10x18x8xbf16, #tpu.memory_space<vmem>>, %arg5: memref<1x1x8x8xf32, #tpu.memory_space<vmem>>) attributes {dimension_semantics = [#tpu.dimension_semantics<parallel>, #tpu.dimension_semantics<parallel>], iteration_bounds = array<i64: 2, 2>, scalar_prefetch = 0 : i64, scratch_operands = 0 : i64, tpu.core_type = #tpu.core_type<tc>, window_params = [{transform_indices = @transform_0, window_bounds = array<i64: 1, 1, 12, 18, 4>}, {pipeline_mode = #tpu.pipeline_mode<synchronous>, transform_indices = @transform_1, window_bounds = array<i64: 36, 8>}, {transform_indices = @transform_2, window_bounds = array<i64: 1, 1, 10, 18, 8>}, {transform_indices = @transform_3, window_bounds = array<i64: 1, 1, 8, 8>}]} {
    %c0 = arith.constant 0 : index
    %c0_0 = arith.constant 0 : index
    %c0_1 = arith.constant 0 : index
    %c0_2 = arith.constant 0 : index
    %c0_3 = arith.constant 0 : index
    %0 = vector.load %arg2[%c0, %c0_0, %c0_1, %c0_2, %c0_3] : memref<1x1x12x18x4xbf16, #tpu.memory_space<vmem>>, vector<1x1x12x18x4xbf16>
    %1 = vector.shape_cast %0 : vector<1x1x12x18x4xbf16> to vector<12x18x4xbf16>
    %2 = vector.extract_strided_slice %1 {offsets = [0, 0, 0], sizes = [10, 16, 4], strides = [1, 1, 1]} : vector<12x18x4xbf16> to vector<10x16x4xbf16>
    %3 = vector.shape_cast %2 : vector<10x16x4xbf16> to vector<160x4xbf16>
    %4 = vector.extract_strided_slice %1 {offsets = [0, 1, 0], sizes = [10, 16, 4], strides = [1, 1, 1]} : vector<12x18x4xbf16> to vector<10x16x4xbf16>
    %5 = vector.shape_cast %4 : vector<10x16x4xbf16> to vector<160x4xbf16>
    %6 = vector.extract_strided_slice %1 {offsets = [0, 2, 0], sizes = [10, 16, 4], strides = [1, 1, 1]} : vector<12x18x4xbf16> to vector<10x16x4xbf16>
    %7 = vector.shape_cast %6 : vector<10x16x4xbf16> to vector<160x4xbf16>
    %8 = vector.extract_strided_slice %1 {offsets = [1, 0, 0], sizes = [10, 16, 4], strides = [1, 1, 1]} : vector<12x18x4xbf16> to vector<10x16x4xbf16>
    %9 = vector.shape_cast %8 : vector<10x16x4xbf16> to vector<160x4xbf16>
    %10 = vector.extract_strided_slice %1 {offsets = [1, 1, 0], sizes = [10, 16, 4], strides = [1, 1, 1]} : vector<12x18x4xbf16> to vector<10x16x4xbf16>
    %11 = vector.shape_cast %10 : vector<10x16x4xbf16> to vector<160x4xbf16>
    %12 = vector.extract_strided_slice %1 {offsets = [1, 2, 0], sizes = [10, 16, 4], strides = [1, 1, 1]} : vector<12x18x4xbf16> to vector<10x16x4xbf16>
    %13 = vector.shape_cast %12 : vector<10x16x4xbf16> to vector<160x4xbf16>
    %14 = vector.extract_strided_slice %1 {offsets = [2, 0, 0], sizes = [10, 16, 4], strides = [1, 1, 1]} : vector<12x18x4xbf16> to vector<10x16x4xbf16>
    %15 = vector.shape_cast %14 : vector<10x16x4xbf16> to vector<160x4xbf16>
    %16 = vector.extract_strided_slice %1 {offsets = [2, 1, 0], sizes = [10, 16, 4], strides = [1, 1, 1]} : vector<12x18x4xbf16> to vector<10x16x4xbf16>
    %17 = vector.shape_cast %16 : vector<10x16x4xbf16> to vector<160x4xbf16>
    %18 = vector.extract_strided_slice %1 {offsets = [2, 2, 0], sizes = [10, 16, 4], strides = [1, 1, 1]} : vector<12x18x4xbf16> to vector<10x16x4xbf16>
    %19 = vector.shape_cast %18 : vector<10x16x4xbf16> to vector<160x4xbf16>
    %20 = tpu.concatenate %3, %5, %7, %9, %11, %13, %15, %17, %19 in 1 : vector<160x4xbf16>, vector<160x4xbf16>, vector<160x4xbf16>, vector<160x4xbf16>, vector<160x4xbf16>, vector<160x4xbf16>, vector<160x4xbf16>, vector<160x4xbf16>, vector<160x4xbf16> -> vector<160x36xbf16>
    %c0_4 = arith.constant 0 : index
    %c0_5 = arith.constant 0 : index
    %21 = vector.load %arg3[%c0_4, %c0_5] : memref<36x8xbf16, #tpu.memory_space<vmem>>, vector<36x8xbf16>
    %cst = arith.constant dense<0.000000e+00> : vector<160x8xf32>
    %22 = tpu.matmul %20, %21, %cst {dimension_numbers = #tpu.dot_dimension_numbers<[1], [0], [0], [1], [0, 0, 1, 1], [], []>} : vector<160x36xbf16>, vector<36x8xbf16>, vector<160x8xf32> -> vector<160x8xf32>
    %23 = vector.extract_strided_slice %22 {offsets = [16, 0], sizes = [128, 8], strides = [1, 1]} : vector<160x8xf32> to vector<128x8xf32>
    %cst_6 = arith.constant dense<0.000000e+00> : vector<8xf32>
    %24 = vector.multi_reduction <add>, %23, %cst_6 [0] : vector<128x8xf32> to vector<8xf32>
    %25 = vector.shape_cast %24 : vector<8xf32> to vector<1x8xf32>
    %cst_7 = arith.constant 1.280000e+02 : f32
    %26 = vector.broadcast %cst_7 : f32 to vector<1x8xf32>
    %27 = arith.divf %25, %26 : vector<1x8xf32>
    %28 = vector.broadcast %27 : vector<1x8xf32> to vector<128x8xf32>
    %29 = arith.subf %23, %28 : vector<128x8xf32>
    %30 = arith.mulf %29, %29 : vector<128x8xf32>
    %cst_8 = arith.constant dense<0.000000e+00> : vector<8xf32>
    %31 = vector.multi_reduction <add>, %30, %cst_8 [0] : vector<128x8xf32> to vector<8xf32>
    %32 = vector.shape_cast %31 : vector<8xf32> to vector<1x8xf32>
    %cst_9 = arith.constant 0.000000e+00 : f32
    %33 = vector.broadcast %cst_9 : f32 to vector<6x8xf32>
    %34 = tpu.concatenate %25, %32, %33 in 0 : vector<1x8xf32>, vector<1x8xf32>, vector<6x8xf32> -> vector<8x8xf32>
    %c0_10 = arith.constant 0 : index
    %c0_11 = arith.constant 0 : index
    %c0_12 = arith.constant 0 : index
    %c0_13 = arith.constant 0 : index
    %35 = vector.load %arg5[%c0_10, %c0_11, %c0_12, %c0_13] : memref<1x1x8x8xf32, #tpu.memory_space<vmem>>, vector<1x1x8x8xf32>
    %36 = vector.shape_cast %35 : vector<1x1x8x8xf32> to vector<8x8xf32>
    %37 = vector.shape_cast %34 : vector<8x8xf32> to vector<1x1x8x8xf32>
    tpu.vector_store %arg5[%c0_10, %c0_11, %c0_12, %c0_13], %37 {strides = array<i32>} : memref<1x1x8x8xf32, #tpu.memory_space<vmem>>, vector<1x1x8x8xf32>,
    %38 = vector.shape_cast %22 : vector<160x8xf32> to vector<10x16x8xf32>
    %c8_i32 = arith.constant 8 : i32
    %39 = arith.muli %arg1, %c8_i32 : i32
    %c1_i32 = arith.constant 1 : i32
    %40 = arith.subi %39, %c1_i32 : i32
    %41 = tpu.iota {dimensions = array<i32: 0>} : vector<10x1x1xi32>
    %42 = vector.broadcast %40 : i32 to vector<10x1x1xi32>
    %43 = arith.addi %42, %41 : vector<10x1x1xi32>
    %c0_i32 = arith.constant 0 : i32
    %44 = vector.broadcast %c0_i32 : i32 to vector<10x1x1xi32>
    %45 = arith.cmpi sge, %43, %44 : vector<10x1x1xi32>
    %c16_i32 = arith.constant 16 : i32
    %46 = vector.broadcast %c16_i32 : i32 to vector<10x1x1xi32>
    %47 = arith.cmpi slt, %43, %46 : vector<10x1x1xi32>
    %48 = arith.andi %45, %47 : vector<10x1x1xi1>
    %cst_14 = arith.constant 0.000000e+00 : f32
    %49 = vector.shape_cast %48 : vector<10x1x1xi1> to vector<10x1x1xi1>
    %50 = vector.broadcast %49 : vector<10x1x1xi1> to vector<10x16x8xi1>
    %51 = vector.broadcast %cst_14 : f32 to vector<10x16x8xf32>
    %52 = arith.select %50, %38, %51 : vector<10x16x8xi1>, vector<10x16x8xf32>
    %cst_15 = arith.constant 0.000000e+00 : f32
    %53 = vector.broadcast %cst_15 : f32 to vector<10x1x8xf32>
    %54 = tpu.concatenate %53, %52, %53 in 1 : vector<10x1x8xf32>, vector<10x16x8xf32>, vector<10x1x8xf32> -> vector<10x18x8xf32>
    %55 = arith.truncf %54 : vector<10x18x8xf32> to vector<10x18x8xbf16>
    %c0_16 = arith.constant 0 : index
    %c0_17 = arith.constant 0 : index
    %c0_18 = arith.constant 0 : index
    %c0_19 = arith.constant 0 : index
    %c0_20 = arith.constant 0 : index
    %56 = vector.load %arg4[%c0_16, %c0_17, %c0_18, %c0_19, %c0_20] : memref<1x1x10x18x8xbf16, #tpu.memory_space<vmem>>, vector<1x1x10x18x8xbf16>
    %57 = vector.shape_cast %56 : vector<1x1x10x18x8xbf16> to vector<10x18x8xbf16>
    %58 = vector.shape_cast %55 : vector<10x18x8xbf16> to vector<1x1x10x18x8xbf16>
    tpu.vector_store %arg4[%c0_16, %c0_17, %c0_18, %c0_19, %c0_20], %58 {strides = array<i32>} : memref<1x1x10x18x8xbf16, #tpu.memory_space<vmem>>, vector<1x1x10x18x8xbf16>,
    return
  }
  func.func @transform_0(%arg0: i32, %arg1: i32) -> (i32, i32, i32, i32, i32) {
    %c0_i32 = arith.constant 0 : i32
    %c0_i32_0 = arith.constant 0 : i32
    %c0_i32_1 = arith.constant 0 : i32
    %c0_i32_2 = arith.constant 0 : i32
    return %arg0, %arg1, %c0_i32, %c0_i32_0, %c0_i32_1 : i32, i32, i32, i32, i32
  }
  func.func @transform_1(%arg0: i32, %arg1: i32) -> (i32, i32) {
    %c0_i32 = arith.constant 0 : i32
    %c0_i32_0 = arith.constant 0 : i32
    %c0_i32_1 = arith.constant 0 : i32
    return %c0_i32, %c0_i32_0 : i32, i32
  }
  func.func @transform_2(%arg0: i32, %arg1: i32) -> (i32, i32, i32, i32, i32) {
    %c0_i32 = arith.constant 0 : i32
    %c0_i32_0 = arith.constant 0 : i32
    %c0_i32_1 = arith.constant 0 : i32
    %c0_i32_2 = arith.constant 0 : i32
    return %arg0, %arg1, %c0_i32, %c0_i32_0, %c0_i32_1 : i32, i32, i32, i32, i32
  }
  func.func @transform_3(%arg0: i32, %arg1: i32) -> (i32, i32, i32, i32) {
    %c0_i32 = arith.constant 0 : i32
    %c0_i32_0 = arith.constant 0 : i32
    %c0_i32_1 = arith.constant 0 : i32
    return %arg0, %arg1, %c0_i32, %c0_i32_0 : i32, i32, i32, i32
  }
}

module attributes {stable_mosaic.version = 11 : i64} {
  func.func @_conv_bn_stats_kernel(%arg0: i32, %arg1: i32, %arg2: memref<1x1x10x18x8xbf16, #tpu.memory_space<vmem>>, %arg3: memref<72x8xbf16, #tpu.memory_space<vmem>>, %arg4: memref<1x1x8xf32, #tpu.memory_space<vmem>>, %arg5: memref<1x1x8xf32, #tpu.memory_space<vmem>>, %arg6: memref<1x1x8x16x8xbf16, #tpu.memory_space<vmem>>, %arg7: memref<1x1x8x8xf32, #tpu.memory_space<vmem>>) attributes {dimension_semantics = [#tpu.dimension_semantics<parallel>, #tpu.dimension_semantics<parallel>], iteration_bounds = array<i64: 2, 2>, scalar_prefetch = 0 : i64, scratch_operands = 0 : i64, tpu.core_type = #tpu.core_type<tc>, window_params = [{transform_indices = @transform_0, window_bounds = array<i64: 1, 1, 10, 18, 8>}, {pipeline_mode = #tpu.pipeline_mode<synchronous>, transform_indices = @transform_1, window_bounds = array<i64: 72, 8>}, {pipeline_mode = #tpu.pipeline_mode<synchronous>, transform_indices = @transform_2, window_bounds = array<i64: 1, 1, 8>}, {pipeline_mode = #tpu.pipeline_mode<synchronous>, transform_indices = @transform_3, window_bounds = array<i64: 1, 1, 8>}, {transform_indices = @transform_4, window_bounds = array<i64: 1, 1, 8, 16, 8>}, {transform_indices = @transform_5, window_bounds = array<i64: 1, 1, 8, 8>}]} {
    %c0 = arith.constant 0 : index
    %c0_0 = arith.constant 0 : index
    %c0_1 = arith.constant 0 : index
    %c0_2 = arith.constant 0 : index
    %c0_3 = arith.constant 0 : index
    %0 = vector.load %arg2[%c0, %c0_0, %c0_1, %c0_2, %c0_3] : memref<1x1x10x18x8xbf16, #tpu.memory_space<vmem>>, vector<1x1x10x18x8xbf16>
    %1 = vector.shape_cast %0 : vector<1x1x10x18x8xbf16> to vector<10x18x8xbf16>
    %2 = arith.extf %1 : vector<10x18x8xbf16> to vector<10x18x8xf32>
    %c0_4 = arith.constant 0 : index
    %c0_5 = arith.constant 0 : index
    %c0_6 = arith.constant 0 : index
    %3 = vector.load %arg4[%c0_4, %c0_5, %c0_6] : memref<1x1x8xf32, #tpu.memory_space<vmem>>, vector<1x1x8xf32>
    %4 = vector.broadcast %3 : vector<1x1x8xf32> to vector<10x18x8xf32>
    %5 = arith.mulf %2, %4 : vector<10x18x8xf32>
    %c0_7 = arith.constant 0 : index
    %c0_8 = arith.constant 0 : index
    %c0_9 = arith.constant 0 : index
    %6 = vector.load %arg5[%c0_7, %c0_8, %c0_9] : memref<1x1x8xf32, #tpu.memory_space<vmem>>, vector<1x1x8xf32>
    %7 = vector.broadcast %6 : vector<1x1x8xf32> to vector<10x18x8xf32>
    %8 = arith.addf %5, %7 : vector<10x18x8xf32>
    %cst = arith.constant 0.000000e+00 : f32
    %9 = vector.broadcast %cst : f32 to vector<10x18x8xf32>
    %10 = arith.maximumf %8, %9 : vector<10x18x8xf32>
    %c8_i32 = arith.constant 8 : i32
    %11 = arith.muli %arg1, %c8_i32 : i32
    %c1_i32 = arith.constant 1 : i32
    %12 = arith.subi %11, %c1_i32 : i32
    %13 = tpu.iota {dimensions = array<i32: 0>} : vector<10x1x1xi32>
    %14 = vector.broadcast %12 : i32 to vector<10x1x1xi32>
    %15 = arith.addi %14, %13 : vector<10x1x1xi32>
    %16 = tpu.iota {dimensions = array<i32: 1>} : vector<1x18x1xi32>
    %c0_i32 = arith.constant 0 : i32
    %17 = vector.broadcast %c0_i32 : i32 to vector<10x1x1xi32>
    %18 = arith.cmpi sge, %15, %17 : vector<10x1x1xi32>
    %c16_i32 = arith.constant 16 : i32
    %19 = vector.broadcast %c16_i32 : i32 to vector<10x1x1xi32>
    %20 = arith.cmpi slt, %15, %19 : vector<10x1x1xi32>
    %21 = arith.andi %18, %20 : vector<10x1x1xi1>
    %c1_i32_10 = arith.constant 1 : i32
    %22 = vector.broadcast %c1_i32_10 : i32 to vector<1x18x1xi32>
    %23 = arith.cmpi sge, %16, %22 : vector<1x18x1xi32>
    %24 = vector.broadcast %21 : vector<10x1x1xi1> to vector<10x18x1xi1>
    %25 = vector.broadcast %23 : vector<1x18x1xi1> to vector<10x18x1xi1>
    %26 = arith.andi %24, %25 : vector<10x18x1xi1>
    %c16_i32_11 = arith.constant 16 : i32
    %27 = vector.broadcast %c16_i32_11 : i32 to vector<1x18x1xi32>
    %28 = arith.cmpi sle, %16, %27 : vector<1x18x1xi32>
    %29 = vector.broadcast %28 : vector<1x18x1xi1> to vector<10x18x1xi1>
    %30 = arith.andi %26, %29 : vector<10x18x1xi1>
    %cst_12 = arith.constant 0.000000e+00 : f32
    %31 = vector.shape_cast %30 : vector<10x18x1xi1> to vector<10x18x1xi1>
    %32 = vector.broadcast %31 : vector<10x18x1xi1> to vector<10x18x8xi1>
    %33 = vector.broadcast %cst_12 : f32 to vector<10x18x8xf32>
    %34 = arith.select %32, %10, %33 : vector<10x18x8xi1>, vector<10x18x8xf32>
    %35 = arith.truncf %34 : vector<10x18x8xf32> to vector<10x18x8xbf16>
    %36 = vector.extract_strided_slice %35 {offsets = [0, 0, 0], sizes = [8, 16, 8], strides = [1, 1, 1]} : vector<10x18x8xbf16> to vector<8x16x8xbf16>
    %37 = vector.shape_cast %36 : vector<8x16x8xbf16> to vector<128x8xbf16>
    %38 = vector.extract_strided_slice %35 {offsets = [0, 1, 0], sizes = [8, 16, 8], strides = [1, 1, 1]} : vector<10x18x8xbf16> to vector<8x16x8xbf16>
    %39 = vector.shape_cast %38 : vector<8x16x8xbf16> to vector<128x8xbf16>
    %40 = vector.extract_strided_slice %35 {offsets = [0, 2, 0], sizes = [8, 16, 8], strides = [1, 1, 1]} : vector<10x18x8xbf16> to vector<8x16x8xbf16>
    %41 = vector.shape_cast %40 : vector<8x16x8xbf16> to vector<128x8xbf16>
    %42 = vector.extract_strided_slice %35 {offsets = [1, 0, 0], sizes = [8, 16, 8], strides = [1, 1, 1]} : vector<10x18x8xbf16> to vector<8x16x8xbf16>
    %43 = vector.shape_cast %42 : vector<8x16x8xbf16> to vector<128x8xbf16>
    %44 = vector.extract_strided_slice %35 {offsets = [1, 1, 0], sizes = [8, 16, 8], strides = [1, 1, 1]} : vector<10x18x8xbf16> to vector<8x16x8xbf16>
    %45 = vector.shape_cast %44 : vector<8x16x8xbf16> to vector<128x8xbf16>
    %46 = vector.extract_strided_slice %35 {offsets = [1, 2, 0], sizes = [8, 16, 8], strides = [1, 1, 1]} : vector<10x18x8xbf16> to vector<8x16x8xbf16>
    %47 = vector.shape_cast %46 : vector<8x16x8xbf16> to vector<128x8xbf16>
    %48 = vector.extract_strided_slice %35 {offsets = [2, 0, 0], sizes = [8, 16, 8], strides = [1, 1, 1]} : vector<10x18x8xbf16> to vector<8x16x8xbf16>
    %49 = vector.shape_cast %48 : vector<8x16x8xbf16> to vector<128x8xbf16>
    %50 = vector.extract_strided_slice %35 {offsets = [2, 1, 0], sizes = [8, 16, 8], strides = [1, 1, 1]} : vector<10x18x8xbf16> to vector<8x16x8xbf16>
    %51 = vector.shape_cast %50 : vector<8x16x8xbf16> to vector<128x8xbf16>
    %52 = vector.extract_strided_slice %35 {offsets = [2, 2, 0], sizes = [8, 16, 8], strides = [1, 1, 1]} : vector<10x18x8xbf16> to vector<8x16x8xbf16>
    %53 = vector.shape_cast %52 : vector<8x16x8xbf16> to vector<128x8xbf16>
    %54 = tpu.concatenate %37, %39, %41, %43, %45, %47, %49, %51, %53 in 1 : vector<128x8xbf16>, vector<128x8xbf16>, vector<128x8xbf16>, vector<128x8xbf16>, vector<128x8xbf16>, vector<128x8xbf16>, vector<128x8xbf16>, vector<128x8xbf16>, vector<128x8xbf16> -> vector<128x72xbf16>
    %c0_13 = arith.constant 0 : index
    %c0_14 = arith.constant 0 : index
    %55 = vector.load %arg3[%c0_13, %c0_14] : memref<72x8xbf16, #tpu.memory_space<vmem>>, vector<72x8xbf16>
    %cst_15 = arith.constant dense<0.000000e+00> : vector<128x8xf32>
    %56 = tpu.matmul %54, %55, %cst_15 {dimension_numbers = #tpu.dot_dimension_numbers<[1], [0], [0], [1], [0, 0, 1, 1], [], []>} : vector<128x72xbf16>, vector<72x8xbf16>, vector<128x8xf32> -> vector<128x8xf32>
    %cst_16 = arith.constant dense<0.000000e+00> : vector<8xf32>
    %57 = vector.multi_reduction <add>, %56, %cst_16 [0] : vector<128x8xf32> to vector<8xf32>
    %58 = vector.shape_cast %57 : vector<8xf32> to vector<1x8xf32>
    %cst_17 = arith.constant 1.280000e+02 : f32
    %59 = vector.broadcast %cst_17 : f32 to vector<1x8xf32>
    %60 = arith.divf %58, %59 : vector<1x8xf32>
    %61 = vector.broadcast %60 : vector<1x8xf32> to vector<128x8xf32>
    %62 = arith.subf %56, %61 : vector<128x8xf32>
    %63 = arith.mulf %62, %62 : vector<128x8xf32>
    %cst_18 = arith.constant dense<0.000000e+00> : vector<8xf32>
    %64 = vector.multi_reduction <add>, %63, %cst_18 [0] : vector<128x8xf32> to vector<8xf32>
    %65 = vector.shape_cast %64 : vector<8xf32> to vector<1x8xf32>
    %cst_19 = arith.constant 0.000000e+00 : f32
    %66 = vector.broadcast %cst_19 : f32 to vector<6x8xf32>
    %67 = tpu.concatenate %58, %65, %66 in 0 : vector<1x8xf32>, vector<1x8xf32>, vector<6x8xf32> -> vector<8x8xf32>
    %c0_20 = arith.constant 0 : index
    %c0_21 = arith.constant 0 : index
    %c0_22 = arith.constant 0 : index
    %c0_23 = arith.constant 0 : index
    %68 = vector.load %arg7[%c0_20, %c0_21, %c0_22, %c0_23] : memref<1x1x8x8xf32, #tpu.memory_space<vmem>>, vector<1x1x8x8xf32>
    %69 = vector.shape_cast %68 : vector<1x1x8x8xf32> to vector<8x8xf32>
    %70 = vector.shape_cast %67 : vector<8x8xf32> to vector<1x1x8x8xf32>
    tpu.vector_store %arg7[%c0_20, %c0_21, %c0_22, %c0_23], %70 {strides = array<i32>} : memref<1x1x8x8xf32, #tpu.memory_space<vmem>>, vector<1x1x8x8xf32>,
    %71 = vector.shape_cast %56 : vector<128x8xf32> to vector<8x16x8xf32>
    %72 = arith.truncf %71 : vector<8x16x8xf32> to vector<8x16x8xbf16>
    %c0_24 = arith.constant 0 : index
    %c0_25 = arith.constant 0 : index
    %c0_26 = arith.constant 0 : index
    %c0_27 = arith.constant 0 : index
    %c0_28 = arith.constant 0 : index
    %73 = vector.load %arg6[%c0_24, %c0_25, %c0_26, %c0_27, %c0_28] : memref<1x1x8x16x8xbf16, #tpu.memory_space<vmem>>, vector<1x1x8x16x8xbf16>
    %74 = vector.shape_cast %73 : vector<1x1x8x16x8xbf16> to vector<8x16x8xbf16>
    %75 = vector.shape_cast %72 : vector<8x16x8xbf16> to vector<1x1x8x16x8xbf16>
    tpu.vector_store %arg6[%c0_24, %c0_25, %c0_26, %c0_27, %c0_28], %75 {strides = array<i32>} : memref<1x1x8x16x8xbf16, #tpu.memory_space<vmem>>, vector<1x1x8x16x8xbf16>,
    return
  }
  func.func @transform_0(%arg0: i32, %arg1: i32) -> (i32, i32, i32, i32, i32) {
    %c0_i32 = arith.constant 0 : i32
    %c0_i32_0 = arith.constant 0 : i32
    %c0_i32_1 = arith.constant 0 : i32
    %c0_i32_2 = arith.constant 0 : i32
    return %arg0, %arg1, %c0_i32, %c0_i32_0, %c0_i32_1 : i32, i32, i32, i32, i32
  }
  func.func @transform_1(%arg0: i32, %arg1: i32) -> (i32, i32) {
    %c0_i32 = arith.constant 0 : i32
    %c0_i32_0 = arith.constant 0 : i32
    %c0_i32_1 = arith.constant 0 : i32
    return %c0_i32, %c0_i32_0 : i32, i32
  }
  func.func @transform_2(%arg0: i32, %arg1: i32) -> (i32, i32, i32) {
    %c0_i32 = arith.constant 0 : i32
    %c0_i32_0 = arith.constant 0 : i32
    %c0_i32_1 = arith.constant 0 : i32
    %c0_i32_2 = arith.constant 0 : i32
    return %c0_i32, %c0_i32_0, %c0_i32_1 : i32, i32, i32
  }
  func.func @transform_3(%arg0: i32, %arg1: i32) -> (i32, i32, i32) {
    %c0_i32 = arith.constant 0 : i32
    %c0_i32_0 = arith.constant 0 : i32
    %c0_i32_1 = arith.constant 0 : i32
    %c0_i32_2 = arith.constant 0 : i32
    return %c0_i32, %c0_i32_0, %c0_i32_1 : i32, i32, i32
  }
  func.func @transform_4(%arg0: i32, %arg1: i32) -> (i32, i32, i32, i32, i32) {
    %c0_i32 = arith.constant 0 : i32
    %c0_i32_0 = arith.constant 0 : i32
    %c0_i32_1 = arith.constant 0 : i32
    %c0_i32_2 = arith.constant 0 : i32
    return %arg0, %arg1, %c0_i32, %c0_i32_0, %c0_i32_1 : i32, i32, i32, i32, i32
  }
  func.func @transform_5(%arg0: i32, %arg1: i32) -> (i32, i32, i32, i32) {
    %c0_i32 = arith.constant 0 : i32
    %c0_i32_0 = arith.constant 0 : i32
    %c0_i32_1 = arith.constant 0 : i32
    return %arg0, %arg1, %c0_i32, %c0_i32_0 : i32, i32, i32, i32
  }
}

module attributes {stable_mosaic.version = 11 : i64} {
  func.func @_bn_relu_kernel(%arg0: i32, %arg1: i32, %arg2: memref<1x1x8x16x8xbf16, #tpu.memory_space<vmem>>, %arg3: memref<1x1x8xf32, #tpu.memory_space<vmem>>, %arg4: memref<1x1x8xf32, #tpu.memory_space<vmem>>, %arg5: memref<1x1x8x16x8xf32, #tpu.memory_space<vmem>>) attributes {dimension_semantics = [#tpu.dimension_semantics<parallel>, #tpu.dimension_semantics<parallel>], iteration_bounds = array<i64: 2, 2>, scalar_prefetch = 0 : i64, scratch_operands = 0 : i64, tpu.core_type = #tpu.core_type<tc>, window_params = [{transform_indices = @transform_0, window_bounds = array<i64: 1, 1, 8, 16, 8>}, {pipeline_mode = #tpu.pipeline_mode<synchronous>, transform_indices = @transform_1, window_bounds = array<i64: 1, 1, 8>}, {pipeline_mode = #tpu.pipeline_mode<synchronous>, transform_indices = @transform_2, window_bounds = array<i64: 1, 1, 8>}, {transform_indices = @transform_3, window_bounds = array<i64: 1, 1, 8, 16, 8>}]} {
    %c0 = arith.constant 0 : index
    %c0_0 = arith.constant 0 : index
    %c0_1 = arith.constant 0 : index
    %c0_2 = arith.constant 0 : index
    %c0_3 = arith.constant 0 : index
    %0 = vector.load %arg2[%c0, %c0_0, %c0_1, %c0_2, %c0_3] : memref<1x1x8x16x8xbf16, #tpu.memory_space<vmem>>, vector<1x1x8x16x8xbf16>
    %1 = vector.shape_cast %0 : vector<1x1x8x16x8xbf16> to vector<8x16x8xbf16>
    %2 = arith.extf %1 : vector<8x16x8xbf16> to vector<8x16x8xf32>
    %c0_4 = arith.constant 0 : index
    %c0_5 = arith.constant 0 : index
    %c0_6 = arith.constant 0 : index
    %3 = vector.load %arg3[%c0_4, %c0_5, %c0_6] : memref<1x1x8xf32, #tpu.memory_space<vmem>>, vector<1x1x8xf32>
    %4 = vector.broadcast %3 : vector<1x1x8xf32> to vector<8x16x8xf32>
    %5 = arith.mulf %2, %4 : vector<8x16x8xf32>
    %c0_7 = arith.constant 0 : index
    %c0_8 = arith.constant 0 : index
    %c0_9 = arith.constant 0 : index
    %6 = vector.load %arg4[%c0_7, %c0_8, %c0_9] : memref<1x1x8xf32, #tpu.memory_space<vmem>>, vector<1x1x8xf32>
    %7 = vector.broadcast %6 : vector<1x1x8xf32> to vector<8x16x8xf32>
    %8 = arith.addf %5, %7 : vector<8x16x8xf32>
    %cst = arith.constant 0.000000e+00 : f32
    %9 = vector.broadcast %cst : f32 to vector<8x16x8xf32>
    %10 = arith.maximumf %8, %9 : vector<8x16x8xf32>
    %c0_10 = arith.constant 0 : index
    %c0_11 = arith.constant 0 : index
    %c0_12 = arith.constant 0 : index
    %c0_13 = arith.constant 0 : index
    %c0_14 = arith.constant 0 : index
    %11 = vector.load %arg5[%c0_10, %c0_11, %c0_12, %c0_13, %c0_14] : memref<1x1x8x16x8xf32, #tpu.memory_space<vmem>>, vector<1x1x8x16x8xf32>
    %12 = vector.shape_cast %11 : vector<1x1x8x16x8xf32> to vector<8x16x8xf32>
    %13 = vector.shape_cast %10 : vector<8x16x8xf32> to vector<1x1x8x16x8xf32>
    tpu.vector_store %arg5[%c0_10, %c0_11, %c0_12, %c0_13, %c0_14], %13 {strides = array<i32>} : memref<1x1x8x16x8xf32, #tpu.memory_space<vmem>>, vector<1x1x8x16x8xf32>,
    return
  }
  func.func @transform_0(%arg0: i32, %arg1: i32) -> (i32, i32, i32, i32, i32) {
    %c0_i32 = arith.constant 0 : i32
    %c0_i32_0 = arith.constant 0 : i32
    %c0_i32_1 = arith.constant 0 : i32
    %c0_i32_2 = arith.constant 0 : i32
    return %arg0, %arg1, %c0_i32, %c0_i32_0, %c0_i32_1 : i32, i32, i32, i32, i32
  }
  func.func @transform_1(%arg0: i32, %arg1: i32) -> (i32, i32, i32) {
    %c0_i32 = arith.constant 0 : i32
    %c0_i32_0 = arith.constant 0 : i32
    %c0_i32_1 = arith.constant 0 : i32
    %c0_i32_2 = arith.constant 0 : i32
    return %c0_i32, %c0_i32_0, %c0_i32_1 : i32, i32, i32
  }
  func.func @transform_2(%arg0: i32, %arg1: i32) -> (i32, i32, i32) {
    %c0_i32 = arith.constant 0 : i32
    %c0_i32_0 = arith.constant 0 : i32
    %c0_i32_1 = arith.constant 0 : i32
    %c0_i32_2 = arith.constant 0 : i32
    return %c0_i32, %c0_i32_0, %c0_i32_1 : i32, i32, i32
  }
  func.func @transform_3(%arg0: i32, %arg1: i32) -> (i32, i32, i32, i32, i32) {
    %c0_i32 = arith.constant 0 : i32
    %c0_i32_0 = arith.constant 0 : i32
    %c0_i32_1 = arith.constant 0 : i32
    %c0_i32_2 = arith.constant 0 : i32
    return %arg0, %arg1, %c0_i32, %c0_i32_0, %c0_i32_1 : i32, i32, i32, i32, i32
  }
}

</mosaic_0001>

<llo_original>
// kernel: double_conv.5
$region0: #{double_conv.5}
  #allocation0 [shape = 'u32[]', space=smem, size = 0x4, offset = 0x4, fixed_abs, tag = 'smem constant byte address 0x4 - core index']
  #allocation1 [shape = 'u32[144,128]{1,0:T(1,128)}', space=vmem, size = 0x12000, scoped, tag = 'internal scratch']
  %s0 = inlined_call_operand.vmem [shape: bf16[2,2,8,16,8], index: 0, kind: input, shape index: {}]
  %s1 = inlined_call_operand.vmem [shape: f32[1,1,8], index: 1, kind: input, shape index: {}]
  %s2 = inlined_call_operand.vmem [shape: f32[1,1,8], index: 2, kind: input, shape index: {}]
  %s3 = inlined_call_operand.vmem [shape: f32[2,2,8,16,8], index: 3, kind: output, shape index: {}]
  %s4 = sld [smem:[#allocation0]]
  $region45: #{double_conv.5} parent=0
    _
  %s6 = ssub.s32 1, %s4
  %s7 = scalar_select 0, %s6, %s4
  loop: start=0, step=1, limit=6
  $region2: #{double_conv.5} parent=0 // loop_pre_header
    _
  $region3: #{double_conv.5} parent=0 // loop_header
    %s9 = sphi 0, %s13
    %p10 = scmp.ge.s32.totalorder %s9, 6
    %s16 = sphi 0, %s28
    %s17 = sphi 0, %s24
    %s18 = sphi 0, %s16
    %s19 = sphi 0, %s17
    %s20 = sphi 0, %s18
    %s21 = sphi 0, %s19
    %s33 = sphi 0, %s35
    %s36 = sphi 0, %s33
    %s37 = sphi 0, %s36
    %s53 = sphi 0, %s37
    %s57 = sphi 0, %s57
    %s59 = sphi 0, %s57
    %s60 = sphi 0, %s59
    %s74 = sphi 0, %s60
    %s78 = sphi 0, %s78
    %s80 = sphi 0, %s78
    %s81 = sphi 0, %s80
    %s95 = sphi 0, %s81
    %s103 = sphi 0, %s105
    %s106 = sphi 0, %s103
    %s107 = sphi 0, %s106
    %s123 = sphi 0, %s107
  $region4: #{double_conv.5} parent=0 // loop_header_branch
    %12 = sbr.rel (%p10) target = $region8
  $region5: #{double_conv.5} parent=0 // loop_body
    %s14 = ssub.s32 %s9, 1
    %s15 = ssub.s32 %s9, 2
    %s22 = sadd.s32 1, %s17
    %p23 = scmp.ge.s32.totalorder %s22, 2
    %s24 = scalar_select %p23, 0, %s22
    %s25 = sadd.s32 1, %s16
    %s26 = scalar_select %p23, %s25, %s16
    %p27 = scmp.ge.s32.totalorder %s26, 2
    %s28 = scalar_select %p27, 0, %s26
    %s29 = ssub.s32 %s16, %s28
    %s30 = ssub.s32 %s17, %s24
    %s31 = sor.u32 %s29, %s30
    %p32 = scmp.eq.s32.totalorder %s31, 0
    %s34 = sadd.s32 %s33, 1
    %s35 = scalar_select %p32, %s33, %s34
    %p38 = pneg %p32
    %p39 = scmp.eq.s32.totalorder %s9, 3
    %p40 = por %p38, %p39
    %p41 = scmp.ne.s32.totalorder %s33, %s36
    %p42 = scmp.eq.s32.totalorder %s9, 0
    %p43 = por %p41, %p42
    %p44 = scmp.ne.s32.totalorder %s33, %s36
    %p45 = scmp.eq.s32.totalorder %s14, 3
    %p46 = por %p44, %p45
    %p47 = scmp.ne.s32.totalorder %s36, %s37
    %p48 = scmp.eq.s32.totalorder %s14, 0
    %p49 = por %p47, %p48
    %p50 = scmp.ne.s32.totalorder %s36, %s37
    %p51 = scmp.eq.s32.totalorder %s15, 3
    %p52 = por %p50, %p51
    %p54 = scmp.ne.s32.totalorder %s37, %s53
    %p55 = scmp.eq.s32.totalorder %s15, 0
    %p56 = por %p54, %p55
    %s58 = sadd.s32 %s57, 1
    %p61 = scmp.eq.s32.totalorder %s9, 3
    %p62 = scmp.ne.s32.totalorder %s57, %s59
    %p63 = scmp.eq.s32.totalorder %s9, 0
    %p64 = por %p62, %p63
    %p65 = scmp.ne.s32.totalorder %s57, %s59
    %p66 = scmp.eq.s32.totalorder %s14, 3
    %p67 = por %p65, %p66
    %p68 = scmp.ne.s32.totalorder %s59, %s60
    %p69 = scmp.eq.s32.totalorder %s14, 0
    %p70 = por %p68, %p69
    %p71 = scmp.ne.s32.totalorder %s59, %s60
    %p72 = scmp.eq.s32.totalorder %s15, 3
    %p73 = por %p71, %p72
    %p75 = scmp.ne.s32.totalorder %s60, %s74
    %p76 = scmp.eq.s32.totalorder %s15, 0
    %p77 = por %p75, %p76
    %s79 = sadd.s32 %s78, 1
    %p82 = scmp.eq.s32.totalorder %s9, 3
    %p83 = scmp.ne.s32.totalorder %s78, %s80
    %p84 = scmp.eq.s32.totalorder %s9, 0
    %p85 = por %p83, %p84
    %p86 = scmp.ne.s32.totalorder %s78, %s80
    %p87 = scmp.eq.s32.totalorder %s14, 3
    %p88 = por %p86, %p87
    %p89 = scmp.ne.s32.totalorder %s80, %s81
    %p90 = scmp.eq.s32.totalorder %s14, 0
    %p91 = por %p89, %p90
    %p92 = scmp.ne.s32.totalorder %s80, %s81
    %p93 = scmp.eq.s32.totalorder %s15, 3
    %p94 = por %p92, %p93
    %p96 = scmp.ne.s32.totalorder %s81, %s95
    %p97 = scmp.eq.s32.totalorder %s15, 0
    %p98 = por %p96, %p97
    %s99 = ssub.s32 %s16, %s28
    %s100 = ssub.s32 %s17, %s24
    %s101 = sor.u32 %s99, %s100
    %p102 = scmp.eq.s32.totalorder %s101, 0
    %s104 = sadd.s32 %s103, 1
    %s105 = scalar_select %p102, %s103, %s104
    %p108 = pneg %p102
    %p109 = scmp.eq.s32.totalorder %s9, 3
    %p110 = por %p108, %p109
    %p111 = scmp.ne.s32.totalorder %s103, %s106
    %p112 = scmp.eq.s32.totalorder %s9, 0
    %p113 = por %p111, %p112
    %p114 = scmp.ne.s32.totalorder %s103, %s106
    %p115 = scmp.eq.s32.totalorder %s14, 3
    %p116 = por %p114, %p115
    %p117 = scmp.ne.s32.totalorder %s106, %s107
    %p118 = scmp.eq.s32.totalorder %s14, 0
    %p119 = por %p117, %p118
    %p120 = scmp.ne.s32.totalorder %s106, %s107
    %p121 = scmp.eq.s32.totalorder %s15, 3
    %p122 = por %p120, %p121
    %p124 = scmp.ne.s32.totalorder %s107, %s123
    %p125 = scmp.eq.s32.totalorder %s15, 0
    %p126 = por %p124, %p125
    %p127 = scmp.le.s32.totalorder 1, %s9
    %p128 = scmp.lt.s32.totalorder %s9, 5
    %p129 = pnand %p127, %p128
    %p130 = pneg %p129
    // Predicated region
    $region9: #{double_conv.5} parent=5 // pred_check
      _
    $region10: #{double_conv.5} parent=5 // pred_check_branch
      %132 = sbr.rel (%p129) target = $region12
    $region11: #{double_conv.5} parent=5 // pred_region
      %s133 = ssub.s32 %s9, 1
      // Predicated region
      $region13: #{double_conv.5} parent=11 // pred_check
        %p134 = pneg %p70
      $region14: #{double_conv.5} parent=11 // pred_check_branch
        %136 = sbr.rel (%p134) target = $region16
      $region15: #{double_conv.5} parent=11 // pred_region
        _
      $region16: #{double_conv.5} parent=11 // pred_fallthru
        _
      // Predicated region
      $region17: #{double_conv.5} parent=11 // pred_check
        %p137 = pneg %p91
      $region18: #{double_conv.5} parent=11 // pred_check_branch
        %139 = sbr.rel (%p137) target = $region20
      $region19: #{double_conv.5} parent=11 // pred_region
        _
      $region20: #{double_conv.5} parent=11 // pred_fallthru
        _
    $region12: #{double_conv.5} parent=5 // pred_fallthru
      _
    %p140 = scmp.lt.s32.totalorder %s9, 4
    // Predicated region
    $region21: #{double_conv.5} parent=5 // pred_check
      %p141 = pneg %p140
    $region22: #{double_conv.5} parent=5 // pred_check_branch
      %143 = sbr.rel (%p141) target = $region24
    $region23: #{double_conv.5} parent=5 // pred_region
      // Predicated region
      $region25: #{double_conv.5} parent=23 // pred_check
        %p144 = pneg %p43
      $region26: #{double_conv.5} parent=23 // pred_check_branch
        %146 = sbr.rel (%p144) target = $region28
      $region27: #{double_conv.5} parent=23 // pred_region
        %p147 = scmp.lt.s32.totalorder %s16, 1
        %s148 = scalar_select %p147, %s16, 1
        %p149 = scmp.lt.s32.totalorder %s17, 1
        %s150 = scalar_select %p149, %s17, 1
        %s151 = smul.addr %s150, 16
        %s152 = smul.addr %s148, 32
        %s153 = sadd.s32 %s151, %s152
        %s154 = smul.addr %s153, 4
        %s155 = scalar_lea.vmem %s0, %s154
      $region28: #{double_conv.5} parent=23 // pred_fallthru
        _
    $region24: #{double_conv.5} parent=5 // pred_fallthru
      _
    %p156 = scmp.le.s32.totalorder 1, %s9
    %p157 = scmp.lt.s32.totalorder %s9, 5
    %p158 = pnand %p156, %p157
    %p159 = pneg %p158
    // Predicated region
    $region29: #{double_conv.5} parent=5 // pred_check
      _
    $region30: #{double_conv.5} parent=5 // pred_check_branch
      %161 = sbr.rel (%p158) target = $region32
    $region31: #{double_conv.5} parent=5 // pred_region
      %s162 = ssub.s32 %s9, 1
      %p163 = scmp.lt.s32.totalorder %s18, 1
      %s164 = scalar_select %p163, %s18, 1
      %p165 = scmp.lt.s32.totalorder %s19, 1
      %s166 = scalar_select %p165, %s19, 1
      %s167 = smul.addr %s166, 16
      %s168 = smul.addr %s164, 32
      %s169 = sadd.s32 %s167, %s168
      %s170 = smul.addr %s169, 4
      %s171 = scalar_lea.vmem %s0, %s170
      %p172 = pneg %p49
      %p173 = pneg %p46
      %p174 = pneg %p70
      %p175 = pneg %p67
      %p176 = pneg %p91
      %p177 = pneg %p88
      %p178 = pneg %p119
      %p179 = pneg %p116
      %p180 = scmp.lt.s32.totalorder %s18, 1
      %s181 = scalar_select %p180, %s18, 1
      %p182 = scmp.lt.s32.totalorder %s19, 1
      %s183 = scalar_select %p182, %s19, 1
      %s184 = smul.addr %s183, 16
      %s185 = smul.addr %s181, 32
      %s186 = sadd.s32 %s184, %s185
      %s187 = smul.addr %s186, 8
      %s188 = scalar_lea.vmem %s3, %s187
      %p189 = scmp.lt.s32.totalorder %s18, 1
      %s190 = scalar_select %p189, %s18, 1
      %p191 = scmp.lt.s32.totalorder %s19, 1
      %s192 = scalar_select %p191, %s19, 1
      %s193 = smul.addr %s192, 16
      %s194 = smul.addr %s190, 32
      %s195 = sadd.s32 %s193, %s194
      %s196 = smul.addr %s195, 4
      %s197 = scalar_lea.vmem %s0, %s196
      %p198 = scmp.lt.s32.totalorder %s18, 1
      %s199 = scalar_select %p198, %s18, 1
      %p200 = scmp.lt.s32.totalorder %s19, 1
      %s201 = scalar_select %p200, %s19, 1
      %s202 = smul.addr %s201, 16
      %s203 = smul.addr %s199, 32
      %s204 = sadd.s32 %s202, %s203
      %s205 = smul.addr %s204, 8
      %s206 = scalar_lea.vmem %s3, %s205
      %v207 = vld [vmem:[%s197] sm:$0xf]
      %v208 = vld [vmem:[%s197 + $0x4] sm:$0xf]
      %v209 = vld [vmem:[%s197 + $0x8] sm:$0xf]
      %v210 = vld [vmem:[%s197 + $0xc] sm:$0xf]
      %v211 = vld [vmem:[%s197 + $0x10] sm:$0xf]
      %v212 = vld [vmem:[%s197 + $0x14] sm:$0xf]
      %v213 = vld [vmem:[%s197 + $0x18] sm:$0xf]
      %v214 = vld [vmem:[%s197 + $0x1c] sm:$0xf]
      %v215 = vld [vmem:[%s197 + $0x20] sm:$0xf]
      %v216 = vld [vmem:[%s197 + $0x24] sm:$0xf]
      %v217 = vld [vmem:[%s197 + $0x28] sm:$0xf]
      %v218 = vld [vmem:[%s197 + $0x2c] sm:$0xf]
      %v219 = vld [vmem:[%s197 + $0x30] sm:$0xf]
      %v220 = vld [vmem:[%s197 + $0x34] sm:$0xf]
      %v221 = vld [vmem:[%s197 + $0x38] sm:$0xf]
      %v222 = vld [vmem:[%s197 + $0x3c] sm:$0xf]
      %v223 = vunpack.c.l.bf16 %v207
      %v224 = vunpack.c.l.bf16 %v208
      %v225 = vunpack.c.l.bf16 %v209
      %v226 = vunpack.c.l.bf16 %v210
      %v227 = vunpack.c.l.bf16 %v211
      %v228 = vunpack.c.l.bf16 %v212
      %v229 = vunpack.c.l.bf16 %v213
      %v230 = vunpack.c.l.bf16 %v214
      %v231 = vunpack.c.l.bf16 %v215
      %v232 = vunpack.c.l.bf16 %v216
      %v233 = vunpack.c.l.bf16 %v217
      %v234 = vunpack.c.l.bf16 %v218
      %v235 = vunpack.c.l.bf16 %v219
      %v236 = vunpack.c.l.bf16 %v220
      %v237 = vunpack.c.l.bf16 %v221
      %v238 = vunpack.c.l.bf16 %v222
      %v239 = vld [vmem:[%s1] sm:$0x1]
      %v241 = vlaneseq
      %v242 = vshrl.u32 %v241, 7
      %v243 = vsub.s32 0, %v242
      %v244 = vrot.slane %v239, %v243
      %v246 = vmul.f32 %v223, %v244
      %v247 = vmul.f32 %v224, %v244
      %v248 = vmul.f32 %v225, %v244
      %v249 = vmul.f32 %v226, %v244
      %v250 = vmul.f32 %v227, %v244
      %v251 = vmul.f32 %v228, %v244
      %v252 = vmul.f32 %v229, %v244
      %v253 = vmul.f32 %v230, %v244
      %v254 = vmul.f32 %v231, %v244
      %v255 = vmul.f32 %v232, %v244
      %v256 = vmul.f32 %v233, %v244
      %v257 = vmul.f32 %v234, %v244
      %v258 = vmul.f32 %v235, %v244
      %v259 = vmul.f32 %v236, %v244
      %v260 = vmul.f32 %v237, %v244
      %v261 = vmul.f32 %v238, %v244
      %v262 = vld [vmem:[%s2] sm:$0x1]
      %v264 = vlaneseq
      %v265 = vshrl.u32 %v264, 7
      %v266 = vsub.s32 0, %v265
      %v267 = vrot.slane %v262, %v266
      %v269 = vadd.f32 %v246, %v267
      %v270 = vadd.f32 %v247, %v267
      %v271 = vadd.f32 %v248, %v267
      %v272 = vadd.f32 %v249, %v267
      %v273 = vadd.f32 %v250, %v267
      %v274 = vadd.f32 %v251, %v267
      %v275 = vadd.f32 %v252, %v267
      %v276 = vadd.f32 %v253, %v267
      %v277 = vadd.f32 %v254, %v267
      %v278 = vadd.f32 %v255, %v267
      %v279 = vadd.f32 %v256, %v267
      %v280 = vadd.f32 %v257, %v267
      %v281 = vadd.f32 %v258, %v267
      %v282 = vadd.f32 %v259, %v267
      %v283 = vadd.f32 %v260, %v267
      %v284 = vadd.f32 %v261, %v267
      %v285 = vmax.f32 %v269, 0.0
      %v286 = vmax.f32 %v270, 0.0
      %v287 = vmax.f32 %v271, 0.0
      %v288 = vmax.f32 %v272, 0.0
      %v289 = vmax.f32 %v273, 0.0
      %v290 = vmax.f32 %v274, 0.0
      %v291 = vmax.f32 %v275, 0.0
      %v292 = vmax.f32 %v276, 0.0
      %v293 = vmax.f32 %v277, 0.0
      %v294 = vmax.f32 %v278, 0.0
      %v295 = vmax.f32 %v279, 0.0
      %v296 = vmax.f32 %v280, 0.0
      %v297 = vmax.f32 %v281, 0.0
      %v298 = vmax.f32 %v282, 0.0
      %v299 = vmax.f32 %v283, 0.0
      %v300 = vmax.f32 %v284, 0.0
      %vm301 = vcmask 64512
      %302 = vst.msk [vmem:[%s206] sm:$0xff] %vm301, %v285
      %303 = vst.msk [vmem:[%s206 + $0x8] sm:$0xff] %vm301, %v286
      %304 = vst.msk [vmem:[%s206 + $0x10] sm:$0xff] %vm301, %v287
      %305 = vst.msk [vmem:[%s206 + $0x18] sm:$0xff] %vm301, %v288
      %306 = vst.msk [vmem:[%s206 + $0x20] sm:$0xff] %vm301, %v289
      %307 = vst.msk [vmem:[%s206 + $0x28] sm:$0xff] %vm301, %v290
      %308 = vst.msk [vmem:[%s206 + $0x30] sm:$0xff] %vm301, %v291
      %309 = vst.msk [vmem:[%s206 + $0x38] sm:$0xff] %vm301, %v292
      %310 = vst.msk [vmem:[%s206 + $0x40] sm:$0xff] %vm301, %v293
      %311 = vst.msk [vmem:[%s206 + $0x48] sm:$0xff] %vm301, %v294
      %312 = vst.msk [vmem:[%s206 + $0x50] sm:$0xff] %vm301, %v295
      %313 = vst.msk [vmem:[%s206 + $0x58] sm:$0xff] %vm301, %v296
      %314 = vst.msk [vmem:[%s206 + $0x60] sm:$0xff] %vm301, %v297
      %315 = vst.msk [vmem:[%s206 + $0x68] sm:$0xff] %vm301, %v298
      %316 = vst.msk [vmem:[%s206 + $0x70] sm:$0xff] %vm301, %v299
      %317 = vst.msk [vmem:[%s206 + $0x78] sm:$0xff] %vm301, %v300
      %p318 = scmp.lt.s32.totalorder %s18, 1
      %s319 = scalar_select %p318, %s18, 1
      %p320 = scmp.lt.s32.totalorder %s19, 1
      %s321 = scalar_select %p320, %s19, 1
      %s322 = smul.addr %s321, 16
      %s323 = smul.addr %s319, 32
      %s324 = sadd.s32 %s322, %s323
      %s325 = smul.addr %s324, 8
      %s326 = scalar_lea.vmem %s3, %s325
      // Predicated region
      $region33: #{double_conv.5} parent=31 // pred_check
        %p327 = pneg %p116
      $region34: #{double_conv.5} parent=31 // pred_check_branch
        %329 = sbr.rel (%p327) target = $region36
      $region35: #{double_conv.5} parent=31 // pred_region
        _
      $region36: #{double_conv.5} parent=31 // pred_fallthru
        _
    $region32: #{double_conv.5} parent=5 // pred_fallthru
      _
    %p330 = scmp.le.s32.totalorder 2, %s9
    // Predicated region
    $region37: #{double_conv.5} parent=5 // pred_check
      %p331 = pneg %p330
    $region38: #{double_conv.5} parent=5 // pred_check_branch
      %333 = sbr.rel (%p331) target = $region40
    $region39: #{double_conv.5} parent=5 // pred_region
      %s334 = ssub.s32 %s9, 2
      // Predicated region
      $region41: #{double_conv.5} parent=39 // pred_check
        %p335 = pneg %p122
      $region42: #{double_conv.5} parent=39 // pred_check_branch
        %337 = sbr.rel (%p335) target = $region44
      $region43: #{double_conv.5} parent=39 // pred_region
        %p338 = scmp.lt.s32.totalorder %s20, 1
        %s339 = scalar_select %p338, %s20, 1
        %p340 = scmp.lt.s32.totalorder %s21, 1
        %s341 = scalar_select %p340, %s21, 1
        %s342 = smul.addr %s341, 16
        %s343 = smul.addr %s339, 32
        %s344 = sadd.s32 %s342, %s343
        %s345 = smul.addr %s344, 8
        %s346 = scalar_lea.vmem %s3, %s345
      $region44: #{double_conv.5} parent=39 // pred_fallthru
        _
    $region40: #{double_conv.5} parent=5 // pred_fallthru
      _
  $region6: #{double_conv.5} parent=0 // loop_footer
    %s13 = sadd.s32 1, %s9
  $region7: #{double_conv.5} parent=0 // loop_footer_branch
    %8 = sbr.rel target = $region3
  $region8: #{double_conv.5} parent=0 // loop_exit
    _

// kernel: double_conv.4
$region0: #{double_conv.4}
  #allocation0 [shape = 'u32[]', space=smem, size = 0x4, offset = 0x4, fixed_abs, tag = 'smem constant byte address 0x4 - core index']
  #allocation1 [shape = 'u32[144,128]{1,0:T(1,128)}', space=vmem, size = 0x12000, scoped, tag = 'internal scratch']
  %s0 = inlined_call_operand.vmem [shape: bf16[2,2,10,18,8], index: 0, kind: input, shape index: {}]
  %s1 = inlined_call_operand.vmem [shape: bf16[72,8], index: 1, kind: input, shape index: {}]
  %s2 = inlined_call_operand.vmem [shape: f32[1,1,8], index: 2, kind: input, shape index: {}]
  %s3 = inlined_call_operand.vmem [shape: f32[1,1,8], index: 3, kind: input, shape index: {}]
  %s4 = inlined_call_operand.vmem [shape: bf16[2,2,8,16,8], index: 4, kind: output, shape index: {0}]
  %s5 = inlined_call_operand.vmem [shape: f32[2,2,8,8], index: 5, kind: output, shape index: {1}]
  %6 = xla_tuple %s4, %s5
  %s7 = sld [smem:[#allocation0]]
  $region57: #{double_conv.4} parent=0
    _
  %s9 = ssub.s32 1, %s7
  %s10 = scalar_select 0, %s9, %s7
  loop: start=0, step=1, limit=6
  $region2: #{double_conv.4} parent=0 // loop_pre_header
    _
  $region3: #{double_conv.4} parent=0 // loop_header
    %s12 = sphi 0, %s16
    %p13 = scmp.ge.s32.totalorder %s12, 6
    %s19 = sphi 0, %s31
    %s20 = sphi 0, %s27
    %s21 = sphi 0, %s19
    %s22 = sphi 0, %s20
    %s23 = sphi 0, %s21
    %s24 = sphi 0, %s22
    %s36 = sphi 0, %s38
    %s39 = sphi 0, %s36
    %s40 = sphi 0, %s39
    %s56 = sphi 0, %s40
    %s60 = sphi 0, %s60
    %s62 = sphi 0, %s60
    %s63 = sphi 0, %s62
    %s77 = sphi 0, %s63
    %s81 = sphi 0, %s81
    %s83 = sphi 0, %s81
    %s84 = sphi 0, %s83
    %s98 = sphi 0, %s84
    %s102 = sphi 0, %s102
    %s104 = sphi 0, %s102
    %s105 = sphi 0, %s104
    %s119 = sphi 0, %s105
    %s127 = sphi 0, %s129
    %s130 = sphi 0, %s127
    %s131 = sphi 0, %s130
    %s147 = sphi 0, %s131
    %s155 = sphi 0, %s157
    %s158 = sphi 0, %s155
    %s159 = sphi 0, %s158
    %s175 = sphi 0, %s159
  $region4: #{double_conv.4} parent=0 // loop_header_branch
    %15 = sbr.rel (%p13) target = $region8
  $region5: #{double_conv.4} parent=0 // loop_body
    %s17 = ssub.s32 %s12, 1
    %s18 = ssub.s32 %s12, 2
    %s25 = sadd.s32 1, %s20
    %p26 = scmp.ge.s32.totalorder %s25, 2
    %s27 = scalar_select %p26, 0, %s25
    %s28 = sadd.s32 1, %s19
    %s29 = scalar_select %p26, %s28, %s19
    %p30 = scmp.ge.s32.totalorder %s29, 2
    %s31 = scalar_select %p30, 0, %s29
    %s32 = ssub.s32 %s19, %s31
    %s33 = ssub.s32 %s20, %s27
    %s34 = sor.u32 %s32, %s33
    %p35 = scmp.eq.s32.totalorder %s34, 0
    %s37 = sadd.s32 %s36, 1
    %s38 = scalar_select %p35, %s36, %s37
    %p41 = pneg %p35
    %p42 = scmp.eq.s32.totalorder %s12, 3
    %p43 = por %p41, %p42
    %p44 = scmp.ne.s32.totalorder %s36, %s39
    %p45 = scmp.eq.s32.totalorder %s12, 0
    %p46 = por %p44, %p45
    %p47 = scmp.ne.s32.totalorder %s36, %s39
    %p48 = scmp.eq.s32.totalorder %s17, 3
    %p49 = por %p47, %p48
    %p50 = scmp.ne.s32.totalorder %s39, %s40
    %p51 = scmp.eq.s32.totalorder %s17, 0
    %p52 = por %p50, %p51
    %p53 = scmp.ne.s32.totalorder %s39, %s40
    %p54 = scmp.eq.s32.totalorder %s18, 3
    %p55 = por %p53, %p54
    %p57 = scmp.ne.s32.totalorder %s40, %s56
    %p58 = scmp.eq.s32.totalorder %s18, 0
    %p59 = por %p57, %p58
    %s61 = sadd.s32 %s60, 1
    %p64 = scmp.eq.s32.totalorder %s12, 3
    %p65 = scmp.ne.s32.totalorder %s60, %s62
    %p66 = scmp.eq.s32.totalorder %s12, 0
    %p67 = por %p65, %p66
    %p68 = scmp.ne.s32.totalorder %s60, %s62
    %p69 = scmp.eq.s32.totalorder %s17, 3
    %p70 = por %p68, %p69
    %p71 = scmp.ne.s32.totalorder %s62, %s63
    %p72 = scmp.eq.s32.totalorder %s17, 0
    %p73 = por %p71, %p72
    %p74 = scmp.ne.s32.totalorder %s62, %s63
    %p75 = scmp.eq.s32.totalorder %s18, 3
    %p76 = por %p74, %p75
    %p78 = scmp.ne.s32.totalorder %s63, %s77
    %p79 = scmp.eq.s32.totalorder %s18, 0
    %p80 = por %p78, %p79
    %s82 = sadd.s32 %s81, 1
    %p85 = scmp.eq.s32.totalorder %s12, 3
    %p86 = scmp.ne.s32.totalorder %s81, %s83
    %p87 = scmp.eq.s32.totalorder %s12, 0
    %p88 = por %p86, %p87
    %p89 = scmp.ne.s32.totalorder %s81, %s83
    %p90 = scmp.eq.s32.totalorder %s17, 3
    %p91 = por %p89, %p90
    %p92 = scmp.ne.s32.totalorder %s83, %s84
    %p93 = scmp.eq.s32.totalorder %s17, 0
    %p94 = por %p92, %p93
    %p95 = scmp.ne.s32.totalorder %s83, %s84
    %p96 = scmp.eq.s32.totalorder %s18, 3
    %p97 = por %p95, %p96
    %p99 = scmp.ne.s32.totalorder %s84, %s98
    %p100 = scmp.eq.s32.totalorder %s18, 0
    %p101 = por %p99, %p100
    %s103 = sadd.s32 %s102, 1
    %p106 = scmp.eq.s32.totalorder %s12, 3
    %p107 = scmp.ne.s32.totalorder %s102, %s104
    %p108 = scmp.eq.s32.totalorder %s12, 0
    %p109 = por %p107, %p108
    %p110 = scmp.ne.s32.totalorder %s102, %s104
    %p111 = scmp.eq.s32.totalorder %s17, 3
    %p112 = por %p110, %p111
    %p113 = scmp.ne.s32.totalorder %s104, %s105
    %p114 = scmp.eq.s32.totalorder %s17, 0
    %p115 = por %p113, %p114
    %p116 = scmp.ne.s32.totalorder %s104, %s105
    %p117 = scmp.eq.s32.totalorder %s18, 3
    %p118 = por %p116, %p117
    %p120 = scmp.ne.s32.totalorder %s105, %s119
    %p121 = scmp.eq.s32.totalorder %s18, 0
    %p122 = por %p120, %p121
    %s123 = ssub.s32 %s19, %s31
    %s124 = ssub.s32 %s20, %s27
    %s125 = sor.u32 %s123, %s124
    %p126 = scmp.eq.s32.totalorder %s125, 0
    %s128 = sadd.s32 %s127, 1
    %s129 = scalar_select %p126, %s127, %s128
    %p132 = pneg %p126
    %p133 = scmp.eq.s32.totalorder %s12, 3
    %p134 = por %p132, %p133
    %p135 = scmp.ne.s32.totalorder %s127, %s130
    %p136 = scmp.eq.s32.totalorder %s12, 0
    %p137 = por %p135, %p136
    %p138 = scmp.ne.s32.totalorder %s127, %s130
    %p139 = scmp.eq.s32.totalorder %s17, 3
    %p140 = por %p138, %p139
    %p141 = scmp.ne.s32.totalorder %s130, %s131
    %p142 = scmp.eq.s32.totalorder %s17, 0
    %p143 = por %p141, %p142
    %p144 = scmp.ne.s32.totalorder %s130, %s131
    %p145 = scmp.eq.s32.totalorder %s18, 3
    %p146 = por %p144, %p145
    %p148 = scmp.ne.s32.totalorder %s131, %s147
    %p149 = scmp.eq.s32.totalorder %s18, 0
    %p150 = por %p148, %p149
    %s151 = ssub.s32 %s19, %s31
    %s152 = ssub.s32 %s20, %s27
    %s153 = sor.u32 %s151, %s152
    %p154 = scmp.eq.s32.totalorder %s153, 0
    %s156 = sadd.s32 %s155, 1
    %s157 = scalar_select %p154, %s155, %s156
    %p160 = pneg %p154
    %p161 = scmp.eq.s32.totalorder %s12, 3
    %p162 = por %p160, %p161
    %p163 = scmp.ne.s32.totalorder %s155, %s158
    %p164 = scmp.eq.s32.totalorder %s12, 0
    %p165 = por %p163, %p164
    %p166 = scmp.ne.s32.totalorder %s155, %s158
    %p167 = scmp.eq.s32.totalorder %s17, 3
    %p168 = por %p166, %p167
    %p169 = scmp.ne.s32.totalorder %s158, %s159
    %p170 = scmp.eq.s32.totalorder %s17, 0
    %p171 = por %p169, %p170
    %p172 = scmp.ne.s32.totalorder %s158, %s159
    %p173 = scmp.eq.s32.totalorder %s18, 3
    %p174 = por %p172, %p173
    %p176 = scmp.ne.s32.totalorder %s159, %s175
    %p177 = scmp.eq.s32.totalorder %s18, 0
    %p178 = por %p176, %p177
    %p179 = scmp.le.s32.totalorder 1, %s12
    %p180 = scmp.lt.s32.totalorder %s12, 5
    %p181 = pnand %p179, %p180
    %p182 = pneg %p181
    // Predicated region
    $region9: #{double_conv.4} parent=5 // pred_check
      _
    $region10: #{double_conv.4} parent=5 // pred_check_branch
      %184 = sbr.rel (%p181) target = $region12
    $region11: #{double_conv.4} parent=5 // pred_region
      %s185 = ssub.s32 %s12, 1
      // Predicated region
      $region13: #{double_conv.4} parent=11 // pred_check
        %p186 = pneg %p73
      $region14: #{double_conv.4} parent=11 // pred_check_branch
        %188 = sbr.rel (%p186) target = $region16
      $region15: #{double_conv.4} parent=11 // pred_region
        _
      $region16: #{double_conv.4} parent=11 // pred_fallthru
        _
      // Predicated region
      $region17: #{double_conv.4} parent=11 // pred_check
        %p189 = pneg %p94
      $region18: #{double_conv.4} parent=11 // pred_check_branch
        %191 = sbr.rel (%p189) target = $region20
      $region19: #{double_conv.4} parent=11 // pred_region
        _
      $region20: #{double_conv.4} parent=11 // pred_fallthru
        _
      // Predicated region
      $region21: #{double_conv.4} parent=11 // pred_check
        %p192 = pneg %p115
      $region22: #{double_conv.4} parent=11 // pred_check_branch
        %194 = sbr.rel (%p192) target = $region24
      $region23: #{double_conv.4} parent=11 // pred_region
        _
      $region24: #{double_conv.4} parent=11 // pred_fallthru
        _
    $region12: #{double_conv.4} parent=5 // pred_fallthru
      _
    %p195 = scmp.lt.s32.totalorder %s12, 4
    // Predicated region
    $region25: #{double_conv.4} parent=5 // pred_check
      %p196 = pneg %p195
    $region26: #{double_conv.4} parent=5 // pred_check_branch
      %198 = sbr.rel (%p196) target = $region28
    $region27: #{double_conv.4} parent=5 // pred_region
      // Predicated region
      $region29: #{double_conv.4} parent=27 // pred_check
        %p199 = pneg %p46
      $region30: #{double_conv.4} parent=27 // pred_check_branch
        %201 = sbr.rel (%p199) target = $region32
      $region31: #{double_conv.4} parent=27 // pred_region
        %p202 = scmp.lt.s32.totalorder %s19, 1
        %s203 = scalar_select %p202, %s19, 1
        %p204 = scmp.lt.s32.totalorder %s20, 1
        %s205 = scalar_select %p204, %s20, 1
        %s206 = smul.addr %s205, 30
        %s207 = smul.addr %s203, 60
        %s208 = sadd.s32 %s206, %s207
        %s209 = smul.addr %s208, 4
        %s210 = scalar_lea.vmem %s0, %s209
      $region32: #{double_conv.4} parent=27 // pred_fallthru
        _
    $region28: #{double_conv.4} parent=5 // pred_fallthru
      _
    %p211 = scmp.le.s32.totalorder 1, %s12
    %p212 = scmp.lt.s32.totalorder %s12, 5
    %p213 = pnand %p211, %p212
    %p214 = pneg %p213
    // Predicated region
    $region33: #{double_conv.4} parent=5 // pred_check
      _
    $region34: #{double_conv.4} parent=5 // pred_check_branch
      %216 = sbr.rel (%p213) target = $region36
    $region35: #{double_conv.4} parent=5 // pred_region
      %s217 = ssub.s32 %s12, 1
      %p218 = scmp.lt.s32.totalorder %s21, 1
      %s219 = scalar_select %p218, %s21, 1
      %p220 = scmp.lt.s32.totalorder %s22, 1
      %s221 = scalar_select %p220, %s22, 1
      %s222 = smul.addr %s221, 30
      %s223 = smul.addr %s219, 60
      %s224 = sadd.s32 %s222, %s223
      %s225 = smul.addr %s224, 4
      %s226 = scalar_lea.vmem %s0, %s225
      %p227 = pneg %p52
      %p228 = pneg %p49
      %p229 = pneg %p73
      %p230 = pneg %p70
      %p231 = pneg %p94
      %p232 = pneg %p91
      %p233 = pneg %p115
      %p234 = pneg %p112
      %p235 = pneg %p143
      %p236 = pneg %p140
      %p237 = scmp.lt.s32.totalorder %s21, 1
      %s238 = scalar_select %p237, %s21, 1
      %p239 = scmp.lt.s32.totalorder %s22, 1
      %s240 = scalar_select %p239, %s22, 1
      %s241 = smul.addr %s240, 16
      %s242 = smul.addr %s238, 32
      %s243 = sadd.s32 %s241, %s242
      %s244 = smul.addr %s243, 4
      %s245 = scalar_lea.vmem %s4, %s244
      %p246 = pneg %p171
      %p247 = pneg %p168
      %p248 = scmp.lt.s32.totalorder %s21, 1
      %s249 = scalar_select %p248, %s21, 1
      %p250 = scmp.lt.s32.totalorder %s22, 1
      %s251 = scalar_select %p250, %s22, 1
      %s252 = smul.addr %s249, 2
      %s253 = sadd.s32 %s251, %s252
      %s254 = smul.addr %s253, 8
      %s255 = scalar_lea.vmem %s5, %s254
      %p256 = scmp.lt.s32.totalorder %s21, 1
      %s257 = scalar_select %p256, %s21, 1
      %p258 = scmp.lt.s32.totalorder %s22, 1
      %s259 = scalar_select %p258, %s22, 1
      %s260 = smul.addr %s259, 30
      %s261 = smul.addr %s257, 60
      %s262 = sadd.s32 %s260, %s261
      %s263 = smul.addr %s262, 4
      %s264 = scalar_lea.vmem %s0, %s263
      %p265 = scmp.lt.s32.totalorder %s21, 1
      %s266 = scalar_select %p265, %s21, 1
      %p267 = scmp.lt.s32.totalorder %s22, 1
      %s268 = scalar_select %p267, %s22, 1
      %s269 = smul.addr %s268, 16
      %s270 = smul.addr %s266, 32
      %s271 = sadd.s32 %s269, %s270
      %s272 = smul.addr %s271, 4
      %s273 = scalar_lea.vmem %s4, %s272
      %p274 = scmp.lt.s32.totalorder %s21, 1
      %s275 = scalar_select %p274, %s21, 1
      %p276 = scmp.lt.s32.totalorder %s22, 1
      %s277 = scalar_select %p276, %s22, 1
      %s278 = smul.addr %s275, 2
      %s279 = sadd.s32 %s277, %s278
      %s280 = smul.addr %s279, 8
      %s281 = scalar_lea.vmem %s5, %s280
      %v283 = vld [vmem:[%s264] sm:$0xf]
      %v284 = vld [vmem:[%s264 + $0x4] sm:$0xf]
      %v285 = vld [vmem:[%s264 + $0x8] sm:$0x1]
      %v286 = vld [vmem:[%s264 + $0xc] sm:$0xf]
      %v287 = vld [vmem:[%s264 + $0x10] sm:$0xf]
      %v288 = vld [vmem:[%s264 + $0x14] sm:$0x1]
      %v289 = vld [vmem:[%s264 + $0x18] sm:$0xf]
      %v290 = vld [vmem:[%s264 + $0x1c] sm:$0xf]
      %v291 = vld [vmem:[%s264 + $0x20] sm:$0x1]
      %v292 = vld [vmem:[%s264 + $0x24] sm:$0xf]
      %v293 = vld [vmem:[%s264 + $0x28] sm:$0xf]
      %v294 = vld [vmem:[%s264 + $0x2c] sm:$0x1]
      %v295 = vld [vmem:[%s264 + $0x30] sm:$0xf]
      %v296 = vld [vmem:[%s264 + $0x34] sm:$0xf]
      %v297 = vld [vmem:[%s264 + $0x38] sm:$0x1]
      %v298 = vld [vmem:[%s264 + $0x3c] sm:$0xf]
      %v299 = vld [vmem:[%s264 + $0x40] sm:$0xf]
      %v300 = vld [vmem:[%s264 + $0x44] sm:$0x1]
      %v301 = vld [vmem:[%s264 + $0x48] sm:$0xf]
      %v302 = vld [vmem:[%s264 + $0x4c] sm:$0xf]
      %v303 = vld [vmem:[%s264 + $0x50] sm:$0x1]
      %v304 = vld [vmem:[%s264 + $0x54] sm:$0xf]
      %v305 = vld [vmem:[%s264 + $0x58] sm:$0xf]
      %v306 = vld [vmem:[%s264 + $0x5c] sm:$0x1]
      %v307 = vld [vmem:[%s264 + $0x60] sm:$0xf]
      %v308 = vld [vmem:[%s264 + $0x64] sm:$0xf]
      %v309 = vld [vmem:[%s264 + $0x68] sm:$0x1]
      %v310 = vld [vmem:[%s264 + $0x6c] sm:$0xf]
      %v311 = vld [vmem:[%s264 + $0x70] sm:$0xf]
      %v312 = vld [vmem:[%s264 + $0x74] sm:$0x1]
      %v313 = vunpack.c.l.bf16 %v283
      %v314 = vunpack.c.l.bf16 %v284
      %v315 = vunpack.c.l.bf16 %v285
      %v316 = vunpack.c.l.bf16 %v286
      %v317 = vunpack.c.l.bf16 %v287
      %v318 = vunpack.c.l.bf16 %v288
      %v319 = vunpack.c.l.bf16 %v289
      %v320 = vunpack.c.l.bf16 %v290
      %v321 = vunpack.c.l.bf16 %v291
      %v322 = vunpack.c.l.bf16 %v292
      %v323 = vunpack.c.l.bf16 %v293
      %v324 = vunpack.c.l.bf16 %v294
      %v325 = vunpack.c.l.bf16 %v295
      %v326 = vunpack.c.l.bf16 %v296
      %v327 = vunpack.c.l.bf16 %v297
      %v328 = vunpack.c.l.bf16 %v298
      %v329 = vunpack.c.l.bf16 %v299
      %v330 = vunpack.c.l.bf16 %v300
      %v331 = vunpack.c.l.bf16 %v301
      %v332 = vunpack.c.l.bf16 %v302
      %v333 = vunpack.c.l.bf16 %v303
      %v334 = vunpack.c.l.bf16 %v304
      %v335 = vunpack.c.l.bf16 %v305
      %v336 = vunpack.c.l.bf16 %v306
      %v337 = vunpack.c.l.bf16 %v307
      %v338 = vunpack.c.l.bf16 %v308
      %v339 = vunpack.c.l.bf16 %v309
      %v340 = vunpack.c.l.bf16 %v310
      %v341 = vunpack.c.l.bf16 %v311
      %v342 = vunpack.c.l.bf16 %v312
      %v343 = vld [vmem:[%s2] sm:$0x1]
      %v345 = vlaneseq
      %v346 = vshrl.u32 %v345, 7
      %v347 = vsub.s32 0, %v346
      %v348 = vrot.slane %v343, %v347
      %v350 = vmul.f32 %v313, %v348
      %v351 = vmul.f32 %v314, %v348
      %v352 = vmul.f32 %v315, %v348
      %v353 = vmul.f32 %v316, %v348
      %v354 = vmul.f32 %v317, %v348
      %v355 = vmul.f32 %v318, %v348
      %v356 = vmul.f32 %v319, %v348
      %v357 = vmul.f32 %v320, %v348
      %v358 = vmul.f32 %v321, %v348
      %v359 = vmul.f32 %v322, %v348
      %v360 = vmul.f32 %v323, %v348
      %v361 = vmul.f32 %v324, %v348
      %v362 = vmul.f32 %v325, %v348
      %v363 = vmul.f32 %v326, %v348
      %v364 = vmul.f32 %v327, %v348
      %v365 = vmul.f32 %v328, %v348
      %v366 = vmul.f32 %v329, %v348
      %v367 = vmul.f32 %v330, %v348
      %v368 = vmul.f32 %v331, %v348
      %v369 = vmul.f32 %v332, %v348
      %v370 = vmul.f32 %v333, %v348
      %v371 = vmul.f32 %v334, %v348
      %v372 = vmul.f32 %v335, %v348
      %v373 = vmul.f32 %v336, %v348
      %v374 = vmul.f32 %v337, %v348
      %v375 = vmul.f32 %v338, %v348
      %v376 = vmul.f32 %v339, %v348
      %v377 = vmul.f32 %v340, %v348
      %v378 = vmul.f32 %v341, %v348
      %v379 = vmul.f32 %v342, %v348
      %v380 = vld [vmem:[%s3] sm:$0x1]
      %v382 = vlaneseq
      %v383 = vshrl.u32 %v382, 7
      %v384 = vsub.s32 0, %v383
      %v385 = vrot.slane %v380, %v384
      %v387 = vadd.f32 %v350, %v385
      %v388 = vadd.f32 %v351, %v385
      %v389 = vadd.f32 %v352, %v385
      %v390 = vadd.f32 %v353, %v385
      %v391 = vadd.f32 %v354, %v385
      %v392 = vadd.f32 %v355, %v385
      %v393 = vadd.f32 %v356, %v385
      %v394 = vadd.f32 %v357, %v385
      %v395 = vadd.f32 %v358, %v385
      %v396 = vadd.f32 %v359, %v385
      %v397 = vadd.f32 %v360, %v385
      %v398 = vadd.f32 %v361, %v385
      %v399 = vadd.f32 %v362, %v385
      %v400 = vadd.f32 %v363, %v385
      %v401 = vadd.f32 %v364, %v385
      %v402 = vadd.f32 %v365, %v385
      %v403 = vadd.f32 %v366, %v385
      %v404 = vadd.f32 %v367, %v385
      %v405 = vadd.f32 %v368, %v385
      %v406 = vadd.f32 %v369, %v385
      %v407 = vadd.f32 %v370, %v385
      %v408 = vadd.f32 %v371, %v385
      %v409 = vadd.f32 %v372, %v385
      %v410 = vadd.f32 %v373, %v385
      %v411 = vadd.f32 %v374, %v385
      %v412 = vadd.f32 %v375, %v385
      %v413 = vadd.f32 %v376, %v385
      %v414 = vadd.f32 %v377, %v385
      %v415 = vadd.f32 %v378, %v385
      %v416 = vadd.f32 %v379, %v385
      %v417 = vmax.f32 %v387, 0.0
      %v418 = vmax.f32 %v388, 0.0
      %v419 = vmax.f32 %v389, 0.0
      %v420 = vmax.f32 %v390, 0.0
      %v421 = vmax.f32 %v391, 0.0
      %v422 = vmax.f32 %v392, 0.0
      %v423 = vmax.f32 %v393, 0.0
      %v424 = vmax.f32 %v394, 0.0
      %v425 = vmax.f32 %v395, 0.0
      %v426 = vmax.f32 %v396, 0.0
      %v427 = vmax.f32 %v397, 0.0
      %v428 = vmax.f32 %v398, 0.0
      %v429 = vmax.f32 %v399, 0.0
      %v430 = vmax.f32 %v400, 0.0
      %v431 = vmax.f32 %v401, 0.0
      %v432 = vmax.f32 %v402, 0.0
      %v433 = vmax.f32 %v403, 0.0
      %v434 = vmax.f32 %v404, 0.0
      %v435 = vmax.f32 %v405, 0.0
      %v436 = vmax.f32 %v406, 0.0
      %v437 = vmax.f32 %v407, 0.0
      %v438 = vmax.f32 %v408, 0.0
      %v439 = vmax.f32 %v409, 0.0
      %v440 = vmax.f32 %v410, 0.0
      %v441 = vmax.f32 %v411, 0.0
      %v442 = vmax.f32 %v412, 0.0
      %v443 = vmax.f32 %v413, 0.0
      %v444 = vmax.f32 %v414, 0.0
      %v445 = vmax.f32 %v415, 0.0
      %v446 = vmax.f32 %v416, 0.0
      %s447 = smul.u32 %s22, 8
      %s448 = ssub.s32 %s447, 1
      %v449 = vstv %s448
      %v450 = vadd.s32 %v449, 1
      %v451 = vadd.s32 %v449, 2
      %v452 = vadd.s32 %v449, 3
      %v453 = vadd.s32 %v449, 4
      %v454 = vadd.s32 %v449, 5
      %v455 = vadd.s32 %v449, 6
      %v456 = vadd.s32 %v449, 7
      %v457 = vadd.s32 %v449, 8
      %v458 = vadd.s32 %v449, 9
      %v459 = vlaneseq
      %v460 = vshrl.u32 %v459, 7
      %v461 = vadd.s32 %v460, 8
      %v462 = vadd.s32 %v460, 16
      %vm463 = vcmp.ge.s32.totalorder %v449, 0
      %vm464 = vcmp.ge.s32.totalorder %v450, 0
      %vm465 = vcmp.ge.s32.totalorder %v451, 0
      %vm466 = vcmp.ge.s32.totalorder %v452, 0
      %vm467 = vcmp.ge.s32.totalorder %v453, 0
      %vm468 = vcmp.ge.s32.totalorder %v454, 0
      %vm469 = vcmp.ge.s32.totalorder %v455, 0
      %vm470 = vcmp.ge.s32.totalorder %v456, 0
      %vm471 = vcmp.ge.s32.totalorder %v457, 0
      %vm472 = vcmp.ge.s32.totalorder %v458, 0
      %vm473 = vcmp.lt.s32.totalorder %v449, 16
      %vm474 = vcmp.lt.s32.totalorder %v450, 16
      %vm475 = vcmp.lt.s32.totalorder %v451, 16
      %vm476 = vcmp.lt.s32.totalorder %v452, 16
      %vm477 = vcmp.lt.s32.totalorder %v453, 16
      %vm478 = vcmp.lt.s32.totalorder %v454, 16
      %vm479 = vcmp.lt.s32.totalorder %v455, 16
      %vm480 = vcmp.lt.s32.totalorder %v456, 16
      %vm481 = vcmp.lt.s32.totalorder %v457, 16
      %vm482 = vcmp.lt.s32.totalorder %v458, 16
      %vm483 = vmand %vm463, %vm473
      %vm484 = vmand %vm464, %vm474
      %vm485 = vmand %vm465, %vm475
      %vm486 = vmand %vm466, %vm476
      %vm487 = vmand %vm467, %vm477
      %vm488 = vmand %vm468, %vm478
      %vm489 = vmand %vm469, %vm479
      %vm490 = vmand %vm470, %vm480
      %vm491 = vmand %vm471, %vm481
      %vm492 = vmand %vm472, %vm482
      %vm493 = vcmp.ge.s32.totalorder %v460, 1
      %vm494 = vcmp.ge.s32.totalorder %v461, 1
      %vm495 = vcmp.ge.s32.totalorder %v462, 1
      %v496 = vsel %vm483, 1, 0
      %v497 = vsel %vm484, 1, 0
      %v498 = vsel %vm485, 1, 0
      %v499 = vsel %vm486, 1, 0
      %v500 = vsel %vm487, 1, 0
      %v501 = vsel %vm488, 1, 0
      %v502 = vsel %vm489, 1, 0
      %v503 = vsel %vm490, 1, 0
      %v504 = vsel %vm491, 1, 0
      %v505 = vsel %vm492, 1, 0
      %vm506 = vcmp.eq.s32.totalorder %v496, 1
      %vm507 = vcmp.eq.s32.totalorder %v497, 1
      %vm508 = vcmp.eq.s32.totalorder %v498, 1
      %vm509 = vcmp.eq.s32.totalorder %v499, 1
      %vm510 = vcmp.eq.s32.totalorder %v500, 1
      %vm511 = vcmp.eq.s32.totalorder %v501, 1
      %vm512 = vcmp.eq.s32.totalorder %v502, 1
      %vm513 = vcmp.eq.s32.totalorder %v503, 1
      %vm514 = vcmp.eq.s32.totalorder %v504, 1
      %vm515 = vcmp.eq.s32.totalorder %v505, 1
      %v516 = vsel %vm493, 1, 0
      %v517 = vsel %vm494, 1, 0
      %v518 = vsel %vm495, 1, 0
      %vm519 = vcmp.eq.s32.totalorder %v516, 1
      %vm520 = vcmp.eq.s32.totalorder %v517, 1
      %vm521 = vcmp.eq.s32.totalorder %v518, 1
      %vm522 = vmand %vm506, %vm519
      %vm523 = vmand %vm506, %vm520
      %vm524 = vmand %vm506, %vm521
      %vm525 = vmand %vm507, %vm519
      %vm526 = vmand %vm507, %vm520
      %vm527 = vmand %vm507, %vm521
      %vm528 = vmand %vm508, %vm519
      %vm529 = vmand %vm508, %vm520
      %vm530 = vmand %vm508, %vm521
      %vm531 = vmand %vm509, %vm519
      %vm532 = vmand %vm509, %vm520
      %vm533 = vmand %vm509, %vm521
      %vm534 = vmand %vm510, %vm519
      %vm535 = vmand %vm510, %vm520
      %vm536 = vmand %vm510, %vm521
      %vm537 = vmand %vm511, %vm519
      %vm538 = vmand %vm511, %vm520
      %vm539 = vmand %vm511, %vm521
      %vm540 = vmand %vm512, %vm519
      %vm541 = vmand %vm512, %vm520
      %vm542 = vmand %vm512, %vm521
      %vm543 = vmand %vm513, %vm519
      %vm544 = vmand %vm513, %vm520
      %vm545 = vmand %vm513, %vm521
      %vm546 = vmand %vm514, %vm519
      %vm547 = vmand %vm514, %vm520
      %vm548 = vmand %vm514, %vm521
      %vm549 = vmand %vm515, %vm519
      %vm550 = vmand %vm515, %vm520
      %vm551 = vmand %vm515, %vm521
      %vm552 = vcmp.le.s32.totalorder %v460, 16
      %vm553 = vcmp.le.s32.totalorder %v461, 16
      %vm554 = vcmp.le.s32.totalorder %v462, 16
      %v555 = vsel %vm552, 1, 0
      %v556 = vsel %vm553, 1, 0
      %v557 = vsel %vm554, 1, 0
      %vm558 = vcmp.eq.s32.totalorder %v555, 1
      %vm559 = vcmp.eq.s32.totalorder %v556, 1
      %vm560 = vcmp.eq.s32.totalorder %v557, 1
      %vm561 = vmand %vm522, %vm558
      %vm562 = vmand %vm523, %vm559
      %vm563 = vmand %vm524, %vm560
      %vm564 = vmand %vm525, %vm558
      %vm565 = vmand %vm526, %vm559
      %vm566 = vmand %vm527, %vm560
      %vm567 = vmand %vm528, %vm558
      %vm568 = vmand %vm529, %vm559
      %vm569 = vmand %vm530, %vm560
      %vm570 = vmand %vm531, %vm558
      %vm571 = vmand %vm532, %vm559
      %vm572 = vmand %vm533, %vm560
      %vm573 = vmand %vm534, %vm558
      %vm574 = vmand %vm535, %vm559
      %vm575 = vmand %vm536, %vm560
      %vm576 = vmand %vm537, %vm558
      %vm577 = vmand %vm538, %vm559
      %vm578 = vmand %vm539, %vm560
      %vm579 = vmand %vm540, %vm558
      %vm580 = vmand %vm541, %vm559
      %vm581 = vmand %vm542, %vm560
      %vm582 = vmand %vm543, %vm558
      %vm583 = vmand %vm544, %vm559
      %vm584 = vmand %vm545, %vm560
      %vm585 = vmand %vm546, %vm558
      %vm586 = vmand %vm547, %vm559
      %vm587 = vmand %vm548, %vm560
      %vm588 = vmand %vm549, %vm558
      %vm589 = vmand %vm550, %vm559
      %vm590 = vmand %vm551, %vm560
      %v591 = vsel %vm561, 1, 0
      %v592 = vsel %vm562, 1, 0
      %v593 = vsel %vm563, 1, 0
      %v594 = vsel %vm564, 1, 0
      %v595 = vsel %vm565, 1, 0
      %v596 = vsel %vm566, 1, 0
      %v597 = vsel %vm567, 1, 0
      %v598 = vsel %vm568, 1, 0
      %v599 = vsel %vm569, 1, 0
      %v600 = vsel %vm570, 1, 0
      %v601 = vsel %vm571, 1, 0
      %v602 = vsel %vm572, 1, 0
      %v603 = vsel %vm573, 1, 0
      %v604 = vsel %vm574, 1, 0
      %v605 = vsel %vm575, 1, 0
      %v606 = vsel %vm576, 1, 0
      %v607 = vsel %vm577, 1, 0
      %v608 = vsel %vm578, 1, 0
      %v609 = vsel %vm579, 1, 0
      %v610 = vsel %vm580, 1, 0
      %v611 = vsel %vm581, 1, 0
      %v612 = vsel %vm582, 1, 0
      %v613 = vsel %vm583, 1, 0
      %v614 = vsel %vm584, 1, 0
      %v615 = vsel %vm585, 1, 0
      %v616 = vsel %vm586, 1, 0
      %v617 = vsel %vm587, 1, 0
      %v618 = vsel %vm588, 1, 0
      %v619 = vsel %vm589, 1, 0
      %v620 = vsel %vm590, 1, 0
      %vm621 = vcmp.eq.s32.totalorder %v591, 1
      %vm622 = vcmp.eq.s32.totalorder %v592, 1
      %vm623 = vcmp.eq.s32.totalorder %v593, 1
      %vm624 = vcmp.eq.s32.totalorder %v594, 1
      %vm625 = vcmp.eq.s32.totalorder %v595, 1
      %vm626 = vcmp.eq.s32.totalorder %v596, 1
      %vm627 = vcmp.eq.s32.totalorder %v597, 1
      %vm628 = vcmp.eq.s32.totalorder %v598, 1
      %vm629 = vcmp.eq.s32.totalorder %v599, 1
      %vm630 = vcmp.eq.s32.totalorder %v600, 1
      %vm631 = vcmp.eq.s32.totalorder %v601, 1
      %vm632 = vcmp.eq.s32.totalorder %v602, 1
      %vm633 = vcmp.eq.s32.totalorder %v603, 1
      %vm634 = vcmp.eq.s32.totalorder %v604, 1
      %vm635 = vcmp.eq.s32.totalorder %v605, 1
      %vm636 = vcmp.eq.s32.totalorder %v606, 1
      %vm637 = vcmp.eq.s32.totalorder %v607, 1
      %vm638 = vcmp.eq.s32.totalorder %v608, 1
      %vm639 = vcmp.eq.s32.totalorder %v609, 1
      %vm640 = vcmp.eq.s32.totalorder %v610, 1
      %vm641 = vcmp.eq.s32.totalorder %v611, 1
      %vm642 = vcmp.eq.s32.totalorder %v612, 1
      %vm643 = vcmp.eq.s32.totalorder %v613, 1
      %vm644 = vcmp.eq.s32.totalorder %v614, 1
      %vm645 = vcmp.eq.s32.totalorder %v615, 1
      %vm646 = vcmp.eq.s32.totalorder %v616, 1
      %vm647 = vcmp.eq.s32.totalorder %v617, 1
      %vm648 = vcmp.eq.s32.totalorder %v618, 1
      %vm649 = vcmp.eq.s32.totalorder %v619, 1
      %vm650 = vcmp.eq.s32.totalorder %v620, 1
      %v651 = vsel %vm621, %v417, 0.0
      %v652 = vsel %vm622, %v418, 0.0
      %v653 = vsel %vm623, %v419, 0.0
      %v654 = vsel %vm624, %v420, 0.0
      %v655 = vsel %vm625, %v421, 0.0
      %v656 = vsel %vm626, %v422, 0.0
      %v657 = vsel %vm627, %v423, 0.0
      %v658 = vsel %vm628, %v424, 0.0
      %v659 = vsel %vm629, %v425, 0.0
      %v660 = vsel %vm630, %v426, 0.0
      %v661 = vsel %vm631, %v427, 0.0
      %v662 = vsel %vm632, %v428, 0.0
      %v663 = vsel %vm633, %v429, 0.0
      %v664 = vsel %vm634, %v430, 0.0
      %v665 = vsel %vm635, %v431, 0.0
      %v666 = vsel %vm636, %v432, 0.0
      %v667 = vsel %vm637, %v433, 0.0
      %v668 = vsel %vm638, %v434, 0.0
      %v669 = vsel %vm639, %v435, 0.0
      %v670 = vsel %vm640, %v436, 0.0
      %v671 = vsel %vm641, %v437, 0.0
      %v672 = vsel %vm642, %v438, 0.0
      %v673 = vsel %vm643, %v439, 0.0
      %v674 = vsel %vm644, %v440, 0.0
      %v675 = vsel %vm645, %v441, 0.0
      %v676 = vsel %vm646, %v442, 0.0
      %v677 = vsel %vm647, %v443, 0.0
      %v678 = vsel %vm648, %v444, 0.0
      %v679 = vsel %vm649, %v445, 0.0
      %v680 = vsel %vm650, %v446, 0.0
      %v681 = vpack.c.bf16 %v652, %v651
      %v682 = vpack.c.bf16 %v653, %v653
      %v683 = vpack.c.bf16 %v655, %v654
      %v684 = vpack.c.bf16 %v656, %v656
      %v685 = vpack.c.bf16 %v658, %v657
      %v686 = vpack.c.bf16 %v659, %v659
      %v687 = vpack.c.bf16 %v661, %v660
      %v688 = vpack.c.bf16 %v662, %v662
      %v689 = vpack.c.bf16 %v664, %v663
      %v690 = vpack.c.bf16 %v665, %v665
      %v691 = vpack.c.bf16 %v667, %v666
      %v692 = vpack.c.bf16 %v668, %v668
      %v693 = vpack.c.bf16 %v670, %v669
      %v694 = vpack.c.bf16 %v671, %v671
      %v695 = vpack.c.bf16 %v673, %v672
      %v696 = vpack.c.bf16 %v674, %v674
      %v697 = vpack.c.bf16 %v676, %v675
      %v698 = vpack.c.bf16 %v677, %v677
      %v699 = vpack.c.bf16 %v679, %v678
      %v700 = vpack.c.bf16 %v680, %v680
      %vm701 = vsmask.f32 7424
      %v703 = vshrl.u32 %v681, 16
      %v705 = vshll.u32 %v681, 16
      %v707 = vrot.slane %v705, 1
      %v708 = vor.u32 %v703, %v707
      %v710 = vshll.u32 %v682, 16
      %v712 = vrot.slane %v710, 1
      %v713 = vsel %vm701, %v708, %v712
      %v715 = vshrl.u32 %v683, 16
      %v717 = vshll.u32 %v683, 16
      %v719 = vrot.slane %v717, 1
      %v720 = vor.u32 %v715, %v719
      %v722 = vshll.u32 %v684, 16
      %v724 = vrot.slane %v722, 1
      %v725 = vsel %vm701, %v720, %v724
      %v727 = vshrl.u32 %v685, 16
      %v729 = vshll.u32 %v685, 16
      %v731 = vrot.slane %v729, 1
      %v732 = vor.u32 %v727, %v731
      %v734 = vshll.u32 %v686, 16
      %v736 = vrot.slane %v734, 1
      %v737 = vsel %vm701, %v732, %v736
      %v739 = vshrl.u32 %v687, 16
      %v741 = vshll.u32 %v687, 16
      %v743 = vrot.slane %v741, 1
      %v744 = vor.u32 %v739, %v743
      %v746 = vshll.u32 %v688, 16
      %v748 = vrot.slane %v746, 1
      %v749 = vsel %vm701, %v744, %v748
      %v751 = vshrl.u32 %v689, 16
      %v753 = vshll.u32 %v689, 16
      %v755 = vrot.slane %v753, 1
      %v756 = vor.u32 %v751, %v755
      %v758 = vshll.u32 %v690, 16
      %v760 = vrot.slane %v758, 1
      %v761 = vsel %vm701, %v756, %v760
      %v763 = vshrl.u32 %v691, 16
      %v765 = vshll.u32 %v691, 16
      %v767 = vrot.slane %v765, 1
      %v768 = vor.u32 %v763, %v767
      %v770 = vshll.u32 %v692, 16
      %v772 = vrot.slane %v770, 1
      %v773 = vsel %vm701, %v768, %v772
      %v775 = vshrl.u32 %v693, 16
      %v777 = vshll.u32 %v693, 16
      %v779 = vrot.slane %v777, 1
      %v780 = vor.u32 %v775, %v779
      %v782 = vshll.u32 %v694, 16
      %v784 = vrot.slane %v782, 1
      %v785 = vsel %vm701, %v780, %v784
      %v787 = vshrl.u32 %v695, 16
      %v789 = vshll.u32 %v695, 16
      %v791 = vrot.slane %v789, 1
      %v792 = vor.u32 %v787, %v791
      %v794 = vshll.u32 %v696, 16
      %v796 = vrot.slane %v794, 1
      %v797 = vsel %vm701, %v792, %v796
      %vm814 = vcmask 1046528
      %v815 = vrot.slane %v681, 1
      %v816 = vrot.slane %v682, 1
      %v817 = vsel %vm814, %v815, %v816
      %v818 = vrot.slane %v683, 1
      %v819 = vrot.slane %v684, 1
      %v820 = vsel %vm814, %v818, %v819
      %v821 = vrot.slane %v685, 1
      %v822 = vrot.slane %v686, 1
      %v823 = vsel %vm814, %v821, %v822
      %v824 = vrot.slane %v687, 1
      %v825 = vrot.slane %v688, 1
      %v826 = vsel %vm814, %v824, %v825
      %v827 = vrot.slane %v689, 1
      %v828 = vrot.slane %v690, 1
      %v829 = vsel %vm814, %v827, %v828
      %v830 = vrot.slane %v691, 1
      %v831 = vrot.slane %v692, 1
      %v832 = vsel %vm814, %v830, %v831
      %v833 = vrot.slane %v693, 1
      %v834 = vrot.slane %v694, 1
      %v835 = vsel %vm814, %v833, %v834
      %v836 = vrot.slane %v695, 1
      %v837 = vrot.slane %v696, 1
      %v838 = vsel %vm814, %v836, %v837
      %v840 = vshrl.u32 %v697, 16
      %v842 = vshll.u32 %v697, 16
      %v844 = vrot.slane %v842, 1
      %v845 = vor.u32 %v840, %v844
      %v847 = vshll.u32 %v698, 16
      %v849 = vrot.slane %v847, 1
      %v850 = vsel %vm701, %v845, %v849
      %v853 = vrot.slane %v697, 1
      %v854 = vrot.slane %v698, 1
      %v855 = vsel %vm814, %v853, %v854
      %v857 = vshrl.u32 %v699, 16
      %v859 = vshll.u32 %v699, 16
      %v861 = vrot.slane %v859, 1
      %v862 = vor.u32 %v857, %v861
      %v864 = vshll.u32 %v700, 16
      %v866 = vrot.slane %v864, 1
      %v867 = vsel %vm701, %v862, %v866
      %v870 = vrot.slane %v699, 1
      %v871 = vrot.slane %v700, 1
      %v872 = vsel %vm814, %v870, %v871
      %873 = vrot.lane.b32.xlu0 %v713, 8
      %v874 = vpop.permute.xlu0 %873
      %875 = vrot.lane.b32.xlu0 %v725, 8
      %v876 = vpop.permute.xlu0 %875
      %877 = vrot.lane.b32.xlu0 %v737, 8
      %v878 = vpop.permute.xlu0 %877
      %879 = vrot.lane.b32.xlu0 %v749, 8
      %v880 = vpop.permute.xlu0 %879
      %881 = vrot.lane.b32.xlu0 %v761, 8
      %v882 = vpop.permute.xlu0 %881
      %883 = vrot.lane.b32.xlu0 %v773, 8
      %v884 = vpop.permute.xlu0 %883
      %885 = vrot.lane.b32.xlu0 %v785, 8
      %v886 = vpop.permute.xlu0 %885
      %887 = vrot.lane.b32.xlu0 %v797, 8
      %v888 = vpop.permute.xlu0 %887
      %889 = vrot.lane.b32.xlu0 %v817, 16
      %v890 = vpop.permute.xlu0 %889
      %891 = vrot.lane.b32.xlu0 %v820, 16
      %v892 = vpop.permute.xlu0 %891
      %893 = vrot.lane.b32.xlu0 %v823, 16
      %v894 = vpop.permute.xlu0 %893
      %895 = vrot.lane.b32.xlu0 %v826, 16
      %v896 = vpop.permute.xlu0 %895
      %897 = vrot.lane.b32.xlu0 %v829, 16
      %v898 = vpop.permute.xlu0 %897
      %899 = vrot.lane.b32.xlu0 %v832, 16
      %v900 = vpop.permute.xlu0 %899
      %901 = vrot.lane.b32.xlu0 %v835, 16
      %v902 = vpop.permute.xlu0 %901
      %903 = vrot.lane.b32.xlu0 %v838, 16
      %v904 = vpop.permute.xlu0 %903
      %905 = vrot.lane.b32.xlu0 %v683, 24
      %v906 = vpop.permute.xlu0 %905
      %907 = vrot.lane.b32.xlu0 %v685, 24
      %v908 = vpop.permute.xlu0 %907
      %909 = vrot.lane.b32.xlu0 %v687, 24
      %v910 = vpop.permute.xlu0 %909
      %911 = vrot.lane.b32.xlu0 %v689, 24
      %v912 = vpop.permute.xlu0 %911
      %913 = vrot.lane.b32.xlu0 %v691, 24
      %v914 = vpop.permute.xlu0 %913
      %915 = vrot.lane.b32.xlu0 %v693, 24
      %v916 = vpop.permute.xlu0 %915
      %917 = vrot.lane.b32.xlu0 %v695, 24
      %v918 = vpop.permute.xlu0 %917
      %919 = vrot.lane.b32.xlu0 %v697, 24
      %v920 = vpop.permute.xlu0 %919
      %921 = vrot.lane.b32.xlu0 %v725, 32
      %v922 = vpop.permute.xlu0 %921
      %923 = vrot.lane.b32.xlu0 %v737, 32
      %v924 = vpop.permute.xlu0 %923
      %925 = vrot.lane.b32.xlu0 %v749, 32
      %v926 = vpop.permute.xlu0 %925
      %927 = vrot.lane.b32.xlu0 %v761, 32
      %v928 = vpop.permute.xlu0 %927
      %929 = vrot.lane.b32.xlu0 %v773, 32
      %v930 = vpop.permute.xlu0 %929
      %931 = vrot.lane.b32.xlu0 %v785, 32
      %v932 = vpop.permute.xlu0 %931
      %933 = vrot.lane.b32.xlu0 %v797, 32
      %v934 = vpop.permute.xlu0 %933
      %935 = vrot.lane.b32.xlu0 %v850, 32
      %v936 = vpop.permute.xlu0 %935
      %937 = vrot.lane.b32.xlu0 %v820, 40
      %v938 = vpop.permute.xlu0 %937
      %939 = vrot.lane.b32.xlu0 %v823, 40
      %v940 = vpop.permute.xlu0 %939
      %941 = vrot.lane.b32.xlu0 %v826, 40
      %v942 = vpop.permute.xlu0 %941
      %943 = vrot.lane.b32.xlu0 %v829, 40
      %v944 = vpop.permute.xlu0 %943
      %945 = vrot.lane.b32.xlu0 %v832, 40
      %v946 = vpop.permute.xlu0 %945
      %947 = vrot.lane.b32.xlu0 %v835, 40
      %v948 = vpop.permute.xlu0 %947
      %949 = vrot.lane.b32.xlu0 %v838, 40
      %v950 = vpop.permute.xlu0 %949
      %951 = vrot.lane.b32.xlu0 %v855, 40
      %v952 = vpop.permute.xlu0 %951
      %953 = vrot.lane.b32.xlu0 %v685, 48
      %v954 = vpop.permute.xlu0 %953
      %955 = vrot.lane.b32.xlu0 %v687, 48
      %v956 = vpop.permute.xlu0 %955
      %957 = vrot.lane.b32.xlu0 %v689, 48
      %v958 = vpop.permute.xlu0 %957
      %959 = vrot.lane.b32.xlu0 %v691, 48
      %v960 = vpop.permute.xlu0 %959
      %961 = vrot.lane.b32.xlu0 %v693, 48
      %v962 = vpop.permute.xlu0 %961
      %963 = vrot.lane.b32.xlu0 %v695, 48
      %v964 = vpop.permute.xlu0 %963
      %965 = vrot.lane.b32.xlu0 %v697, 48
      %v966 = vpop.permute.xlu0 %965
      %967 = vrot.lane.b32.xlu0 %v699, 48
      %v968 = vpop.permute.xlu0 %967
      %969 = vrot.lane.b32.xlu0 %v737, 56
      %v970 = vpop.permute.xlu0 %969
      %971 = vrot.lane.b32.xlu0 %v749, 56
      %v972 = vpop.permute.xlu0 %971
      %973 = vrot.lane.b32.xlu0 %v761, 56
      %v974 = vpop.permute.xlu0 %973
      %975 = vrot.lane.b32.xlu0 %v773, 56
      %v976 = vpop.permute.xlu0 %975
      %977 = vrot.lane.b32.xlu0 %v785, 56
      %v978 = vpop.permute.xlu0 %977
      %979 = vrot.lane.b32.xlu0 %v797, 56
      %v980 = vpop.permute.xlu0 %979
      %981 = vrot.lane.b32.xlu0 %v850, 56
      %v982 = vpop.permute.xlu0 %981
      %983 = vrot.lane.b32.xlu0 %v867, 56
      %v984 = vpop.permute.xlu0 %983
      %985 = vrot.lane.b32.xlu0 %v823, 64
      %v986 = vpop.permute.xlu0 %985
      %987 = vrot.lane.b32.xlu0 %v826, 64
      %v988 = vpop.permute.xlu0 %987
      %989 = vrot.lane.b32.xlu0 %v829, 64
      %v990 = vpop.permute.xlu0 %989
      %991 = vrot.lane.b32.xlu0 %v832, 64
      %v992 = vpop.permute.xlu0 %991
      %993 = vrot.lane.b32.xlu0 %v835, 64
      %v994 = vpop.permute.xlu0 %993
      %995 = vrot.lane.b32.xlu0 %v838, 64
      %v996 = vpop.permute.xlu0 %995
      %997 = vrot.lane.b32.xlu0 %v855, 64
      %v998 = vpop.permute.xlu0 %997
      %999 = vrot.lane.b32.xlu0 %v872, 64
      %v1000 = vpop.permute.xlu0 %999
      %vm1001 = vcmask 64512
      %v1003 = vsel %vm1001, %v681, %v874
      %v1005 = vsel %vm1001, %v683, %v876
      %v1007 = vsel %vm1001, %v685, %v878
      %v1009 = vsel %vm1001, %v687, %v880
      %v1011 = vsel %vm1001, %v689, %v882
      %v1013 = vsel %vm1001, %v691, %v884
      %v1015 = vsel %vm1001, %v693, %v886
      %v1017 = vsel %vm1001, %v695, %v888
      %vm1018 = vcmask 130048
      %v1020 = vsel %vm1018, %v1003, %v890
      %v1022 = vsel %vm1018, %v1005, %v892
      %v1024 = vsel %vm1018, %v1007, %v894
      %v1026 = vsel %vm1018, %v1009, %v896
      %v1028 = vsel %vm1018, %v1011, %v898
      %v1030 = vsel %vm1018, %v1013, %v900
      %v1032 = vsel %vm1018, %v1015, %v902
      %v1034 = vsel %vm1018, %v1017, %v904
      %vm1035 = vcmask 195584
      %v1037 = vsel %vm1035, %v1020, %v906
      %v1039 = vsel %vm1035, %v1022, %v908
      %v1041 = vsel %vm1035, %v1024, %v910
      %v1043 = vsel %vm1035, %v1026, %v912
      %v1045 = vsel %vm1035, %v1028, %v914
      %v1047 = vsel %vm1035, %v1030, %v916
      %v1049 = vsel %vm1035, %v1032, %v918
      %v1051 = vsel %vm1035, %v1034, %v920
      %vm1052 = vcmask 261120
      %v1054 = vsel %vm1052, %v1037, %v922
      %v1056 = vsel %vm1052, %v1039, %v924
      %v1058 = vsel %vm1052, %v1041, %v926
      %v1060 = vsel %vm1052, %v1043, %v928
      %v1062 = vsel %vm1052, %v1045, %v930
      %v1064 = vsel %vm1052, %v1047, %v932
      %v1066 = vsel %vm1052, %v1049, %v934
      %v1068 = vsel %vm1052, %v1051, %v936
      %vm1069 = vcmask 326656
      %v1071 = vsel %vm1069, %v1054, %v938
      %v1073 = vsel %vm1069, %v1056, %v940
      %v1075 = vsel %vm1069, %v1058, %v942
      %v1077 = vsel %vm1069, %v1060, %v944
      %v1079 = vsel %vm1069, %v1062, %v946
      %v1081 = vsel %vm1069, %v1064, %v948
      %v1083 = vsel %vm1069, %v1066, %v950
      %v1085 = vsel %vm1069, %v1068, %v952
      %vm1086 = vcmask 392192
      %v1088 = vsel %vm1086, %v1071, %v954
      %v1090 = vsel %vm1086, %v1073, %v956
      %v1092 = vsel %vm1086, %v1075, %v958
      %v1094 = vsel %vm1086, %v1077, %v960
      %v1096 = vsel %vm1086, %v1079, %v962
      %v1098 = vsel %vm1086, %v1081, %v964
      %v1100 = vsel %vm1086, %v1083, %v966
      %v1102 = vsel %vm1086, %v1085, %v968
      %vm1103 = vcmask 457728
      %v1105 = vsel %vm1103, %v1088, %v970
      %v1107 = vsel %vm1103, %v1090, %v972
      %v1109 = vsel %vm1103, %v1092, %v974
      %v1111 = vsel %vm1103, %v1094, %v976
      %v1113 = vsel %vm1103, %v1096, %v978
      %v1115 = vsel %vm1103, %v1098, %v980
      %v1117 = vsel %vm1103, %v1100, %v982
      %v1119 = vsel %vm1103, %v1102, %v984
      %vm1120 = vcmask 523264
      %v1122 = vsel %vm1120, %v1105, %v986
      %v1124 = vsel %vm1120, %v1107, %v988
      %v1126 = vsel %vm1120, %v1109, %v990
      %v1128 = vsel %vm1120, %v1111, %v992
      %v1130 = vsel %vm1120, %v1113, %v994
      %v1132 = vsel %vm1120, %v1115, %v996
      %v1134 = vsel %vm1120, %v1117, %v998
      %v1136 = vsel %vm1120, %v1119, %v1000
      %v1137 = vld [vmem:[%s1] sm:$0xf]
      %v1138 = vld [vmem:[%s1 + $0x4] sm:$0xf]
      %v1139 = vld [vmem:[%s1 + $0x8] sm:$0xf]
      %v1140 = vld [vmem:[%s1 + $0xc] sm:$0xf]
      %v1141 = vld [vmem:[%s1 + $0x10] sm:$0xf]
      %v1142 = vld [vmem:[%s1 + $0x14] sm:$0xf]
      %v1143 = vld [vmem:[%s1 + $0x18] sm:$0xf]
      %v1144 = vld [vmem:[%s1 + $0x1c] sm:$0xf]
      %v1145 = vld [vmem:[%s1 + $0x20] sm:$0xf]
      %v1155 = vunpack.c.l.b16 %v1137
      %v1156 = vunpack.c.l.b16 %v1138
      %v1157 = vunpack.c.l.b16 %v1139
      %v1158 = vunpack.c.l.b16 %v1140
      %v1159 = vunpack.c.l.b16 %v1141
      %v1160 = vunpack.c.l.b16 %v1142
      %v1161 = vunpack.c.l.b16 %v1143
      %v1162 = vunpack.c.l.b16 %v1144
      %v1163 = vunpack.c.l.b16 %v1145
      %v1164 = vpack.c.b16 %v1156, %v1155
      %v1165 = vpack.c.b16 %v1158, %v1157
      %v1166 = vpack.c.b16 %v1160, %v1159
      %v1167 = vpack.c.b16 %v1162, %v1161
      %v1168 = vpack.c.b16 %v1163, %v1163
      %vm1173 = vcmask 588800
      %v1174 = vsel %vm1173, %v1122, 0
      %v1176 = vsel %vm1173, %v1124, 0
      %v1178 = vsel %vm1173, %v1126, 0
      %v1180 = vsel %vm1173, %v1128, 0
      %v1182 = vsel %vm1173, %v1130, 0
      %v1184 = vsel %vm1173, %v1132, 0
      %v1186 = vsel %vm1173, %v1134, 0
      %v1188 = vsel %vm1173, %v1136, 0
      %vm1190 = vcmask 1043456
      %v1192 = vsel %vm1190, %v1168, 0
      %1194 = vmatprep.subr.bf16.mxu0 0
      %1195 = vmatpush1.bf16.msra.mxu0 %v1164
      %1196 = vmatprep.subr.bf16.mxu0 0
      %1197 = vmatpush1.bf16.msra.mxu0 %v1165
      %1198 = vmatprep.subr.bf16.mxu0 0
      %1199 = vmatpush1.bf16.msra.mxu0 %v1166
      %1200 = vmatprep.subr.bf16.mxu0 0
      %1201 = vmatpush1.bf16.msra.mxu0 %v1167
      %1202 = vmatprep.subr.bf16.mxu0 0
      %1203 = vmatpush1.bf16.msra.mxu0 %v1192
      %1204 = vmatprep.subr.bf16.mxu0 0
      %1205 = vmatpush1.bf16.msra.mxu0 0
      %1206 = vmatprep.subr.bf16.mxu0 0
      %1207 = vmatpush1.bf16.msra.mxu0 0
      %1208 = vmatprep.subr.bf16.mxu0 0
      %1209 = vmatpush1.bf16.msra.mxu0 0
      %1210 = vmatprep.subr.bf16.mxu0 0
      %1211 = vmatpush1.bf16.msra.mxu0 0
      %1212 = vmatprep.subr.bf16.mxu0 0
      %1213 = vmatpush1.bf16.msra.mxu0 0
      %1214 = vmatprep.subr.bf16.mxu0 0
      %1215 = vmatpush1.bf16.msra.mxu0 0
      %1216 = vmatprep.subr.bf16.mxu0 0
      %1217 = vmatpush1.bf16.msra.mxu0 0
      %1218 = vmatprep.subr.bf16.mxu0 0
      %1219 = vmatpush1.bf16.msra.mxu0 0
      %1220 = vmatprep.subr.bf16.mxu0 0
      %1221 = vmatpush1.bf16.msra.mxu0 0
      %1222 = vmatprep.subr.bf16.mxu0 0
      %1223 = vmatpush1.bf16.msra.mxu0 0
      %1224 = vmatprep.subr.bf16.mxu0 0
      %1225 = vmatpush1.bf16.msra.mxu0 0
      %1226 = vmatprep.mubr.bf16.mxu0 0
      %1227 = vmatmul.mubr.bf16.gmra.mrb[0].mxu0 %v1174
      %v1228 = vpop.f32.mrb[0].mxu0
      %v1229 = vadd.f32 0.0, %v1228
      %v1230 = vpop.f32.mrb[0].mxu0
      %v1231 = vpop.f32.mrb[0].mxu0
      %v1232 = vadd.f32 0.0, %v1231
      %v1233 = vpop.f32.mrb[0].mxu0
      %1234 = vmatprep.mubr.bf16.mxu0 0
      %1235 = vmatmul.mubr.bf16.gmra.mrb[0].mxu0 %v1176
      %v1236 = vpop.f32.mrb[0].mxu0
      %v1237 = vadd.f32 0.0, %v1236
      %v1238 = vpop.f32.mrb[0].mxu0
      %v1239 = vpop.f32.mrb[0].mxu0
      %v1240 = vadd.f32 0.0, %v1239
      %v1241 = vpop.f32.mrb[0].mxu0
      %1242 = vmatprep.mubr.bf16.mxu0 0
      %1243 = vmatmul.mubr.bf16.gmra.mrb[0].mxu0 %v1178
      %v1244 = vpop.f32.mrb[0].mxu0
      %v1245 = vadd.f32 0.0, %v1244
      %v1246 = vpop.f32.mrb[0].mxu0
      %v1247 = vpop.f32.mrb[0].mxu0
      %v1248 = vadd.f32 0.0, %v1247
      %v1249 = vpop.f32.mrb[0].mxu0
      %1250 = vmatprep.mubr.bf16.mxu0 0
      %1251 = vmatmul.mubr.bf16.gmra.mrb[0].mxu0 %v1180
      %v1252 = vpop.f32.mrb[0].mxu0
      %v1253 = vadd.f32 0.0, %v1252
      %v1254 = vpop.f32.mrb[0].mxu0
      %v1255 = vpop.f32.mrb[0].mxu0
      %v1256 = vadd.f32 0.0, %v1255
      %v1257 = vpop.f32.mrb[0].mxu0
      %1258 = vmatprep.mubr.bf16.mxu0 0
      %1259 = vmatmul.mubr.bf16.gmra.mrb[0].mxu0 %v1182
      %v1260 = vpop.f32.mrb[0].mxu0
      %v1261 = vadd.f32 0.0, %v1260
      %v1262 = vpop.f32.mrb[0].mxu0
      %v1263 = vpop.f32.mrb[0].mxu0
      %v1264 = vadd.f32 0.0, %v1263
      %v1265 = vpop.f32.mrb[0].mxu0
      %1266 = vmatprep.mubr.bf16.mxu0 0
      %1267 = vmatmul.mubr.bf16.gmra.mrb[0].mxu0 %v1184
      %v1268 = vpop.f32.mrb[0].mxu0
      %v1269 = vadd.f32 0.0, %v1268
      %v1270 = vpop.f32.mrb[0].mxu0
      %v1271 = vpop.f32.mrb[0].mxu0
      %v1272 = vadd.f32 0.0, %v1271
      %v1273 = vpop.f32.mrb[0].mxu0
      %1274 = vmatprep.mubr.bf16.mxu0 0
      %1275 = vmatmul.mubr.bf16.gmra.mrb[0].mxu0 %v1186
      %v1276 = vpop.f32.mrb[0].mxu0
      %v1277 = vadd.f32 0.0, %v1276
      %v1278 = vpop.f32.mrb[0].mxu0
      %v1279 = vpop.f32.mrb[0].mxu0
      %v1280 = vadd.f32 0.0, %v1279
      %v1281 = vpop.f32.mrb[0].mxu0
      %1282 = vmatprep.mubr.bf16.mxu0 0
      %1283 = vmatmul.mubr.bf16.gmra.mrb[0].mxu0 %v1188
      %v1284 = vpop.f32.mrb[0].mxu0
      %v1285 = vadd.f32 0.0, %v1284
      %v1286 = vpop.f32.mrb[0].mxu0
      %v1287 = vpop.f32.mrb[0].mxu0
      %v1288 = vadd.f32 0.0, %v1287
      %v1289 = vpop.f32.mrb[0].mxu0
      %1290 = vdwg.mxu0
      %v1291 = vsel %vm1001, %v1229, 0.0
      %v1292 = vsel %vm1001, %v1232, 0.0
      %v1293 = vadd.f32 %v1291, %v1292
      %v1294 = vsel %vm1001, %v1237, 0.0
      %v1295 = vadd.f32 %v1293, %v1294
      %v1296 = vsel %vm1001, %v1240, 0.0
      %v1297 = vadd.f32 %v1295, %v1296
      %v1298 = vsel %vm1001, %v1245, 0.0
      %v1299 = vadd.f32 %v1297, %v1298
      %v1300 = vsel %vm1001, %v1248, 0.0
      %v1301 = vadd.f32 %v1299, %v1300
      %v1302 = vsel %vm1001, %v1253, 0.0
      %v1303 = vadd.f32 %v1301, %v1302
      %v1304 = vsel %vm1001, %v1256, 0.0
      %v1305 = vadd.f32 %v1303, %v1304
      %v1306 = vsel %vm1001, %v1261, 0.0
      %v1307 = vadd.f32 %v1305, %v1306
      %v1308 = vsel %vm1001, %v1264, 0.0
      %v1309 = vadd.f32 %v1307, %v1308
      %v1310 = vsel %vm1001, %v1269, 0.0
      %v1311 = vadd.f32 %v1309, %v1310
      %v1312 = vsel %vm1001, %v1272, 0.0
      %v1313 = vadd.f32 %v1311, %v1312
      %v1314 = vsel %vm1001, %v1277, 0.0
      %v1315 = vadd.f32 %v1313, %v1314
      %v1316 = vsel %vm1001, %v1280, 0.0
      %v1317 = vadd.f32 %v1315, %v1316
      %v1318 = vsel %vm1001, %v1285, 0.0
      %v1319 = vadd.f32 %v1317, %v1318
      %v1320 = vsel %vm1001, %v1288, 0.0
      %v1321 = vadd.f32 %v1319, %v1320
      %v1322 = vrot.slane %v1321, 4
      %v1323 = vadd.f32 %v1321, %v1322
      %v1324 = vrot.slane %v1323, 2
      %v1325 = vadd.f32 %v1323, %v1324
      %v1326 = vrot.slane %v1325, 1
      %v1327 = vadd.f32 %v1325, %v1326
      %v1328 = vrcp.pop 128.0
      %v1329 = vmul.f32 %v1327, %v1328
      %v1330 = vsub.f32 %v1229, %v1329
      %v1331 = vsub.f32 %v1232, %v1329
      %v1332 = vsub.f32 %v1237, %v1329
      %v1333 = vsub.f32 %v1240, %v1329
      %v1334 = vsub.f32 %v1245, %v1329
      %v1335 = vsub.f32 %v1248, %v1329
      %v1336 = vsub.f32 %v1253, %v1329
      %v1337 = vsub.f32 %v1256, %v1329
      %v1338 = vsub.f32 %v1261, %v1329
      %v1339 = vsub.f32 %v1264, %v1329
      %v1340 = vsub.f32 %v1269, %v1329
      %v1341 = vsub.f32 %v1272, %v1329
      %v1342 = vsub.f32 %v1277, %v1329
      %v1343 = vsub.f32 %v1280, %v1329
      %v1344 = vsub.f32 %v1285, %v1329
      %v1345 = vsub.f32 %v1288, %v1329
      %v1346 = vmul.f32 %v1330, %v1330
      %v1347 = vmul.f32 %v1331, %v1331
      %v1348 = vmul.f32 %v1332, %v1332
      %v1349 = vmul.f32 %v1333, %v1333
      %v1350 = vmul.f32 %v1334, %v1334
      %v1351 = vmul.f32 %v1335, %v1335
      %v1352 = vmul.f32 %v1336, %v1336
      %v1353 = vmul.f32 %v1337, %v1337
      %v1354 = vmul.f32 %v1338, %v1338
      %v1355 = vmul.f32 %v1339, %v1339
      %v1356 = vmul.f32 %v1340, %v1340
      %v1357 = vmul.f32 %v1341, %v1341
      %v1358 = vmul.f32 %v1342, %v1342
      %v1359 = vmul.f32 %v1343, %v1343
      %v1360 = vmul.f32 %v1344, %v1344
      %v1361 = vmul.f32 %v1345, %v1345
      %v1362 = vsel %vm1001, %v1346, 0.0
      %v1363 = vsel %vm1001, %v1347, 0.0
      %v1364 = vadd.f32 %v1362, %v1363
      %v1365 = vsel %vm1001, %v1348, 0.0
      %v1366 = vadd.f32 %v1364, %v1365
      %v1367 = vsel %vm1001, %v1349, 0.0
      %v1368 = vadd.f32 %v1366, %v1367
      %v1369 = vsel %vm1001, %v1350, 0.0
      %v1370 = vadd.f32 %v1368, %v1369
      %v1371 = vsel %vm1001, %v1351, 0.0
      %v1372 = vadd.f32 %v1370, %v1371
      %v1373 = vsel %vm1001, %v1352, 0.0
      %v1374 = vadd.f32 %v1372, %v1373
      %v1375 = vsel %vm1001, %v1353, 0.0
      %v1376 = vadd.f32 %v1374, %v1375
      %v1377 = vsel %vm1001, %v1354, 0.0
      %v1378 = vadd.f32 %v1376, %v1377
      %v1379 = vsel %vm1001, %v1355, 0.0
      %v1380 = vadd.f32 %v1378, %v1379
      %v1381 = vsel %vm1001, %v1356, 0.0
      %v1382 = vadd.f32 %v1380, %v1381
      %v1383 = vsel %vm1001, %v1357, 0.0
      %v1384 = vadd.f32 %v1382, %v1383
      %v1385 = vsel %vm1001, %v1358, 0.0
      %v1386 = vadd.f32 %v1384, %v1385
      %v1387 = vsel %vm1001, %v1359, 0.0
      %v1388 = vadd.f32 %v1386, %v1387
      %v1389 = vsel %vm1001, %v1360, 0.0
      %v1390 = vadd.f32 %v1388, %v1389
      %v1391 = vsel %vm1001, %v1361, 0.0
      %v1392 = vadd.f32 %v1390, %v1391
      %v1393 = vrot.slane %v1392, 4
      %v1394 = vadd.f32 %v1392, %v1393
      %v1395 = vrot.slane %v1394, 2
      %v1396 = vadd.f32 %v1394, %v1395
      %v1397 = vrot.slane %v1396, 1
      %v1398 = vadd.f32 %v1396, %v1397
      %vm1399 = vcmask 1040384
      %v1400 = vsel %vm1399, %v1327, %v1398
      %vm1401 = vcmask 1041408
      %v1402 = vsel %vm1401, %v1400, 0.0
      %1403 = vst.msk [vmem:[%s281] sm:$0xff] %vm1001, %v1402
      %v1404 = vpack.c.bf16 %v1232, %v1229
      %v1405 = vpack.c.bf16 %v1240, %v1237
      %v1406 = vpack.c.bf16 %v1248, %v1245
      %v1407 = vpack.c.bf16 %v1256, %v1253
      %v1408 = vpack.c.bf16 %v1264, %v1261
      %v1409 = vpack.c.bf16 %v1272, %v1269
      %v1410 = vpack.c.bf16 %v1280, %v1277
      %v1411 = vpack.c.bf16 %v1288, %v1285
      %v1420 = vunpack.c.l.b16 %v1404
      %v1421 = vunpack.c.h.b16 %v1404
      %v1422 = vunpack.c.l.b16 %v1405
      %v1423 = vunpack.c.h.b16 %v1405
      %v1424 = vunpack.c.l.b16 %v1406
      %v1425 = vunpack.c.h.b16 %v1406
      %v1426 = vunpack.c.l.b16 %v1407
      %v1427 = vunpack.c.h.b16 %v1407
      %v1428 = vunpack.c.l.b16 %v1408
      %v1429 = vunpack.c.h.b16 %v1408
      %v1430 = vunpack.c.l.b16 %v1409
      %v1431 = vunpack.c.h.b16 %v1409
      %v1432 = vunpack.c.l.b16 %v1410
      %v1433 = vunpack.c.h.b16 %v1410
      %v1434 = vunpack.c.l.b16 %v1411
      %v1435 = vunpack.c.h.b16 %v1411
      %v1436 = vpack.c.b16 %v1420, %v1420
      %v1437 = vpack.c.b16 %v1421, %v1421
      %v1438 = vpack.c.b16 %v1422, %v1422
      %v1439 = vpack.c.b16 %v1423, %v1423
      %v1440 = vpack.c.b16 %v1424, %v1424
      %v1441 = vpack.c.b16 %v1425, %v1425
      %v1442 = vpack.c.b16 %v1426, %v1426
      %v1443 = vpack.c.b16 %v1427, %v1427
      %v1444 = vpack.c.b16 %v1428, %v1428
      %v1445 = vpack.c.b16 %v1429, %v1429
      %v1446 = vpack.c.b16 %v1430, %v1430
      %v1447 = vpack.c.b16 %v1431, %v1431
      %v1448 = vpack.c.b16 %v1432, %v1432
      %v1449 = vpack.c.b16 %v1433, %v1433
      %v1450 = vpack.c.b16 %v1434, %v1434
      %v1451 = vpack.c.b16 %v1435, %v1435
      %vm1468 = vcmask 60416
      %1469 = vst.msk [vmem:[%s273] sm:$0xf] %vm1468, %v1436
      %1470 = vst.msk [vmem:[%s273 + $0x4] sm:$0xf] %vm1468, %v1437
      %1471 = vst.msk [vmem:[%s273 + $0x8] sm:$0xf] %vm1468, %v1438
      %1472 = vst.msk [vmem:[%s273 + $0xc] sm:$0xf] %vm1468, %v1439
      %1473 = vst.msk [vmem:[%s273 + $0x10] sm:$0xf] %vm1468, %v1440
      %1474 = vst.msk [vmem:[%s273 + $0x14] sm:$0xf] %vm1468, %v1441
      %1475 = vst.msk [vmem:[%s273 + $0x18] sm:$0xf] %vm1468, %v1442
      %1476 = vst.msk [vmem:[%s273 + $0x1c] sm:$0xf] %vm1468, %v1443
      %1477 = vst.msk [vmem:[%s273 + $0x20] sm:$0xf] %vm1468, %v1444
      %1478 = vst.msk [vmem:[%s273 + $0x24] sm:$0xf] %vm1468, %v1445
      %1479 = vst.msk [vmem:[%s273 + $0x28] sm:$0xf] %vm1468, %v1446
      %1480 = vst.msk [vmem:[%s273 + $0x2c] sm:$0xf] %vm1468, %v1447
      %1481 = vst.msk [vmem:[%s273 + $0x30] sm:$0xf] %vm1468, %v1448
      %1482 = vst.msk [vmem:[%s273 + $0x34] sm:$0xf] %vm1468, %v1449
      %1483 = vst.msk [vmem:[%s273 + $0x38] sm:$0xf] %vm1468, %v1450
      %1484 = vst.msk [vmem:[%s273 + $0x3c] sm:$0xf] %vm1468, %v1451
      %p1485 = scmp.lt.s32.totalorder %s21, 1
      %s1486 = scalar_select %p1485, %s21, 1
      %p1487 = scmp.lt.s32.totalorder %s22, 1
      %s1488 = scalar_select %p1487, %s22, 1
      %s1489 = smul.addr %s1488, 16
      %s1490 = smul.addr %s1486, 32
      %s1491 = sadd.s32 %s1489, %s1490
      %s1492 = smul.addr %s1491, 4
      %s1493 = scalar_lea.vmem %s4, %s1492
      %p1494 = scmp.lt.s32.totalorder %s21, 1
      %s1495 = scalar_select %p1494, %s21, 1
      %p1496 = scmp.lt.s32.totalorder %s22, 1
      %s1497 = scalar_select %p1496, %s22, 1
      %s1498 = smul.addr %s1495, 2
      %s1499 = sadd.s32 %s1497, %s1498
      %s1500 = smul.addr %s1499, 8
      %s1501 = scalar_lea.vmem %s5, %s1500
      // Predicated region
      $region37: #{double_conv.4} parent=35 // pred_check
        %p1502 = pneg %p140
      $region38: #{double_conv.4} parent=35 // pred_check_branch
        %1504 = sbr.rel (%p1502) target = $region40
      $region39: #{double_conv.4} parent=35 // pred_region
        _
      $region40: #{double_conv.4} parent=35 // pred_fallthru
        _
      // Predicated region
      $region41: #{double_conv.4} parent=35 // pred_check
        %p1505 = pneg %p168
      $region42: #{double_conv.4} parent=35 // pred_check_branch
        %1507 = sbr.rel (%p1505) target = $region44
      $region43: #{double_conv.4} parent=35 // pred_region
        _
      $region44: #{double_conv.4} parent=35 // pred_fallthru
        _
    $region36: #{double_conv.4} parent=5 // pred_fallthru
      _
    %p1508 = scmp.le.s32.totalorder 2, %s12
    // Predicated region
    $region45: #{double_conv.4} parent=5 // pred_check
      %p1509 = pneg %p1508
    $region46: #{double_conv.4} parent=5 // pred_check_branch
      %1511 = sbr.rel (%p1509) target = $region48
    $region47: #{double_conv.4} parent=5 // pred_region
      %s1512 = ssub.s32 %s12, 2
      // Predicated region
      $region49: #{double_conv.4} parent=47 // pred_check
        %p1513 = pneg %p146
      $region50: #{double_conv.4} parent=47 // pred_check_branch
        %1515 = sbr.rel (%p1513) target = $region52
      $region51: #{double_conv.4} parent=47 // pred_region
        %p1516 = scmp.lt.s32.totalorder %s23, 1
        %s1517 = scalar_select %p1516, %s23, 1
        %p1518 = scmp.lt.s32.totalorder %s24, 1
        %s1519 = scalar_select %p1518, %s24, 1
        %s1520 = smul.addr %s1519, 16
        %s1521 = smul.addr %s1517, 32
        %s1522 = sadd.s32 %s1520, %s1521
        %s1523 = smul.addr %s1522, 4
        %s1524 = scalar_lea.vmem %s4, %s1523
      $region52: #{double_conv.4} parent=47 // pred_fallthru
        _
      // Predicated region
      $region53: #{double_conv.4} parent=47 // pred_check
        %p1525 = pneg %p174
      $region54: #{double_conv.4} parent=47 // pred_check_branch
        %1527 = sbr.rel (%p1525) target = $region56
      $region55: #{double_conv.4} parent=47 // pred_region
        %p1528 = scmp.lt.s32.totalorder %s23, 1
        %s1529 = scalar_select %p1528, %s23, 1
        %p1530 = scmp.lt.s32.totalorder %s24, 1
        %s1531 = scalar_select %p1530, %s24, 1
        %s1532 = smul.addr %s1529, 2
        %s1533 = sadd.s32 %s1531, %s1532
        %s1534 = smul.addr %s1533, 8
        %s1535 = scalar_lea.vmem %s5, %s1534
      $region56: #{double_conv.4} parent=47 // pred_fallthru
        _
    $region48: #{double_conv.4} parent=5 // pred_fallthru
      _
  $region6: #{double_conv.4} parent=0 // loop_footer
    %s16 = sadd.s32 1, %s12
  $region7: #{double_conv.4} parent=0 // loop_footer_branch
    %11 = sbr.rel target = $region3
  $region8: #{double_conv.4} parent=0 // loop_exit
    _

// kernel: double_conv.3
$region0: #{double_conv.3}
  #allocation0 [shape = 'u32[]', space=smem, size = 0x4, offset = 0x4, fixed_abs, tag = 'smem constant byte address 0x4 - core index']
  #allocation1 [shape = 'u32[144,128]{1,0:T(1,128)}', space=vmem, size = 0x12000, scoped, tag = 'internal scratch']
  %s0 = inlined_call_operand.vmem [shape: bf16[2,2,12,18,4], index: 0, kind: input, shape index: {}]
  %s1 = inlined_call_operand.vmem [shape: bf16[36,8], index: 1, kind: input, shape index: {}]
  %s2 = inlined_call_operand.vmem [shape: bf16[2,2,10,18,8], index: 2, kind: output, shape index: {0}]
  %s3 = inlined_call_operand.vmem [shape: f32[2,2,8,8], index: 3, kind: output, shape index: {1}]
  %4 = xla_tuple %s2, %s3
  %s5 = sld [smem:[#allocation0]]
  $region49: #{double_conv.3} parent=0
    _
  %s7 = ssub.s32 1, %s5
  %s8 = scalar_select 0, %s7, %s5
  loop: start=0, step=1, limit=6
  $region2: #{double_conv.3} parent=0 // loop_pre_header
    _
  $region3: #{double_conv.3} parent=0 // loop_header
    %s10 = sphi 0, %s14
    %p11 = scmp.ge.s32.totalorder %s10, 6
    %s17 = sphi 0, %s29
    %s18 = sphi 0, %s25
    %s19 = sphi 0, %s17
    %s20 = sphi 0, %s18
    %s21 = sphi 0, %s19
    %s22 = sphi 0, %s20
    %s34 = sphi 0, %s36
    %s37 = sphi 0, %s34
    %s38 = sphi 0, %s37
    %s54 = sphi 0, %s38
    %s58 = sphi 0, %s58
    %s60 = sphi 0, %s58
    %s61 = sphi 0, %s60
    %s75 = sphi 0, %s61
    %s83 = sphi 0, %s85
    %s86 = sphi 0, %s83
    %s87 = sphi 0, %s86
    %s103 = sphi 0, %s87
    %s111 = sphi 0, %s113
    %s114 = sphi 0, %s111
    %s115 = sphi 0, %s114
    %s131 = sphi 0, %s115
  $region4: #{double_conv.3} parent=0 // loop_header_branch
    %13 = sbr.rel (%p11) target = $region8
  $region5: #{double_conv.3} parent=0 // loop_body
    %s15 = ssub.s32 %s10, 1
    %s16 = ssub.s32 %s10, 2
    %s23 = sadd.s32 1, %s18
    %p24 = scmp.ge.s32.totalorder %s23, 2
    %s25 = scalar_select %p24, 0, %s23
    %s26 = sadd.s32 1, %s17
    %s27 = scalar_select %p24, %s26, %s17
    %p28 = scmp.ge.s32.totalorder %s27, 2
    %s29 = scalar_select %p28, 0, %s27
    %s30 = ssub.s32 %s17, %s29
    %s31 = ssub.s32 %s18, %s25
    %s32 = sor.u32 %s30, %s31
    %p33 = scmp.eq.s32.totalorder %s32, 0
    %s35 = sadd.s32 %s34, 1
    %s36 = scalar_select %p33, %s34, %s35
    %p39 = pneg %p33
    %p40 = scmp.eq.s32.totalorder %s10, 3
    %p41 = por %p39, %p40
    %p42 = scmp.ne.s32.totalorder %s34, %s37
    %p43 = scmp.eq.s32.totalorder %s10, 0
    %p44 = por %p42, %p43
    %p45 = scmp.ne.s32.totalorder %s34, %s37
    %p46 = scmp.eq.s32.totalorder %s15, 3
    %p47 = por %p45, %p46
    %p48 = scmp.ne.s32.totalorder %s37, %s38
    %p49 = scmp.eq.s32.totalorder %s15, 0
    %p50 = por %p48, %p49
    %p51 = scmp.ne.s32.totalorder %s37, %s38
    %p52 = scmp.eq.s32.totalorder %s16, 3
    %p53 = por %p51, %p52
    %p55 = scmp.ne.s32.totalorder %s38, %s54
    %p56 = scmp.eq.s32.totalorder %s16, 0
    %p57 = por %p55, %p56
    %s59 = sadd.s32 %s58, 1
    %p62 = scmp.eq.s32.totalorder %s10, 3
    %p63 = scmp.ne.s32.totalorder %s58, %s60
    %p64 = scmp.eq.s32.totalorder %s10, 0
    %p65 = por %p63, %p64
    %p66 = scmp.ne.s32.totalorder %s58, %s60
    %p67 = scmp.eq.s32.totalorder %s15, 3
    %p68 = por %p66, %p67
    %p69 = scmp.ne.s32.totalorder %s60, %s61
    %p70 = scmp.eq.s32.totalorder %s15, 0
    %p71 = por %p69, %p70
    %p72 = scmp.ne.s32.totalorder %s60, %s61
    %p73 = scmp.eq.s32.totalorder %s16, 3
    %p74 = por %p72, %p73
    %p76 = scmp.ne.s32.totalorder %s61, %s75
    %p77 = scmp.eq.s32.totalorder %s16, 0
    %p78 = por %p76, %p77
    %s79 = ssub.s32 %s17, %s29
    %s80 = ssub.s32 %s18, %s25
    %s81 = sor.u32 %s79, %s80
    %p82 = scmp.eq.s32.totalorder %s81, 0
    %s84 = sadd.s32 %s83, 1
    %s85 = scalar_select %p82, %s83, %s84
    %p88 = pneg %p82
    %p89 = scmp.eq.s32.totalorder %s10, 3
    %p90 = por %p88, %p89
    %p91 = scmp.ne.s32.totalorder %s83, %s86
    %p92 = scmp.eq.s32.totalorder %s10, 0
    %p93 = por %p91, %p92
    %p94 = scmp.ne.s32.totalorder %s83, %s86
    %p95 = scmp.eq.s32.totalorder %s15, 3
    %p96 = por %p94, %p95
    %p97 = scmp.ne.s32.totalorder %s86, %s87
    %p98 = scmp.eq.s32.totalorder %s15, 0
    %p99 = por %p97, %p98
    %p100 = scmp.ne.s32.totalorder %s86, %s87
    %p101 = scmp.eq.s32.totalorder %s16, 3
    %p102 = por %p100, %p101
    %p104 = scmp.ne.s32.totalorder %s87, %s103
    %p105 = scmp.eq.s32.totalorder %s16, 0
    %p106 = por %p104, %p105
    %s107 = ssub.s32 %s17, %s29
    %s108 = ssub.s32 %s18, %s25
    %s109 = sor.u32 %s107, %s108
    %p110 = scmp.eq.s32.totalorder %s109, 0
    %s112 = sadd.s32 %s111, 1
    %s113 = scalar_select %p110, %s111, %s112
    %p116 = pneg %p110
    %p117 = scmp.eq.s32.totalorder %s10, 3
    %p118 = por %p116, %p117
    %p119 = scmp.ne.s32.totalorder %s111, %s114
    %p120 = scmp.eq.s32.totalorder %s10, 0
    %p121 = por %p119, %p120
    %p122 = scmp.ne.s32.totalorder %s111, %s114
    %p123 = scmp.eq.s32.totalorder %s15, 3
    %p124 = por %p122, %p123
    %p125 = scmp.ne.s32.totalorder %s114, %s115
    %p126 = scmp.eq.s32.totalorder %s15, 0
    %p127 = por %p125, %p126
    %p128 = scmp.ne.s32.totalorder %s114, %s115
    %p129 = scmp.eq.s32.totalorder %s16, 3
    %p130 = por %p128, %p129
    %p132 = scmp.ne.s32.totalorder %s115, %s131
    %p133 = scmp.eq.s32.totalorder %s16, 0
    %p134 = por %p132, %p133
    %p135 = scmp.le.s32.totalorder 1, %s10
    %p136 = scmp.lt.s32.totalorder %s10, 5
    %p137 = pnand %p135, %p136
    %p138 = pneg %p137
    // Predicated region
    $region9: #{double_conv.3} parent=5 // pred_check
      _
    $region10: #{double_conv.3} parent=5 // pred_check_branch
      %140 = sbr.rel (%p137) target = $region12
    $region11: #{double_conv.3} parent=5 // pred_region
      %s141 = ssub.s32 %s10, 1
      // Predicated region
      $region13: #{double_conv.3} parent=11 // pred_check
        %p142 = pneg %p71
      $region14: #{double_conv.3} parent=11 // pred_check_branch
        %144 = sbr.rel (%p142) target = $region16
      $region15: #{double_conv.3} parent=11 // pred_region
        _
      $region16: #{double_conv.3} parent=11 // pred_fallthru
        _
    $region12: #{double_conv.3} parent=5 // pred_fallthru
      _
    %p145 = scmp.lt.s32.totalorder %s10, 4
    // Predicated region
    $region17: #{double_conv.3} parent=5 // pred_check
      %p146 = pneg %p145
    $region18: #{double_conv.3} parent=5 // pred_check_branch
      %148 = sbr.rel (%p146) target = $region20
    $region19: #{double_conv.3} parent=5 // pred_region
      // Predicated region
      $region21: #{double_conv.3} parent=19 // pred_check
        %p149 = pneg %p44
      $region22: #{double_conv.3} parent=19 // pred_check_branch
        %151 = sbr.rel (%p149) target = $region24
      $region23: #{double_conv.3} parent=19 // pred_region
        %p152 = scmp.lt.s32.totalorder %s17, 1
        %s153 = scalar_select %p152, %s17, 1
        %p154 = scmp.lt.s32.totalorder %s18, 1
        %s155 = scalar_select %p154, %s18, 1
        %s156 = smul.addr %s155, 36
        %s157 = smul.addr %s153, 72
        %s158 = sadd.s32 %s156, %s157
        %s159 = smul.addr %s158, 4
        %s160 = scalar_lea.vmem %s0, %s159
      $region24: #{double_conv.3} parent=19 // pred_fallthru
        _
    $region20: #{double_conv.3} parent=5 // pred_fallthru
      _
    %p161 = scmp.le.s32.totalorder 1, %s10
    %p162 = scmp.lt.s32.totalorder %s10, 5
    %p163 = pnand %p161, %p162
    %p164 = pneg %p163
    // Predicated region
    $region25: #{double_conv.3} parent=5 // pred_check
      _
    $region26: #{double_conv.3} parent=5 // pred_check_branch
      %166 = sbr.rel (%p163) target = $region28
    $region27: #{double_conv.3} parent=5 // pred_region
      %s167 = ssub.s32 %s10, 1
      %p168 = scmp.lt.s32.totalorder %s19, 1
      %s169 = scalar_select %p168, %s19, 1
      %p170 = scmp.lt.s32.totalorder %s20, 1
      %s171 = scalar_select %p170, %s20, 1
      %s172 = smul.addr %s171, 36
      %s173 = smul.addr %s169, 72
      %s174 = sadd.s32 %s172, %s173
      %s175 = smul.addr %s174, 4
      %s176 = scalar_lea.vmem %s0, %s175
      %p177 = pneg %p50
      %p178 = pneg %p47
      %p179 = pneg %p71
      %p180 = pneg %p68
      %p181 = pneg %p99
      %p182 = pneg %p96
      %p183 = scmp.lt.s32.totalorder %s19, 1
      %s184 = scalar_select %p183, %s19, 1
      %p185 = scmp.lt.s32.totalorder %s20, 1
      %s186 = scalar_select %p185, %s20, 1
      %s187 = smul.addr %s186, 30
      %s188 = smul.addr %s184, 60
      %s189 = sadd.s32 %s187, %s188
      %s190 = smul.addr %s189, 4
      %s191 = scalar_lea.vmem %s2, %s190
      %p192 = pneg %p127
      %p193 = pneg %p124
      %p194 = scmp.lt.s32.totalorder %s19, 1
      %s195 = scalar_select %p194, %s19, 1
      %p196 = scmp.lt.s32.totalorder %s20, 1
      %s197 = scalar_select %p196, %s20, 1
      %s198 = smul.addr %s195, 2
      %s199 = sadd.s32 %s197, %s198
      %s200 = smul.addr %s199, 8
      %s201 = scalar_lea.vmem %s3, %s200
      %p202 = scmp.lt.s32.totalorder %s19, 1
      %s203 = scalar_select %p202, %s19, 1
      %p204 = scmp.lt.s32.totalorder %s20, 1
      %s205 = scalar_select %p204, %s20, 1
      %s206 = smul.addr %s205, 36
      %s207 = smul.addr %s203, 72
      %s208 = sadd.s32 %s206, %s207
      %s209 = smul.addr %s208, 4
      %s210 = scalar_lea.vmem %s0, %s209
      %p211 = scmp.lt.s32.totalorder %s19, 1
      %s212 = scalar_select %p211, %s19, 1
      %p213 = scmp.lt.s32.totalorder %s20, 1
      %s214 = scalar_select %p213, %s20, 1
      %s215 = smul.addr %s214, 30
      %s216 = smul.addr %s212, 60
      %s217 = sadd.s32 %s215, %s216
      %s218 = smul.addr %s217, 4
      %s219 = scalar_lea.vmem %s2, %s218
      %p220 = scmp.lt.s32.totalorder %s19, 1
      %s221 = scalar_select %p220, %s19, 1
      %p222 = scmp.lt.s32.totalorder %s20, 1
      %s223 = scalar_select %p222, %s20, 1
      %s224 = smul.addr %s221, 2
      %s225 = sadd.s32 %s223, %s224
      %s226 = smul.addr %s225, 8
      %s227 = scalar_lea.vmem %s3, %s226
      %v229 = vld [vmem:[%s210] sm:$0xf]
      %v230 = vld [vmem:[%s210 + $0x4] sm:$0xf]
      %v231 = vld [vmem:[%s210 + $0x8] sm:$0x1]
      %v232 = vld [vmem:[%s210 + $0xc] sm:$0xf]
      %v233 = vld [vmem:[%s210 + $0x10] sm:$0xf]
      %v234 = vld [vmem:[%s210 + $0x14] sm:$0x1]
      %v235 = vld [vmem:[%s210 + $0x18] sm:$0xf]
      %v236 = vld [vmem:[%s210 + $0x1c] sm:$0xf]
      %v237 = vld [vmem:[%s210 + $0x20] sm:$0x1]
      %v238 = vld [vmem:[%s210 + $0x24] sm:$0xf]
      %v239 = vld [vmem:[%s210 + $0x28] sm:$0xf]
      %v240 = vld [vmem:[%s210 + $0x2c] sm:$0x1]
      %v241 = vld [vmem:[%s210 + $0x30] sm:$0xf]
      %v242 = vld [vmem:[%s210 + $0x34] sm:$0xf]
      %v243 = vld [vmem:[%s210 + $0x38] sm:$0x1]
      %v244 = vld [vmem:[%s210 + $0x3c] sm:$0xf]
      %v245 = vld [vmem:[%s210 + $0x40] sm:$0xf]
      %v246 = vld [vmem:[%s210 + $0x44] sm:$0x1]
      %v247 = vld [vmem:[%s210 + $0x48] sm:$0xf]
      %v248 = vld [vmem:[%s210 + $0x4c] sm:$0xf]
      %v249 = vld [vmem:[%s210 + $0x50] sm:$0x1]
      %v250 = vld [vmem:[%s210 + $0x54] sm:$0xf]
      %v251 = vld [vmem:[%s210 + $0x58] sm:$0xf]
      %v252 = vld [vmem:[%s210 + $0x5c] sm:$0x1]
      %v253 = vld [vmem:[%s210 + $0x60] sm:$0xf]
      %v254 = vld [vmem:[%s210 + $0x64] sm:$0xf]
      %v255 = vld [vmem:[%s210 + $0x68] sm:$0x1]
      %v256 = vld [vmem:[%s210 + $0x6c] sm:$0xf]
      %v257 = vld [vmem:[%s210 + $0x70] sm:$0xf]
      %v258 = vld [vmem:[%s210 + $0x74] sm:$0x1]
      %v259 = vld [vmem:[%s210 + $0x78] sm:$0xf]
      %v260 = vld [vmem:[%s210 + $0x7c] sm:$0xf]
      %v261 = vld [vmem:[%s210 + $0x80] sm:$0x1]
      %v262 = vld [vmem:[%s210 + $0x84] sm:$0xf]
      %v263 = vld [vmem:[%s210 + $0x88] sm:$0xf]
      %v264 = vld [vmem:[%s210 + $0x8c] sm:$0x1]
      %vm265 = vsmask.f32 3328
      %vm266 = vsmask.f32 7440
      %vm267 = vmor %vm265, %vm266
      %v269 = vshrl.u32 %v229, 16
      %v271 = vrot.slane %v269, 4
      %v272 = vshll.u32 %v229, 16
      %v274 = vrot.slane %v272, 5
      %v275 = vor.u32 %v271, %v274
      %v276 = vrot.slane %v275, 4
      %v278 = vshll.u32 %v230, 16
      %v280 = vrot.slane %v278, 5
      %v281 = vsel %vm267, %v276, %v280
      %v282 = vshrl.u32 %v230, 16
      %v284 = vrot.slane %v282, 4
      %v285 = vor.u32 %v284, %v280
      %v286 = vrot.slane %v285, 4
      %v288 = vshll.u32 %v231, 16
      %v290 = vrot.slane %v288, 5
      %v291 = vsel %vm267, %v286, %v290
      %v293 = vshrl.u32 %v232, 16
      %v295 = vrot.slane %v293, 4
      %v296 = vshll.u32 %v232, 16
      %v298 = vrot.slane %v296, 5
      %v299 = vor.u32 %v295, %v298
      %v300 = vrot.slane %v299, 4
      %v302 = vshll.u32 %v233, 16
      %v304 = vrot.slane %v302, 5
      %v305 = vsel %vm267, %v300, %v304
      %v306 = vshrl.u32 %v233, 16
      %v308 = vrot.slane %v306, 4
      %v309 = vor.u32 %v308, %v304
      %v310 = vrot.slane %v309, 4
      %v312 = vshll.u32 %v234, 16
      %v314 = vrot.slane %v312, 5
      %v315 = vsel %vm267, %v310, %v314
      %v317 = vshrl.u32 %v235, 16
      %v319 = vrot.slane %v317, 4
      %v320 = vshll.u32 %v235, 16
      %v322 = vrot.slane %v320, 5
      %v323 = vor.u32 %v319, %v322
      %v324 = vrot.slane %v323, 4
      %v326 = vshll.u32 %v236, 16
      %v328 = vrot.slane %v326, 5
      %v329 = vsel %vm267, %v324, %v328
      %v330 = vshrl.u32 %v236, 16
      %v332 = vrot.slane %v330, 4
      %v333 = vor.u32 %v332, %v328
      %v334 = vrot.slane %v333, 4
      %v336 = vshll.u32 %v237, 16
      %v338 = vrot.slane %v336, 5
      %v339 = vsel %vm267, %v334, %v338
      %v341 = vshrl.u32 %v238, 16
      %v343 = vrot.slane %v341, 4
      %v344 = vshll.u32 %v238, 16
      %v346 = vrot.slane %v344, 5
      %v347 = vor.u32 %v343, %v346
      %v348 = vrot.slane %v347, 4
      %v350 = vshll.u32 %v239, 16
      %v352 = vrot.slane %v350, 5
      %v353 = vsel %vm267, %v348, %v352
      %v354 = vshrl.u32 %v239, 16
      %v356 = vrot.slane %v354, 4
      %v357 = vor.u32 %v356, %v352
      %v358 = vrot.slane %v357, 4
      %v360 = vshll.u32 %v240, 16
      %v362 = vrot.slane %v360, 5
      %v363 = vsel %vm267, %v358, %v362
      %v365 = vshrl.u32 %v241, 16
      %v367 = vrot.slane %v365, 4
      %v368 = vshll.u32 %v241, 16
      %v370 = vrot.slane %v368, 5
      %v371 = vor.u32 %v367, %v370
      %v372 = vrot.slane %v371, 4
      %v374 = vshll.u32 %v242, 16
      %v376 = vrot.slane %v374, 5
      %v377 = vsel %vm267, %v372, %v376
      %v378 = vshrl.u32 %v242, 16
      %v380 = vrot.slane %v378, 4
      %v381 = vor.u32 %v380, %v376
      %v382 = vrot.slane %v381, 4
      %v384 = vshll.u32 %v243, 16
      %v386 = vrot.slane %v384, 5
      %v387 = vsel %vm267, %v382, %v386
      %v389 = vshrl.u32 %v244, 16
      %v391 = vrot.slane %v389, 4
      %v392 = vshll.u32 %v244, 16
      %v394 = vrot.slane %v392, 5
      %v395 = vor.u32 %v391, %v394
      %v396 = vrot.slane %v395, 4
      %v398 = vshll.u32 %v245, 16
      %v400 = vrot.slane %v398, 5
      %v401 = vsel %vm267, %v396, %v400
      %v402 = vshrl.u32 %v245, 16
      %v404 = vrot.slane %v402, 4
      %v405 = vor.u32 %v404, %v400
      %v406 = vrot.slane %v405, 4
      %v408 = vshll.u32 %v246, 16
      %v410 = vrot.slane %v408, 5
      %v411 = vsel %vm267, %v406, %v410
      %v413 = vshrl.u32 %v247, 16
      %v415 = vrot.slane %v413, 4
      %v416 = vshll.u32 %v247, 16
      %v418 = vrot.slane %v416, 5
      %v419 = vor.u32 %v415, %v418
      %v420 = vrot.slane %v419, 4
      %v422 = vshll.u32 %v248, 16
      %v424 = vrot.slane %v422, 5
      %v425 = vsel %vm267, %v420, %v424
      %v426 = vshrl.u32 %v248, 16
      %v428 = vrot.slane %v426, 4
      %v429 = vor.u32 %v428, %v424
      %v430 = vrot.slane %v429, 4
      %v432 = vshll.u32 %v249, 16
      %v434 = vrot.slane %v432, 5
      %v435 = vsel %vm267, %v430, %v434
      %v437 = vshrl.u32 %v250, 16
      %v439 = vrot.slane %v437, 4
      %v440 = vshll.u32 %v250, 16
      %v442 = vrot.slane %v440, 5
      %v443 = vor.u32 %v439, %v442
      %v444 = vrot.slane %v443, 4
      %v446 = vshll.u32 %v251, 16
      %v448 = vrot.slane %v446, 5
      %v449 = vsel %vm267, %v444, %v448
      %v450 = vshrl.u32 %v251, 16
      %v452 = vrot.slane %v450, 4
      %v453 = vor.u32 %v452, %v448
      %v454 = vrot.slane %v453, 4
      %v456 = vshll.u32 %v252, 16
      %v458 = vrot.slane %v456, 5
      %v459 = vsel %vm267, %v454, %v458
      %v461 = vshrl.u32 %v253, 16
      %v463 = vrot.slane %v461, 4
      %v464 = vshll.u32 %v253, 16
      %v466 = vrot.slane %v464, 5
      %v467 = vor.u32 %v463, %v466
      %v468 = vrot.slane %v467, 4
      %v470 = vshll.u32 %v254, 16
      %v472 = vrot.slane %v470, 5
      %v473 = vsel %vm267, %v468, %v472
      %v474 = vshrl.u32 %v254, 16
      %v476 = vrot.slane %v474, 4
      %v477 = vor.u32 %v476, %v472
      %v478 = vrot.slane %v477, 4
      %v480 = vshll.u32 %v255, 16
      %v482 = vrot.slane %v480, 5
      %v483 = vsel %vm267, %v478, %v482
      %v485 = vshrl.u32 %v256, 16
      %v487 = vrot.slane %v485, 4
      %v488 = vshll.u32 %v256, 16
      %v490 = vrot.slane %v488, 5
      %v491 = vor.u32 %v487, %v490
      %v492 = vrot.slane %v491, 4
      %v494 = vshll.u32 %v257, 16
      %v496 = vrot.slane %v494, 5
      %v497 = vsel %vm267, %v492, %v496
      %v498 = vshrl.u32 %v257, 16
      %v500 = vrot.slane %v498, 4
      %v501 = vor.u32 %v500, %v496
      %v502 = vrot.slane %v501, 4
      %v504 = vshll.u32 %v258, 16
      %v506 = vrot.slane %v504, 5
      %v507 = vsel %vm267, %v502, %v506
      %vm538 = vcmask 1042432
      %vm539 = vcmask 1046532
      %vm540 = vmor %vm538, %vm539
      %v541 = vrot.slane %v229, 5
      %v542 = vrot.slane %v541, 4
      %v543 = vrot.slane %v230, 5
      %v544 = vsel %vm540, %v542, %v543
      %v545 = vrot.slane %v543, 4
      %v546 = vrot.slane %v231, 5
      %v547 = vsel %vm540, %v545, %v546
      %v548 = vrot.slane %v232, 5
      %v549 = vrot.slane %v548, 4
      %v550 = vrot.slane %v233, 5
      %v551 = vsel %vm540, %v549, %v550
      %v552 = vrot.slane %v550, 4
      %v553 = vrot.slane %v234, 5
      %v554 = vsel %vm540, %v552, %v553
      %v555 = vrot.slane %v235, 5
      %v556 = vrot.slane %v555, 4
      %v557 = vrot.slane %v236, 5
      %v558 = vsel %vm540, %v556, %v557
      %v559 = vrot.slane %v557, 4
      %v560 = vrot.slane %v237, 5
      %v561 = vsel %vm540, %v559, %v560
      %v562 = vrot.slane %v238, 5
      %v563 = vrot.slane %v562, 4
      %v564 = vrot.slane %v239, 5
      %v565 = vsel %vm540, %v563, %v564
      %v566 = vrot.slane %v564, 4
      %v567 = vrot.slane %v240, 5
      %v568 = vsel %vm540, %v566, %v567
      %v569 = vrot.slane %v241, 5
      %v570 = vrot.slane %v569, 4
      %v571 = vrot.slane %v242, 5
      %v572 = vsel %vm540, %v570, %v571
      %v573 = vrot.slane %v571, 4
      %v574 = vrot.slane %v243, 5
      %v575 = vsel %vm540, %v573, %v574
      %v576 = vrot.slane %v244, 5
      %v577 = vrot.slane %v576, 4
      %v578 = vrot.slane %v245, 5
      %v579 = vsel %vm540, %v577, %v578
      %v580 = vrot.slane %v578, 4
      %v581 = vrot.slane %v246, 5
      %v582 = vsel %vm540, %v580, %v581
      %v583 = vrot.slane %v247, 5
      %v584 = vrot.slane %v583, 4
      %v585 = vrot.slane %v248, 5
      %v586 = vsel %vm540, %v584, %v585
      %v587 = vrot.slane %v585, 4
      %v588 = vrot.slane %v249, 5
      %v589 = vsel %vm540, %v587, %v588
      %v590 = vrot.slane %v250, 5
      %v591 = vrot.slane %v590, 4
      %v592 = vrot.slane %v251, 5
      %v593 = vsel %vm540, %v591, %v592
      %v594 = vrot.slane %v592, 4
      %v595 = vrot.slane %v252, 5
      %v596 = vsel %vm540, %v594, %v595
      %v597 = vrot.slane %v253, 5
      %v598 = vrot.slane %v597, 4
      %v599 = vrot.slane %v254, 5
      %v600 = vsel %vm540, %v598, %v599
      %v601 = vrot.slane %v599, 4
      %v602 = vrot.slane %v255, 5
      %v603 = vsel %vm540, %v601, %v602
      %v604 = vrot.slane %v256, 5
      %v605 = vrot.slane %v604, 4
      %v606 = vrot.slane %v257, 5
      %v607 = vsel %vm540, %v605, %v606
      %v608 = vrot.slane %v606, 4
      %v609 = vrot.slane %v258, 5
      %v610 = vsel %vm540, %v608, %v609
      %v612 = vshrl.u32 %v259, 16
      %v614 = vrot.slane %v612, 4
      %v615 = vshll.u32 %v259, 16
      %v617 = vrot.slane %v615, 5
      %v618 = vor.u32 %v614, %v617
      %v619 = vrot.slane %v618, 4
      %v621 = vshll.u32 %v260, 16
      %v623 = vrot.slane %v621, 5
      %v624 = vsel %vm267, %v619, %v623
      %v625 = vshrl.u32 %v260, 16
      %v627 = vrot.slane %v625, 4
      %v628 = vor.u32 %v627, %v623
      %v629 = vrot.slane %v628, 4
      %v631 = vshll.u32 %v261, 16
      %v633 = vrot.slane %v631, 5
      %v634 = vsel %vm267, %v629, %v633
      %v638 = vrot.slane %v259, 5
      %v639 = vrot.slane %v638, 4
      %v640 = vrot.slane %v260, 5
      %v641 = vsel %vm540, %v639, %v640
      %v642 = vrot.slane %v640, 4
      %v643 = vrot.slane %v261, 5
      %v644 = vsel %vm540, %v642, %v643
      %v646 = vshrl.u32 %v262, 16
      %v648 = vrot.slane %v646, 4
      %v649 = vshll.u32 %v262, 16
      %v651 = vrot.slane %v649, 5
      %v652 = vor.u32 %v648, %v651
      %v653 = vrot.slane %v652, 4
      %v655 = vshll.u32 %v263, 16
      %v657 = vrot.slane %v655, 5
      %v658 = vsel %vm267, %v653, %v657
      %v659 = vshrl.u32 %v263, 16
      %v661 = vrot.slane %v659, 4
      %v662 = vor.u32 %v661, %v657
      %v663 = vrot.slane %v662, 4
      %v665 = vshll.u32 %v264, 16
      %v667 = vrot.slane %v665, 5
      %v668 = vsel %vm267, %v663, %v667
      %v672 = vrot.slane %v262, 5
      %v673 = vrot.slane %v672, 4
      %v674 = vrot.slane %v263, 5
      %v675 = vsel %vm540, %v673, %v674
      %v676 = vrot.slane %v674, 4
      %v677 = vrot.slane %v264, 5
      %v678 = vsel %vm540, %v676, %v677
      %v679 = vunpack.c.l.b16 %v229
      %v680 = vunpack.c.l.b16 %v230
      %v681 = vunpack.c.l.b16 %v232
      %v682 = vunpack.c.l.b16 %v233
      %v683 = vunpack.c.l.b16 %v235
      %v684 = vunpack.c.l.b16 %v236
      %v685 = vunpack.c.l.b16 %v238
      %v686 = vunpack.c.l.b16 %v239
      %v687 = vunpack.c.l.b16 %v241
      %v688 = vunpack.c.l.b16 %v242
      %v689 = vunpack.c.l.b16 %v244
      %v690 = vunpack.c.l.b16 %v245
      %v691 = vunpack.c.l.b16 %v247
      %v692 = vunpack.c.l.b16 %v248
      %v693 = vunpack.c.l.b16 %v250
      %v694 = vunpack.c.l.b16 %v251
      %v695 = vunpack.c.l.b16 %v253
      %v696 = vunpack.c.l.b16 %v254
      %v697 = vunpack.c.l.b16 %v256
      %v698 = vunpack.c.l.b16 %v257
      %v699 = vpack.c.b16 %v680, %v679
      %v700 = vpack.c.b16 %v682, %v681
      %v701 = vpack.c.b16 %v684, %v683
      %v702 = vpack.c.b16 %v686, %v685
      %v703 = vpack.c.b16 %v688, %v687
      %v704 = vpack.c.b16 %v690, %v689
      %v705 = vpack.c.b16 %v692, %v691
      %v706 = vpack.c.b16 %v694, %v693
      %v707 = vpack.c.b16 %v696, %v695
      %v708 = vpack.c.b16 %v698, %v697
      %v709 = vunpack.c.l.b16 %v281
      %v710 = vunpack.c.l.b16 %v291
      %v711 = vunpack.c.l.b16 %v305
      %v712 = vunpack.c.l.b16 %v315
      %v713 = vunpack.c.l.b16 %v329
      %v714 = vunpack.c.l.b16 %v339
      %v715 = vunpack.c.l.b16 %v353
      %v716 = vunpack.c.l.b16 %v363
      %v717 = vunpack.c.l.b16 %v377
      %v718 = vunpack.c.l.b16 %v387
      %v719 = vunpack.c.l.b16 %v401
      %v720 = vunpack.c.l.b16 %v411
      %v721 = vunpack.c.l.b16 %v425
      %v722 = vunpack.c.l.b16 %v435
      %v723 = vunpack.c.l.b16 %v449
      %v724 = vunpack.c.l.b16 %v459
      %v725 = vunpack.c.l.b16 %v473
      %v726 = vunpack.c.l.b16 %v483
      %v727 = vunpack.c.l.b16 %v497
      %v728 = vunpack.c.l.b16 %v507
      %v729 = vpack.c.b16 %v710, %v709
      %v730 = vpack.c.b16 %v712, %v711
      %v731 = vpack.c.b16 %v714, %v713
      %v732 = vpack.c.b16 %v716, %v715
      %v733 = vpack.c.b16 %v718, %v717
      %v734 = vpack.c.b16 %v720, %v719
      %v735 = vpack.c.b16 %v722, %v721
      %v736 = vpack.c.b16 %v724, %v723
      %v737 = vpack.c.b16 %v726, %v725
      %v738 = vpack.c.b16 %v728, %v727
      %739 = vrot.lane.b32.xlu0 %v729, 4
      %v740 = vpop.permute.xlu0 %739
      %741 = vrot.lane.b32.xlu0 %v730, 4
      %v742 = vpop.permute.xlu0 %741
      %743 = vrot.lane.b32.xlu0 %v731, 4
      %v744 = vpop.permute.xlu0 %743
      %745 = vrot.lane.b32.xlu0 %v732, 4
      %v746 = vpop.permute.xlu0 %745
      %747 = vrot.lane.b32.xlu0 %v733, 4
      %v748 = vpop.permute.xlu0 %747
      %749 = vrot.lane.b32.xlu0 %v734, 4
      %v750 = vpop.permute.xlu0 %749
      %751 = vrot.lane.b32.xlu0 %v735, 4
      %v752 = vpop.permute.xlu0 %751
      %753 = vrot.lane.b32.xlu0 %v736, 4
      %v754 = vpop.permute.xlu0 %753
      %755 = vrot.lane.b32.xlu0 %v737, 4
      %v756 = vpop.permute.xlu0 %755
      %757 = vrot.lane.b32.xlu0 %v738, 4
      %v758 = vpop.permute.xlu0 %757
      %v759 = vunpack.c.l.b16 %v544
      %v760 = vunpack.c.l.b16 %v547
      %v761 = vunpack.c.l.b16 %v551
      %v762 = vunpack.c.l.b16 %v554
      %v763 = vunpack.c.l.b16 %v558
      %v764 = vunpack.c.l.b16 %v561
      %v765 = vunpack.c.l.b16 %v565
      %v766 = vunpack.c.l.b16 %v568
      %v767 = vunpack.c.l.b16 %v572
      %v768 = vunpack.c.l.b16 %v575
      %v769 = vunpack.c.l.b16 %v579
      %v770 = vunpack.c.l.b16 %v582
      %v771 = vunpack.c.l.b16 %v586
      %v772 = vunpack.c.l.b16 %v589
      %v773 = vunpack.c.l.b16 %v593
      %v774 = vunpack.c.l.b16 %v596
      %v775 = vunpack.c.l.b16 %v600
      %v776 = vunpack.c.l.b16 %v603
      %v777 = vunpack.c.l.b16 %v607
      %v778 = vunpack.c.l.b16 %v610
      %v779 = vpack.c.b16 %v760, %v759
      %v780 = vpack.c.b16 %v762, %v761
      %v781 = vpack.c.b16 %v764, %v763
      %v782 = vpack.c.b16 %v766, %v765
      %v783 = vpack.c.b16 %v768, %v767
      %v784 = vpack.c.b16 %v770, %v769
      %v785 = vpack.c.b16 %v772, %v771
      %v786 = vpack.c.b16 %v774, %v773
      %v787 = vpack.c.b16 %v776, %v775
      %v788 = vpack.c.b16 %v778, %v777
      %789 = vrot.lane.b32.xlu0 %v779, 8
      %v790 = vpop.permute.xlu0 %789
      %791 = vrot.lane.b32.xlu0 %v780, 8
      %v792 = vpop.permute.xlu0 %791
      %793 = vrot.lane.b32.xlu0 %v781, 8
      %v794 = vpop.permute.xlu0 %793
      %795 = vrot.lane.b32.xlu0 %v782, 8
      %v796 = vpop.permute.xlu0 %795
      %797 = vrot.lane.b32.xlu0 %v783, 8
      %v798 = vpop.permute.xlu0 %797
      %799 = vrot.lane.b32.xlu0 %v784, 8
      %v800 = vpop.permute.xlu0 %799
      %801 = vrot.lane.b32.xlu0 %v785, 8
      %v802 = vpop.permute.xlu0 %801
      %803 = vrot.lane.b32.xlu0 %v786, 8
      %v804 = vpop.permute.xlu0 %803
      %805 = vrot.lane.b32.xlu0 %v787, 8
      %v806 = vpop.permute.xlu0 %805
      %807 = vrot.lane.b32.xlu0 %v788, 8
      %v808 = vpop.permute.xlu0 %807
      %v809 = vunpack.c.l.b16 %v259
      %v810 = vunpack.c.l.b16 %v260
      %v811 = vpack.c.b16 %v810, %v809
      %812 = vrot.lane.b32.xlu0 %v700, 12
      %v813 = vpop.permute.xlu0 %812
      %814 = vrot.lane.b32.xlu0 %v701, 12
      %v815 = vpop.permute.xlu0 %814
      %816 = vrot.lane.b32.xlu0 %v702, 12
      %v817 = vpop.permute.xlu0 %816
      %818 = vrot.lane.b32.xlu0 %v703, 12
      %v819 = vpop.permute.xlu0 %818
      %820 = vrot.lane.b32.xlu0 %v704, 12
      %v821 = vpop.permute.xlu0 %820
      %822 = vrot.lane.b32.xlu0 %v705, 12
      %v823 = vpop.permute.xlu0 %822
      %824 = vrot.lane.b32.xlu0 %v706, 12
      %v825 = vpop.permute.xlu0 %824
      %826 = vrot.lane.b32.xlu0 %v707, 12
      %v827 = vpop.permute.xlu0 %826
      %828 = vrot.lane.b32.xlu0 %v708, 12
      %v829 = vpop.permute.xlu0 %828
      %830 = vrot.lane.b32.xlu0 %v811, 12
      %v831 = vpop.permute.xlu0 %830
      %v832 = vunpack.c.l.b16 %v624
      %v833 = vunpack.c.l.b16 %v634
      %v834 = vpack.c.b16 %v833, %v832
      %835 = vrot.lane.b32.xlu0 %v730, 16
      %v836 = vpop.permute.xlu0 %835
      %837 = vrot.lane.b32.xlu0 %v731, 16
      %v838 = vpop.permute.xlu0 %837
      %839 = vrot.lane.b32.xlu0 %v732, 16
      %v840 = vpop.permute.xlu0 %839
      %841 = vrot.lane.b32.xlu0 %v733, 16
      %v842 = vpop.permute.xlu0 %841
      %843 = vrot.lane.b32.xlu0 %v734, 16
      %v844 = vpop.permute.xlu0 %843
      %845 = vrot.lane.b32.xlu0 %v735, 16
      %v846 = vpop.permute.xlu0 %845
      %847 = vrot.lane.b32.xlu0 %v736, 16
      %v848 = vpop.permute.xlu0 %847
      %849 = vrot.lane.b32.xlu0 %v737, 16
      %v850 = vpop.permute.xlu0 %849
      %851 = vrot.lane.b32.xlu0 %v738, 16
      %v852 = vpop.permute.xlu0 %851
      %853 = vrot.lane.b32.xlu0 %v834, 16
      %v854 = vpop.permute.xlu0 %853
      %v855 = vunpack.c.l.b16 %v641
      %v856 = vunpack.c.l.b16 %v644
      %v857 = vpack.c.b16 %v856, %v855
      %858 = vrot.lane.b32.xlu0 %v780, 20
      %v859 = vpop.permute.xlu0 %858
      %860 = vrot.lane.b32.xlu0 %v781, 20
      %v861 = vpop.permute.xlu0 %860
      %862 = vrot.lane.b32.xlu0 %v782, 20
      %v863 = vpop.permute.xlu0 %862
      %864 = vrot.lane.b32.xlu0 %v783, 20
      %v865 = vpop.permute.xlu0 %864
      %866 = vrot.lane.b32.xlu0 %v784, 20
      %v867 = vpop.permute.xlu0 %866
      %868 = vrot.lane.b32.xlu0 %v785, 20
      %v869 = vpop.permute.xlu0 %868
      %870 = vrot.lane.b32.xlu0 %v786, 20
      %v871 = vpop.permute.xlu0 %870
      %872 = vrot.lane.b32.xlu0 %v787, 20
      %v873 = vpop.permute.xlu0 %872
      %874 = vrot.lane.b32.xlu0 %v788, 20
      %v875 = vpop.permute.xlu0 %874
      %876 = vrot.lane.b32.xlu0 %v857, 20
      %v877 = vpop.permute.xlu0 %876
      %v878 = vunpack.c.l.b16 %v262
      %v879 = vunpack.c.l.b16 %v263
      %v880 = vpack.c.b16 %v879, %v878
      %881 = vrot.lane.b32.xlu0 %v701, 24
      %v882 = vpop.permute.xlu0 %881
      %883 = vrot.lane.b32.xlu0 %v702, 24
      %v884 = vpop.permute.xlu0 %883
      %885 = vrot.lane.b32.xlu0 %v703, 24
      %v886 = vpop.permute.xlu0 %885
      %887 = vrot.lane.b32.xlu0 %v704, 24
      %v888 = vpop.permute.xlu0 %887
      %889 = vrot.lane.b32.xlu0 %v705, 24
      %v890 = vpop.permute.xlu0 %889
      %891 = vrot.lane.b32.xlu0 %v706, 24
      %v892 = vpop.permute.xlu0 %891
      %893 = vrot.lane.b32.xlu0 %v707, 24
      %v894 = vpop.permute.xlu0 %893
      %895 = vrot.lane.b32.xlu0 %v708, 24
      %v896 = vpop.permute.xlu0 %895
      %897 = vrot.lane.b32.xlu0 %v811, 24
      %v898 = vpop.permute.xlu0 %897
      %899 = vrot.lane.b32.xlu0 %v880, 24
      %v900 = vpop.permute.xlu0 %899
      %v901 = vunpack.c.l.b16 %v658
      %v902 = vunpack.c.l.b16 %v668
      %v903 = vpack.c.b16 %v902, %v901
      %904 = vrot.lane.b32.xlu0 %v731, 28
      %v905 = vpop.permute.xlu0 %904
      %906 = vrot.lane.b32.xlu0 %v732, 28
      %v907 = vpop.permute.xlu0 %906
      %908 = vrot.lane.b32.xlu0 %v733, 28
      %v909 = vpop.permute.xlu0 %908
      %910 = vrot.lane.b32.xlu0 %v734, 28
      %v911 = vpop.permute.xlu0 %910
      %912 = vrot.lane.b32.xlu0 %v735, 28
      %v913 = vpop.permute.xlu0 %912
      %914 = vrot.lane.b32.xlu0 %v736, 28
      %v915 = vpop.permute.xlu0 %914
      %916 = vrot.lane.b32.xlu0 %v737, 28
      %v917 = vpop.permute.xlu0 %916
      %918 = vrot.lane.b32.xlu0 %v738, 28
      %v919 = vpop.permute.xlu0 %918
      %920 = vrot.lane.b32.xlu0 %v834, 28
      %v921 = vpop.permute.xlu0 %920
      %922 = vrot.lane.b32.xlu0 %v903, 28
      %v923 = vpop.permute.xlu0 %922
      %v924 = vunpack.c.l.b16 %v675
      %v925 = vunpack.c.l.b16 %v678
      %v926 = vpack.c.b16 %v925, %v924
      %927 = vrot.lane.b32.xlu0 %v781, 32
      %v928 = vpop.permute.xlu0 %927
      %929 = vrot.lane.b32.xlu0 %v782, 32
      %v930 = vpop.permute.xlu0 %929
      %931 = vrot.lane.b32.xlu0 %v783, 32
      %v932 = vpop.permute.xlu0 %931
      %933 = vrot.lane.b32.xlu0 %v784, 32
      %v934 = vpop.permute.xlu0 %933
      %935 = vrot.lane.b32.xlu0 %v785, 32
      %v936 = vpop.permute.xlu0 %935
      %937 = vrot.lane.b32.xlu0 %v786, 32
      %v938 = vpop.permute.xlu0 %937
      %939 = vrot.lane.b32.xlu0 %v787, 32
      %v940 = vpop.permute.xlu0 %939
      %941 = vrot.lane.b32.xlu0 %v788, 32
      %v942 = vpop.permute.xlu0 %941
      %943 = vrot.lane.b32.xlu0 %v857, 32
      %v944 = vpop.permute.xlu0 %943
      %945 = vrot.lane.b32.xlu0 %v926, 32
      %v946 = vpop.permute.xlu0 %945
      %vm947 = vcmask 31744
      %v950 = vsel %vm947, %v699, %v740
      %v953 = vsel %vm947, %v700, %v742
      %v956 = vsel %vm947, %v701, %v744
      %v959 = vsel %vm947, %v702, %v746
      %v962 = vsel %vm947, %v703, %v748
      %v965 = vsel %vm947, %v704, %v750
      %v968 = vsel %vm947, %v705, %v752
      %v971 = vsel %vm947, %v706, %v754
      %v974 = vsel %vm947, %v707, %v756
      %v977 = vsel %vm947, %v708, %v758
      %vm978 = vcmask 64512
      %v980 = vsel %vm978, %v950, %v790
      %v982 = vsel %vm978, %v953, %v792
      %v984 = vsel %vm978, %v956, %v794
      %v986 = vsel %vm978, %v959, %v796
      %v988 = vsel %vm978, %v962, %v798
      %v990 = vsel %vm978, %v965, %v800
      %v992 = vsel %vm978, %v968, %v802
      %v994 = vsel %vm978, %v971, %v804
      %v996 = vsel %vm978, %v974, %v806
      %v998 = vsel %vm978, %v977, %v808
      %vm999 = vcmask 97280
      %v1001 = vsel %vm999, %v980, %v813
      %v1003 = vsel %vm999, %v982, %v815
      %v1005 = vsel %vm999, %v984, %v817
      %v1007 = vsel %vm999, %v986, %v819
      %v1009 = vsel %vm999, %v988, %v821
      %v1011 = vsel %vm999, %v990, %v823
      %v1013 = vsel %vm999, %v992, %v825
      %v1015 = vsel %vm999, %v994, %v827
      %v1017 = vsel %vm999, %v996, %v829
      %v1019 = vsel %vm999, %v998, %v831
      %vm1020 = vcmask 130048
      %v1022 = vsel %vm1020, %v1001, %v836
      %v1024 = vsel %vm1020, %v1003, %v838
      %v1026 = vsel %vm1020, %v1005, %v840
      %v1028 = vsel %vm1020, %v1007, %v842
      %v1030 = vsel %vm1020, %v1009, %v844
      %v1032 = vsel %vm1020, %v1011, %v846
      %v1034 = vsel %vm1020, %v1013, %v848
      %v1036 = vsel %vm1020, %v1015, %v850
      %v1038 = vsel %vm1020, %v1017, %v852
      %v1040 = vsel %vm1020, %v1019, %v854
      %vm1041 = vcmask 162816
      %v1043 = vsel %vm1041, %v1022, %v859
      %v1045 = vsel %vm1041, %v1024, %v861
      %v1047 = vsel %vm1041, %v1026, %v863
      %v1049 = vsel %vm1041, %v1028, %v865
      %v1051 = vsel %vm1041, %v1030, %v867
      %v1053 = vsel %vm1041, %v1032, %v869
      %v1055 = vsel %vm1041, %v1034, %v871
      %v1057 = vsel %vm1041, %v1036, %v873
      %v1059 = vsel %vm1041, %v1038, %v875
      %v1061 = vsel %vm1041, %v1040, %v877
      %vm1062 = vcmask 195584
      %v1064 = vsel %vm1062, %v1043, %v882
      %v1066 = vsel %vm1062, %v1045, %v884
      %v1068 = vsel %vm1062, %v1047, %v886
      %v1070 = vsel %vm1062, %v1049, %v888
      %v1072 = vsel %vm1062, %v1051, %v890
      %v1074 = vsel %vm1062, %v1053, %v892
      %v1076 = vsel %vm1062, %v1055, %v894
      %v1078 = vsel %vm1062, %v1057, %v896
      %v1080 = vsel %vm1062, %v1059, %v898
      %v1082 = vsel %vm1062, %v1061, %v900
      %vm1083 = vcmask 228352
      %v1085 = vsel %vm1083, %v1064, %v905
      %v1087 = vsel %vm1083, %v1066, %v907
      %v1089 = vsel %vm1083, %v1068, %v909
      %v1091 = vsel %vm1083, %v1070, %v911
      %v1093 = vsel %vm1083, %v1072, %v913
      %v1095 = vsel %vm1083, %v1074, %v915
      %v1097 = vsel %vm1083, %v1076, %v917
      %v1099 = vsel %vm1083, %v1078, %v919
      %v1101 = vsel %vm1083, %v1080, %v921
      %v1103 = vsel %vm1083, %v1082, %v923
      %vm1104 = vcmask 261120
      %v1106 = vsel %vm1104, %v1085, %v928
      %v1108 = vsel %vm1104, %v1087, %v930
      %v1110 = vsel %vm1104, %v1089, %v932
      %v1112 = vsel %vm1104, %v1091, %v934
      %v1114 = vsel %vm1104, %v1093, %v936
      %v1116 = vsel %vm1104, %v1095, %v938
      %v1118 = vsel %vm1104, %v1097, %v940
      %v1120 = vsel %vm1104, %v1099, %v942
      %v1122 = vsel %vm1104, %v1101, %v944
      %v1124 = vsel %vm1104, %v1103, %v946
      %v1125 = vld [vmem:[%s1] sm:$0xf]
      %v1126 = vld [vmem:[%s1 + $0x4] sm:$0xf]
      %v1127 = vld [vmem:[%s1 + $0x8] sm:$0xf]
      %v1128 = vld [vmem:[%s1 + $0xc] sm:$0xf]
      %v1129 = vld [vmem:[%s1 + $0x10] sm:$0x3]
      %v1135 = vunpack.c.l.b16 %v1125
      %v1136 = vunpack.c.l.b16 %v1126
      %v1137 = vunpack.c.l.b16 %v1127
      %v1138 = vunpack.c.l.b16 %v1128
      %v1139 = vunpack.c.l.b16 %v1129
      %v1140 = vpack.c.b16 %v1136, %v1135
      %v1141 = vpack.c.b16 %v1138, %v1137
      %v1142 = vpack.c.b16 %v1139, %v1139
      %vm1145 = vcmask 293888
      %v1146 = vsel %vm1145, %v1106, 0
      %v1148 = vsel %vm1145, %v1108, 0
      %v1150 = vsel %vm1145, %v1110, 0
      %v1152 = vsel %vm1145, %v1112, 0
      %v1154 = vsel %vm1145, %v1114, 0
      %v1156 = vsel %vm1145, %v1116, 0
      %v1158 = vsel %vm1145, %v1118, 0
      %v1160 = vsel %vm1145, %v1120, 0
      %v1162 = vsel %vm1145, %v1122, 0
      %v1164 = vsel %vm1145, %v1124, 0
      %vm1166 = vcmask 1041408
      %v1168 = vsel %vm1166, %v1142, 0
      %1170 = vmatprep.subr.bf16.mxu0 0
      %1171 = vmatpush1.bf16.msra.mxu0 %v1140
      %1172 = vmatprep.subr.bf16.mxu0 0
      %1173 = vmatpush1.bf16.msra.mxu0 %v1141
      %1174 = vmatprep.subr.bf16.mxu0 0
      %1175 = vmatpush1.bf16.msra.mxu0 %v1168
      %1176 = vmatprep.subr.bf16.mxu0 0
      %1177 = vmatpush1.bf16.msra.mxu0 0
      %1178 = vmatprep.subr.bf16.mxu0 0
      %1179 = vmatpush1.bf16.msra.mxu0 0
      %1180 = vmatprep.subr.bf16.mxu0 0
      %1181 = vmatpush1.bf16.msra.mxu0 0
      %1182 = vmatprep.subr.bf16.mxu0 0
      %1183 = vmatpush1.bf16.msra.mxu0 0
      %1184 = vmatprep.subr.bf16.mxu0 0
      %1185 = vmatpush1.bf16.msra.mxu0 0
      %1186 = vmatprep.subr.bf16.mxu0 0
      %1187 = vmatpush1.bf16.msra.mxu0 0
      %1188 = vmatprep.subr.bf16.mxu0 0
      %1189 = vmatpush1.bf16.msra.mxu0 0
      %1190 = vmatprep.subr.bf16.mxu0 0
      %1191 = vmatpush1.bf16.msra.mxu0 0
      %1192 = vmatprep.subr.bf16.mxu0 0
      %1193 = vmatpush1.bf16.msra.mxu0 0
      %1194 = vmatprep.subr.bf16.mxu0 0
      %1195 = vmatpush1.bf16.msra.mxu0 0
      %1196 = vmatprep.subr.bf16.mxu0 0
      %1197 = vmatpush1.bf16.msra.mxu0 0
      %1198 = vmatprep.subr.bf16.mxu0 0
      %1199 = vmatpush1.bf16.msra.mxu0 0
      %1200 = vmatprep.subr.bf16.mxu0 0
      %1201 = vmatpush1.bf16.msra.mxu0 0
      %1202 = vmatprep.mubr.bf16.mxu0 0
      %1203 = vmatmul.mubr.bf16.gmra.mrb[0].mxu0 %v1146
      %v1204 = vpop.f32.mrb[0].mxu0
      %v1205 = vadd.f32 0.0, %v1204
      %v1206 = vpop.f32.mrb[0].mxu0
      %v1207 = vpop.f32.mrb[0].mxu0
      %v1208 = vadd.f32 0.0, %v1207
      %v1209 = vpop.f32.mrb[0].mxu0
      %1210 = vmatprep.mubr.bf16.mxu0 0
      %1211 = vmatmul.mubr.bf16.gmra.mrb[0].mxu0 %v1148
      %v1212 = vpop.f32.mrb[0].mxu0
      %v1213 = vadd.f32 0.0, %v1212
      %v1214 = vpop.f32.mrb[0].mxu0
      %v1215 = vpop.f32.mrb[0].mxu0
      %v1216 = vadd.f32 0.0, %v1215
      %v1217 = vpop.f32.mrb[0].mxu0
      %1218 = vmatprep.mubr.bf16.mxu0 0
      %1219 = vmatmul.mubr.bf16.gmra.mrb[0].mxu0 %v1150
      %v1220 = vpop.f32.mrb[0].mxu0
      %v1221 = vadd.f32 0.0, %v1220
      %v1222 = vpop.f32.mrb[0].mxu0
      %v1223 = vpop.f32.mrb[0].mxu0
      %v1224 = vadd.f32 0.0, %v1223
      %v1225 = vpop.f32.mrb[0].mxu0
      %1226 = vmatprep.mubr.bf16.mxu0 0
      %1227 = vmatmul.mubr.bf16.gmra.mrb[0].mxu0 %v1152
      %v1228 = vpop.f32.mrb[0].mxu0
      %v1229 = vadd.f32 0.0, %v1228
      %v1230 = vpop.f32.mrb[0].mxu0
      %v1231 = vpop.f32.mrb[0].mxu0
      %v1232 = vadd.f32 0.0, %v1231
      %v1233 = vpop.f32.mrb[0].mxu0
      %1234 = vmatprep.mubr.bf16.mxu0 0
      %1235 = vmatmul.mubr.bf16.gmra.mrb[0].mxu0 %v1154
      %v1236 = vpop.f32.mrb[0].mxu0
      %v1237 = vadd.f32 0.0, %v1236
      %v1238 = vpop.f32.mrb[0].mxu0
      %v1239 = vpop.f32.mrb[0].mxu0
      %v1240 = vadd.f32 0.0, %v1239
      %v1241 = vpop.f32.mrb[0].mxu0
      %1242 = vmatprep.mubr.bf16.mxu0 0
      %1243 = vmatmul.mubr.bf16.gmra.mrb[0].mxu0 %v1156
      %v1244 = vpop.f32.mrb[0].mxu0
      %v1245 = vadd.f32 0.0, %v1244
      %v1246 = vpop.f32.mrb[0].mxu0
      %v1247 = vpop.f32.mrb[0].mxu0
      %v1248 = vadd.f32 0.0, %v1247
      %v1249 = vpop.f32.mrb[0].mxu0
      %1250 = vmatprep.mubr.bf16.mxu0 0
      %1251 = vmatmul.mubr.bf16.gmra.mrb[0].mxu0 %v1158
      %v1252 = vpop.f32.mrb[0].mxu0
      %v1253 = vadd.f32 0.0, %v1252
      %v1254 = vpop.f32.mrb[0].mxu0
      %v1255 = vpop.f32.mrb[0].mxu0
      %v1256 = vadd.f32 0.0, %v1255
      %v1257 = vpop.f32.mrb[0].mxu0
      %1258 = vmatprep.mubr.bf16.mxu0 0
      %1259 = vmatmul.mubr.bf16.gmra.mrb[0].mxu0 %v1160
      %v1260 = vpop.f32.mrb[0].mxu0
      %v1261 = vadd.f32 0.0, %v1260
      %v1262 = vpop.f32.mrb[0].mxu0
      %v1263 = vpop.f32.mrb[0].mxu0
      %v1264 = vadd.f32 0.0, %v1263
      %v1265 = vpop.f32.mrb[0].mxu0
      %1266 = vmatprep.mubr.bf16.mxu0 0
      %1267 = vmatmul.mubr.bf16.gmra.mrb[0].mxu0 %v1162
      %v1268 = vpop.f32.mrb[0].mxu0
      %v1269 = vadd.f32 0.0, %v1268
      %v1270 = vpop.f32.mrb[0].mxu0
      %v1271 = vpop.f32.mrb[0].mxu0
      %v1272 = vadd.f32 0.0, %v1271
      %v1273 = vpop.f32.mrb[0].mxu0
      %1274 = vmatprep.mubr.bf16.mxu0 0
      %1275 = vmatmul.mubr.bf16.gmra.mrb[0].mxu0 %v1164
      %v1276 = vpop.f32.mrb[0].mxu0
      %v1277 = vadd.f32 0.0, %v1276
      %v1278 = vpop.f32.mrb[0].mxu0
      %v1279 = vpop.f32.mrb[0].mxu0
      %v1280 = vadd.f32 0.0, %v1279
      %v1281 = vpop.f32.mrb[0].mxu0
      %1282 = vdwg.mxu0
      %v1283 = vsel %vm978, %v1213, 0.0
      %v1284 = vsel %vm978, %v1216, 0.0
      %v1285 = vadd.f32 %v1283, %v1284
      %v1286 = vsel %vm978, %v1221, 0.0
      %v1287 = vadd.f32 %v1285, %v1286
      %v1288 = vsel %vm978, %v1224, 0.0
      %v1289 = vadd.f32 %v1287, %v1288
      %v1290 = vsel %vm978, %v1229, 0.0
      %v1291 = vadd.f32 %v1289, %v1290
      %v1292 = vsel %vm978, %v1232, 0.0
      %v1293 = vadd.f32 %v1291, %v1292
      %v1294 = vsel %vm978, %v1237, 0.0
      %v1295 = vadd.f32 %v1293, %v1294
      %v1296 = vsel %vm978, %v1240, 0.0
      %v1297 = vadd.f32 %v1295, %v1296
      %v1298 = vsel %vm978, %v1245, 0.0
      %v1299 = vadd.f32 %v1297, %v1298
      %v1300 = vsel %vm978, %v1248, 0.0
      %v1301 = vadd.f32 %v1299, %v1300
      %v1302 = vsel %vm978, %v1253, 0.0
      %v1303 = vadd.f32 %v1301, %v1302
      %v1304 = vsel %vm978, %v1256, 0.0
      %v1305 = vadd.f32 %v1303, %v1304
      %v1306 = vsel %vm978, %v1261, 0.0
      %v1307 = vadd.f32 %v1305, %v1306
      %v1308 = vsel %vm978, %v1264, 0.0
      %v1309 = vadd.f32 %v1307, %v1308
      %v1310 = vsel %vm978, %v1269, 0.0
      %v1311 = vadd.f32 %v1309, %v1310
      %v1312 = vsel %vm978, %v1272, 0.0
      %v1313 = vadd.f32 %v1311, %v1312
      %v1314 = vrot.slane %v1313, 4
      %v1315 = vadd.f32 %v1313, %v1314
      %v1316 = vrot.slane %v1315, 2
      %v1317 = vadd.f32 %v1315, %v1316
      %v1318 = vrot.slane %v1317, 1
      %v1319 = vadd.f32 %v1317, %v1318
      %v1320 = vrcp.pop 128.0
      %v1321 = vmul.f32 %v1319, %v1320
      %v1322 = vsub.f32 %v1213, %v1321
      %v1323 = vsub.f32 %v1216, %v1321
      %v1324 = vsub.f32 %v1221, %v1321
      %v1325 = vsub.f32 %v1224, %v1321
      %v1326 = vsub.f32 %v1229, %v1321
      %v1327 = vsub.f32 %v1232, %v1321
      %v1328 = vsub.f32 %v1237, %v1321
      %v1329 = vsub.f32 %v1240, %v1321
      %v1330 = vsub.f32 %v1245, %v1321
      %v1331 = vsub.f32 %v1248, %v1321
      %v1332 = vsub.f32 %v1253, %v1321
      %v1333 = vsub.f32 %v1256, %v1321
      %v1334 = vsub.f32 %v1261, %v1321
      %v1335 = vsub.f32 %v1264, %v1321
      %v1336 = vsub.f32 %v1269, %v1321
      %v1337 = vsub.f32 %v1272, %v1321
      %v1338 = vmul.f32 %v1322, %v1322
      %v1339 = vmul.f32 %v1323, %v1323
      %v1340 = vmul.f32 %v1324, %v1324
      %v1341 = vmul.f32 %v1325, %v1325
      %v1342 = vmul.f32 %v1326, %v1326
      %v1343 = vmul.f32 %v1327, %v1327
      %v1344 = vmul.f32 %v1328, %v1328
      %v1345 = vmul.f32 %v1329, %v1329
      %v1346 = vmul.f32 %v1330, %v1330
      %v1347 = vmul.f32 %v1331, %v1331
      %v1348 = vmul.f32 %v1332, %v1332
      %v1349 = vmul.f32 %v1333, %v1333
      %v1350 = vmul.f32 %v1334, %v1334
      %v1351 = vmul.f32 %v1335, %v1335
      %v1352 = vmul.f32 %v1336, %v1336
      %v1353 = vmul.f32 %v1337, %v1337
      %v1354 = vsel %vm978, %v1338, 0.0
      %v1355 = vsel %vm978, %v1339, 0.0
      %v1356 = vadd.f32 %v1354, %v1355
      %v1357 = vsel %vm978, %v1340, 0.0
      %v1358 = vadd.f32 %v1356, %v1357
      %v1359 = vsel %vm978, %v1341, 0.0
      %v1360 = vadd.f32 %v1358, %v1359
      %v1361 = vsel %vm978, %v1342, 0.0
      %v1362 = vadd.f32 %v1360, %v1361
      %v1363 = vsel %vm978, %v1343, 0.0
      %v1364 = vadd.f32 %v1362, %v1363
      %v1365 = vsel %vm978, %v1344, 0.0
      %v1366 = vadd.f32 %v1364, %v1365
      %v1367 = vsel %vm978, %v1345, 0.0
      %v1368 = vadd.f32 %v1366, %v1367
      %v1369 = vsel %vm978, %v1346, 0.0
      %v1370 = vadd.f32 %v1368, %v1369
      %v1371 = vsel %vm978, %v1347, 0.0
      %v1372 = vadd.f32 %v1370, %v1371
      %v1373 = vsel %vm978, %v1348, 0.0
      %v1374 = vadd.f32 %v1372, %v1373
      %v1375 = vsel %vm978, %v1349, 0.0
      %v1376 = vadd.f32 %v1374, %v1375
      %v1377 = vsel %vm978, %v1350, 0.0
      %v1378 = vadd.f32 %v1376, %v1377
      %v1379 = vsel %vm978, %v1351, 0.0
      %v1380 = vadd.f32 %v1378, %v1379
      %v1381 = vsel %vm978, %v1352, 0.0
      %v1382 = vadd.f32 %v1380, %v1381
      %v1383 = vsel %vm978, %v1353, 0.0
      %v1384 = vadd.f32 %v1382, %v1383
      %v1385 = vrot.slane %v1384, 4
      %v1386 = vadd.f32 %v1384, %v1385
      %v1387 = vrot.slane %v1386, 2
      %v1388 = vadd.f32 %v1386, %v1387
      %v1389 = vrot.slane %v1388, 1
      %v1390 = vadd.f32 %v1388, %v1389
      %vm1391 = vcmask 1040384
      %v1392 = vsel %vm1391, %v1319, %v1390
      %v1393 = vsel %vm1166, %v1392, 0.0
      %1394 = vst.msk [vmem:[%s227] sm:$0xff] %vm978, %v1393
      %s1395 = smul.u32 %s20, 8
      %s1396 = ssub.s32 %s1395, 1
      %v1397 = vstv %s1396
      %v1398 = vadd.s32 %v1397, 1
      %v1399 = vadd.s32 %v1397, 2
      %v1400 = vadd.s32 %v1397, 3
      %v1401 = vadd.s32 %v1397, 4
      %v1402 = vadd.s32 %v1397, 5
      %v1403 = vadd.s32 %v1397, 6
      %v1404 = vadd.s32 %v1397, 7
      %v1405 = vadd.s32 %v1397, 8
      %v1406 = vadd.s32 %v1397, 9
      %vm1407 = vcmp.ge.s32.totalorder %v1397, 0
      %vm1408 = vcmp.ge.s32.totalorder %v1398, 0
      %vm1409 = vcmp.ge.s32.totalorder %v1399, 0
      %vm1410 = vcmp.ge.s32.totalorder %v1400, 0
      %vm1411 = vcmp.ge.s32.totalorder %v1401, 0
      %vm1412 = vcmp.ge.s32.totalorder %v1402, 0
      %vm1413 = vcmp.ge.s32.totalorder %v1403, 0
      %vm1414 = vcmp.ge.s32.totalorder %v1404, 0
      %vm1415 = vcmp.ge.s32.totalorder %v1405, 0
      %vm1416 = vcmp.ge.s32.totalorder %v1406, 0
      %vm1417 = vcmp.lt.s32.totalorder %v1397, 16
      %vm1418 = vcmp.lt.s32.totalorder %v1398, 16
      %vm1419 = vcmp.lt.s32.totalorder %v1399, 16
      %vm1420 = vcmp.lt.s32.totalorder %v1400, 16
      %vm1421 = vcmp.lt.s32.totalorder %v1401, 16
      %vm1422 = vcmp.lt.s32.totalorder %v1402, 16
      %vm1423 = vcmp.lt.s32.totalorder %v1403, 16
      %vm1424 = vcmp.lt.s32.totalorder %v1404, 16
      %vm1425 = vcmp.lt.s32.totalorder %v1405, 16
      %vm1426 = vcmp.lt.s32.totalorder %v1406, 16
      %vm1427 = vmand %vm1407, %vm1417
      %vm1428 = vmand %vm1408, %vm1418
      %vm1429 = vmand %vm1409, %vm1419
      %vm1430 = vmand %vm1410, %vm1420
      %vm1431 = vmand %vm1411, %vm1421
      %vm1432 = vmand %vm1412, %vm1422
      %vm1433 = vmand %vm1413, %vm1423
      %vm1434 = vmand %vm1414, %vm1424
      %vm1435 = vmand %vm1415, %vm1425
      %vm1436 = vmand %vm1416, %vm1426
      %v1437 = vsel %vm1427, 1, 0
      %v1438 = vsel %vm1428, 1, 0
      %v1439 = vsel %vm1429, 1, 0
      %v1440 = vsel %vm1430, 1, 0
      %v1441 = vsel %vm1431, 1, 0
      %v1442 = vsel %vm1432, 1, 0
      %v1443 = vsel %vm1433, 1, 0
      %v1444 = vsel %vm1434, 1, 0
      %v1445 = vsel %vm1435, 1, 0
      %v1446 = vsel %vm1436, 1, 0
      %vm1447 = vcmp.eq.s32.totalorder %v1437, 1
      %vm1448 = vcmp.eq.s32.totalorder %v1438, 1
      %vm1449 = vcmp.eq.s32.totalorder %v1439, 1
      %vm1450 = vcmp.eq.s32.totalorder %v1440, 1
      %vm1451 = vcmp.eq.s32.totalorder %v1441, 1
      %vm1452 = vcmp.eq.s32.totalorder %v1442, 1
      %vm1453 = vcmp.eq.s32.totalorder %v1443, 1
      %vm1454 = vcmp.eq.s32.totalorder %v1444, 1
      %vm1455 = vcmp.eq.s32.totalorder %v1445, 1
      %vm1456 = vcmp.eq.s32.totalorder %v1446, 1
      %v1457 = vsel %vm1447, %v1205, 0.0
      %v1458 = vsel %vm1447, %v1208, 0.0
      %v1459 = vsel %vm1448, %v1213, 0.0
      %v1460 = vsel %vm1448, %v1216, 0.0
      %v1461 = vsel %vm1449, %v1221, 0.0
      %v1462 = vsel %vm1449, %v1224, 0.0
      %v1463 = vsel %vm1450, %v1229, 0.0
      %v1464 = vsel %vm1450, %v1232, 0.0
      %v1465 = vsel %vm1451, %v1237, 0.0
      %v1466 = vsel %vm1451, %v1240, 0.0
      %v1467 = vsel %vm1452, %v1245, 0.0
      %v1468 = vsel %vm1452, %v1248, 0.0
      %v1469 = vsel %vm1453, %v1253, 0.0
      %v1470 = vsel %vm1453, %v1256, 0.0
      %v1471 = vsel %vm1454, %v1261, 0.0
      %v1472 = vsel %vm1454, %v1264, 0.0
      %v1473 = vsel %vm1455, %v1269, 0.0
      %v1474 = vsel %vm1455, %v1272, 0.0
      %v1475 = vsel %vm1456, %v1277, 0.0
      %v1476 = vsel %vm1456, %v1280, 0.0
      %v1497 = vrot.slane %v1457, 7
      %v1498 = vrot.slane %v1458, 7
      %v1499 = vsel %vm1391, %v1497, %v1498
      %v1500 = vrot.slane %v1459, 7
      %v1501 = vrot.slane %v1460, 7
      %v1502 = vsel %vm1391, %v1500, %v1501
      %v1503 = vrot.slane %v1461, 7
      %v1504 = vrot.slane %v1462, 7
      %v1505 = vsel %vm1391, %v1503, %v1504
      %v1506 = vrot.slane %v1463, 7
      %v1507 = vrot.slane %v1464, 7
      %v1508 = vsel %vm1391, %v1506, %v1507
      %v1509 = vrot.slane %v1465, 7
      %v1510 = vrot.slane %v1466, 7
      %v1511 = vsel %vm1391, %v1509, %v1510
      %v1512 = vrot.slane %v1467, 7
      %v1513 = vrot.slane %v1468, 7
      %v1514 = vsel %vm1391, %v1512, %v1513
      %v1515 = vrot.slane %v1469, 7
      %v1516 = vrot.slane %v1470, 7
      %v1517 = vsel %vm1391, %v1515, %v1516
      %v1518 = vrot.slane %v1471, 7
      %v1519 = vrot.slane %v1472, 7
      %v1520 = vsel %vm1391, %v1518, %v1519
      %v1521 = vrot.slane %v1473, 7
      %v1522 = vrot.slane %v1474, 7
      %v1523 = vsel %vm1391, %v1521, %v1522
      %v1524 = vrot.slane %v1475, 7
      %v1525 = vrot.slane %v1476, 7
      %v1526 = vsel %vm1391, %v1524, %v1525
      %v1557 = vsel %vm1391, 0.0, %v1497
      %v1558 = vsel %vm1391, 0.0, %v1500
      %v1559 = vsel %vm1391, 0.0, %v1503
      %v1560 = vsel %vm1391, 0.0, %v1506
      %v1561 = vsel %vm1391, 0.0, %v1509
      %v1562 = vsel %vm1391, 0.0, %v1512
      %v1563 = vsel %vm1391, 0.0, %v1515
      %v1564 = vsel %vm1391, 0.0, %v1518
      %v1565 = vsel %vm1391, 0.0, %v1521
      %v1566 = vsel %vm1391, 0.0, %v1524
      %v1567 = vsel %vm1391, %v1498, 0.0
      %v1568 = vsel %vm1391, %v1501, 0.0
      %v1569 = vsel %vm1391, %v1504, 0.0
      %v1570 = vsel %vm1391, %v1507, 0.0
      %v1571 = vsel %vm1391, %v1510, 0.0
      %v1572 = vsel %vm1391, %v1513, 0.0
      %v1573 = vsel %vm1391, %v1516, 0.0
      %v1574 = vsel %vm1391, %v1519, 0.0
      %v1575 = vsel %vm1391, %v1522, 0.0
      %v1576 = vsel %vm1391, %v1525, 0.0
      %v1577 = vpack.c.bf16 %v1499, %v1557
      %v1578 = vpack.c.bf16 %v1567, %v1567
      %v1579 = vpack.c.bf16 %v1502, %v1558
      %v1580 = vpack.c.bf16 %v1568, %v1568
      %v1581 = vpack.c.bf16 %v1505, %v1559
      %v1582 = vpack.c.bf16 %v1569, %v1569
      %v1583 = vpack.c.bf16 %v1508, %v1560
      %v1584 = vpack.c.bf16 %v1570, %v1570
      %v1585 = vpack.c.bf16 %v1511, %v1561
      %v1586 = vpack.c.bf16 %v1571, %v1571
      %v1587 = vpack.c.bf16 %v1514, %v1562
      %v1588 = vpack.c.bf16 %v1572, %v1572
      %v1589 = vpack.c.bf16 %v1517, %v1563
      %v1590 = vpack.c.bf16 %v1573, %v1573
      %v1591 = vpack.c.bf16 %v1520, %v1564
      %v1592 = vpack.c.bf16 %v1574, %v1574
      %v1593 = vpack.c.bf16 %v1523, %v1565
      %v1594 = vpack.c.bf16 %v1575, %v1575
      %v1595 = vpack.c.bf16 %v1526, %v1566
      %v1596 = vpack.c.bf16 %v1576, %v1576
      %v1617 = vunpack.c.l.b16 %v1577
      %v1618 = vunpack.c.h.b16 %v1577
      %v1619 = vunpack.c.l.b16 %v1578
      %v1620 = vunpack.c.l.b16 %v1579
      %v1621 = vunpack.c.h.b16 %v1579
      %v1622 = vunpack.c.l.b16 %v1580
      %v1623 = vunpack.c.l.b16 %v1581
      %v1624 = vunpack.c.h.b16 %v1581
      %v1625 = vunpack.c.l.b16 %v1582
      %v1626 = vunpack.c.l.b16 %v1583
      %v1627 = vunpack.c.h.b16 %v1583
      %v1628 = vunpack.c.l.b16 %v1584
      %v1629 = vunpack.c.l.b16 %v1585
      %v1630 = vunpack.c.h.b16 %v1585
      %v1631 = vunpack.c.l.b16 %v1586
      %v1632 = vunpack.c.l.b16 %v1587
      %v1633 = vunpack.c.h.b16 %v1587
      %v1634 = vunpack.c.l.b16 %v1588
      %v1635 = vunpack.c.l.b16 %v1589
      %v1636 = vunpack.c.h.b16 %v1589
      %v1637 = vunpack.c.l.b16 %v1590
      %v1638 = vunpack.c.l.b16 %v1591
      %v1639 = vunpack.c.h.b16 %v1591
      %v1640 = vunpack.c.l.b16 %v1592
      %v1641 = vunpack.c.l.b16 %v1593
      %v1642 = vunpack.c.h.b16 %v1593
      %v1643 = vunpack.c.l.b16 %v1594
      %v1644 = vunpack.c.l.b16 %v1595
      %v1645 = vunpack.c.h.b16 %v1595
      %v1646 = vunpack.c.l.b16 %v1596
      %v1647 = vpack.c.b16 %v1617, %v1617
      %v1648 = vpack.c.b16 %v1618, %v1618
      %v1649 = vpack.c.b16 %v1619, %v1619
      %v1650 = vpack.c.b16 %v1620, %v1620
      %v1651 = vpack.c.b16 %v1621, %v1621
      %v1652 = vpack.c.b16 %v1622, %v1622
      %v1653 = vpack.c.b16 %v1623, %v1623
      %v1654 = vpack.c.b16 %v1624, %v1624
      %v1655 = vpack.c.b16 %v1625, %v1625
      %v1656 = vpack.c.b16 %v1626, %v1626
      %v1657 = vpack.c.b16 %v1627, %v1627
      %v1658 = vpack.c.b16 %v1628, %v1628
      %v1659 = vpack.c.b16 %v1629, %v1629
      %v1660 = vpack.c.b16 %v1630, %v1630
      %v1661 = vpack.c.b16 %v1631, %v1631
      %v1662 = vpack.c.b16 %v1632, %v1632
      %v1663 = vpack.c.b16 %v1633, %v1633
      %v1664 = vpack.c.b16 %v1634, %v1634
      %v1665 = vpack.c.b16 %v1635, %v1635
      %v1666 = vpack.c.b16 %v1636, %v1636
      %v1667 = vpack.c.b16 %v1637, %v1637
      %v1668 = vpack.c.b16 %v1638, %v1638
      %v1669 = vpack.c.b16 %v1639, %v1639
      %v1670 = vpack.c.b16 %v1640, %v1640
      %v1671 = vpack.c.b16 %v1641, %v1641
      %v1672 = vpack.c.b16 %v1642, %v1642
      %v1673 = vpack.c.b16 %v1643, %v1643
      %v1674 = vpack.c.b16 %v1644, %v1644
      %v1675 = vpack.c.b16 %v1645, %v1645
      %v1676 = vpack.c.b16 %v1646, %v1646
      %vm1707 = vcmask 60416
      %1708 = vst.msk [vmem:[%s219] sm:$0xf] %vm1707, %v1647
      %1709 = vst.msk [vmem:[%s219 + $0x4] sm:$0xf] %vm1707, %v1648
      %vm1710 = vcmask 57344
      %1711 = vst.msk [vmem:[%s219 + $0x8] sm:$0x1] %vm1710, %v1649
      %1712 = vst.msk [vmem:[%s219 + $0xc] sm:$0xf] %vm1707, %v1650
      %1713 = vst.msk [vmem:[%s219 + $0x10] sm:$0xf] %vm1707, %v1651
      %1714 = vst.msk [vmem:[%s219 + $0x14] sm:$0x1] %vm1710, %v1652
      %1715 = vst.msk [vmem:[%s219 + $0x18] sm:$0xf] %vm1707, %v1653
      %1716 = vst.msk [vmem:[%s219 + $0x1c] sm:$0xf] %vm1707, %v1654
      %1717 = vst.msk [vmem:[%s219 + $0x20] sm:$0x1] %vm1710, %v1655
      %1718 = vst.msk [vmem:[%s219 + $0x24] sm:$0xf] %vm1707, %v1656
      %1719 = vst.msk [vmem:[%s219 + $0x28] sm:$0xf] %vm1707, %v1657
      %1720 = vst.msk [vmem:[%s219 + $0x2c] sm:$0x1] %vm1710, %v1658
      %1721 = vst.msk [vmem:[%s219 + $0x30] sm:$0xf] %vm1707, %v1659
      %1722 = vst.msk [vmem:[%s219 + $0x34] sm:$0xf] %vm1707, %v1660
      %1723 = vst.msk [vmem:[%s219 + $0x38] sm:$0x1] %vm1710, %v1661
      %1724 = vst.msk [vmem:[%s219 + $0x3c] sm:$0xf] %vm1707, %v1662
      %1725 = vst.msk [vmem:[%s219 + $0x40] sm:$0xf] %vm1707, %v1663
      %1726 = vst.msk [vmem:[%s219 + $0x44] sm:$0x1] %vm1710, %v1664
      %1727 = vst.msk [vmem:[%s219 + $0x48] sm:$0xf] %vm1707, %v1665
      %1728 = vst.msk [vmem:[%s219 + $0x4c] sm:$0xf] %vm1707, %v1666
      %1729 = vst.msk [vmem:[%s219 + $0x50] sm:$0x1] %vm1710, %v1667
      %1730 = vst.msk [vmem:[%s219 + $0x54] sm:$0xf] %vm1707, %v1668
      %1731 = vst.msk [vmem:[%s219 + $0x58] sm:$0xf] %vm1707, %v1669
      %1732 = vst.msk [vmem:[%s219 + $0x5c] sm:$0x1] %vm1710, %v1670
      %1733 = vst.msk [vmem:[%s219 + $0x60] sm:$0xf] %vm1707, %v1671
      %1734 = vst.msk [vmem:[%s219 + $0x64] sm:$0xf] %vm1707, %v1672
      %1735 = vst.msk [vmem:[%s219 + $0x68] sm:$0x1] %vm1710, %v1673
      %1736 = vst.msk [vmem:[%s219 + $0x6c] sm:$0xf] %vm1707, %v1674
      %1737 = vst.msk [vmem:[%s219 + $0x70] sm:$0xf] %vm1707, %v1675
      %1738 = vst.msk [vmem:[%s219 + $0x74] sm:$0x1] %vm1710, %v1676
      %p1739 = scmp.lt.s32.totalorder %s19, 1
      %s1740 = scalar_select %p1739, %s19, 1
      %p1741 = scmp.lt.s32.totalorder %s20, 1
      %s1742 = scalar_select %p1741, %s20, 1
      %s1743 = smul.addr %s1742, 30
      %s1744 = smul.addr %s1740, 60
      %s1745 = sadd.s32 %s1743, %s1744
      %s1746 = smul.addr %s1745, 4
      %s1747 = scalar_lea.vmem %s2, %s1746
      %p1748 = scmp.lt.s32.totalorder %s19, 1
      %s1749 = scalar_select %p1748, %s19, 1
      %p1750 = scmp.lt.s32.totalorder %s20, 1
      %s1751 = scalar_select %p1750, %s20, 1
      %s1752 = smul.addr %s1749, 2
      %s1753 = sadd.s32 %s1751, %s1752
      %s1754 = smul.addr %s1753, 8
      %s1755 = scalar_lea.vmem %s3, %s1754
      // Predicated region
      $region29: #{double_conv.3} parent=27 // pred_check
        %p1756 = pneg %p96
      $region30: #{double_conv.3} parent=27 // pred_check_branch
        %1758 = sbr.rel (%p1756) target = $region32
      $region31: #{double_conv.3} parent=27 // pred_region
        _
      $region32: #{double_conv.3} parent=27 // pred_fallthru
        _
      // Predicated region
      $region33: #{double_conv.3} parent=27 // pred_check
        %p1759 = pneg %p124
      $region34: #{double_conv.3} parent=27 // pred_check_branch
        %1761 = sbr.rel (%p1759) target = $region36
      $region35: #{double_conv.3} parent=27 // pred_region
        _
      $region36: #{double_conv.3} parent=27 // pred_fallthru
        _
    $region28: #{double_conv.3} parent=5 // pred_fallthru
      _
    %p1762 = scmp.le.s32.totalorder 2, %s10
    // Predicated region
    $region37: #{double_conv.3} parent=5 // pred_check
      %p1763 = pneg %p1762
    $region38: #{double_conv.3} parent=5 // pred_check_branch
      %1765 = sbr.rel (%p1763) target = $region40
    $region39: #{double_conv.3} parent=5 // pred_region
      %s1766 = ssub.s32 %s10, 2
      // Predicated region
      $region41: #{double_conv.3} parent=39 // pred_check
        %p1767 = pneg %p102
      $region42: #{double_conv.3} parent=39 // pred_check_branch
        %1769 = sbr.rel (%p1767) target = $region44
      $region43: #{double_conv.3} parent=39 // pred_region
        %p1770 = scmp.lt.s32.totalorder %s21, 1
        %s1771 = scalar_select %p1770, %s21, 1
        %p1772 = scmp.lt.s32.totalorder %s22, 1
        %s1773 = scalar_select %p1772, %s22, 1
        %s1774 = smul.addr %s1773, 30
        %s1775 = smul.addr %s1771, 60
        %s1776 = sadd.s32 %s1774, %s1775
        %s1777 = smul.addr %s1776, 4
        %s1778 = scalar_lea.vmem %s2, %s1777
      $region44: #{double_conv.3} parent=39 // pred_fallthru
        _
      // Predicated region
      $region45: #{double_conv.3} parent=39 // pred_check
        %p1779 = pneg %p130
      $region46: #{double_conv.3} parent=39 // pred_check_branch
        %1781 = sbr.rel (%p1779) target = $region48
      $region47: #{double_conv.3} parent=39 // pred_region
        %p1782 = scmp.lt.s32.totalorder %s21, 1
        %s1783 = scalar_select %p1782, %s21, 1
        %p1784 = scmp.lt.s32.totalorder %s22, 1
        %s1785 = scalar_select %p1784, %s22, 1
        %s1786 = smul.addr %s1783, 2
        %s1787 = sadd.s32 %s1785, %s1786
        %s1788 = smul.addr %s1787, 8
        %s1789 = scalar_lea.vmem %s3, %s1788
      $region48: #{double_conv.3} parent=39 // pred_fallthru
        _
    $region40: #{double_conv.3} parent=5 // pred_fallthru
      _
  $region6: #{double_conv.3} parent=0 // loop_footer
    %s14 = sadd.s32 1, %s10
  $region7: #{double_conv.3} parent=0 // loop_footer_branch
    %9 = sbr.rel target = $region3
  $region8: #{double_conv.3} parent=0 // loop_exit
    _

</llo_original>
